<compile_context>
chip_gen: v5e
topology: v5e:2x2
jax: 0.10.0
libtpu: 0.0.40
codegen_flags: <defaults>
</compile_context>

<pallas_src>
import functools

import jax
import jax.numpy as jnp
from jax import lax
from jax.experimental import pallas as pl
from jax.experimental.pallas import tpu as pltpu


# ---------------------------------------------------------------------------
# Fused Pallas kernel (one image per grid step)
# ---------------------------------------------------------------------------
def _basic_block_kernel(x_ref, w1_ref, b1_ref, w2_ref, b2_ref, o_ref,
                        xpad_ref, ypad_ref, *, H, W, C, mxu_dtype):
    """Fused BasicBlock forward for one image.

    x_ref  : (H*W, C)  flat channels-last input image
    w*_ref : (9, C, C) conv taps (t = dy*3+dx, Cin, Cout), BN scale pre-folded
    b*_ref : (1, C)    folded BN bias
    o_ref  : (H*W, C)  output
    xpad_ref / ypad_ref : (H*W + 2*W + 8, C) f32 VMEM scratches holding the flat,
        zero-padded inputs of conv1 / conv2.  The image starts at row W+1, so row
        (o + dy*W + dx) is exactly the padded pixel (y+dy, x+dx) needed by output
        pixel o = y*W + x.  H-padding = the zero rows above/below the image;
        W-padding = the dx==0 / dx==2 tap masks below.
    """
    HW = H * W
    f32 = jnp.float32
    pad_lo = W + 1                # image starts at this row of the padded buffer
    pad_hi = pad_lo + HW          # first padding row below the image
    Rpad = xpad_ref.shape[0]

    # ---- zero ONLY the padding rows (interior is fully overwritten below) ----
    top = jnp.zeros((pad_lo, C), f32)
    bot = jnp.zeros((Rpad - pad_hi, C), f32)
    xpad_ref[0:pad_lo, :] = top
    xpad_ref[pad_hi:, :] = bot
    ypad_ref[0:pad_lo, :] = top
    ypad_ref[pad_hi:, :] = bot

    # interior of conv1's padded input = x
    xpad_ref[pad_lo:pad_hi, :] = x_ref[...].astype(f32)

    # Masks emulating the left / right zero-padding columns.
    col = lax.broadcasted_iota(jnp.int32, (HW, 1), 0) % W
    not_left = col > 0             # dx == 0 taps read column x-1
    not_right = col < (W - 1)      # dx == 2 taps read column x+1

    def conv3x3(src_ref, w_ref, acc0):
        # 9 taps = 9 contiguous, sublane-shifted slices of the flat padded image,
        # accumulated as a single MXU dot chain into one f32 accumulator whose
        # init already carries the folded BN bias (and the residual for conv2).
        acc = acc0
        for t in range(9):
            dy, dx = divmod(t, 3)
            sh = dy * W + dx
            patch = src_ref[sh:sh + HW, :]
            if dx == 0:
                patch = jnp.where(not_left, patch, 0.0)
            elif dx == 2:
                patch = jnp.where(not_right, patch, 0.0)
            acc = acc + jnp.dot(patch.astype(mxu_dtype), w_ref[t],
                                preferred_element_type=f32)
        return acc

    # ---- conv1 + folded bn1 + relu (intermediate stays entirely in VMEM) ----
    acc1 = jnp.broadcast_to(b1_ref[...], (HW, C)).astype(f32)
    y1 = jnp.maximum(conv3x3(xpad_ref, w1_ref, acc1), 0.0)
    ypad_ref[pad_lo:pad_hi, :] = y1

    # ---- conv2 + folded bn2 + residual add + relu (bias+identity folded into init) ----
    acc2 = jnp.broadcast_to(b2_ref[...], (HW, C)).astype(f32) + x_ref[...].astype(f32)
    y2 = conv3x3(ypad_ref, w2_ref, acc2)
    o_ref[...] = jnp.maximum(y2, 0.0).astype(o_ref.dtype)


# ---------------------------------------------------------------------------
# Host-side BN folding / weight prep
# ---------------------------------------------------------------------------
def _fold_bn(gamma, beta, mean, var, eps=1e-5):
    scale = gamma.astype(jnp.float32) / jnp.sqrt(var.astype(jnp.float32) + eps)
    bias = beta.astype(jnp.float32) - mean.astype(jnp.float32) * scale
    return scale, bias


def _fold_scale_into_w(w_hwio, scale, mxu_dtype):
    # (3, 3, Cin, Cout) * scale[Cout]  ->  (9, Cin, Cout) taps, cast for the MXU.
    w = w_hwio.astype(jnp.float32) * scale[None, None, None, :]
    kh, kw, cin, cout = w.shape
    return w.reshape(kh * kw, cin, cout).astype(mxu_dtype)


# ---------------------------------------------------------------------------
# Wrappers around pallas_call
# ---------------------------------------------------------------------------
def basic_block_forward_nhwc(x_nhwc, params, *, mxu_dtype=jnp.bfloat16):
    """BasicBlock forward on NHWC input (preferred end-to-end layout on TPU)."""
    B, H, W, C = x_nhwc.shape
    HW = H * W
    Rpad = HW + 2 * W + 8            # flat padded image rows (+ slack for tap shifts)

    s1, b1 = _fold_bn(params["bn1_gamma"], params["bn1_beta"],
                      params["bn1_mean"], params["bn1_var"])
    s2, b2 = _fold_bn(params["bn2_gamma"], params["bn2_beta"],
                      params["bn2_mean"], params["bn2_var"])
    w1 = _fold_scale_into_w(params["w1"], s1, mxu_dtype)
    w2 = _fold_scale_into_w(params["w2"], s2, mxu_dtype)
    b1 = b1.reshape(1, C)
    b2 = b2.reshape(1, C)

    x_flat = x_nhwc.reshape(B, HW, C)          # free (row-major) reshape

    kernel = functools.partial(_basic_block_kernel, H=H, W=W, C=C,
                               mxu_dtype=mxu_dtype)

    out = pl.pallas_call(
        kernel,
        out_shape=jax.ShapeDtypeStruct((B, HW, C), x_nhwc.dtype),
        grid=(B,),
        in_specs=[
            pl.BlockSpec((None, HW, C), lambda b: (b, 0, 0)),   # x (one image)
            pl.BlockSpec((9, C, C), lambda b: (0, 0, 0)),       # w1 (scale folded)
            pl.BlockSpec((1, C), lambda b: (0, 0)),             # b1
            pl.BlockSpec((9, C, C), lambda b: (0, 0, 0)),       # w2 (scale folded)
            pl.BlockSpec((1, C), lambda b: (0, 0)),             # b2
        ],
        out_specs=pl.BlockSpec((None, HW, C), lambda b: (b, 0, 0)),
        scratch_shapes=[
            pltpu.VMEM((Rpad, C), jnp.float32),   # padded input image
            pltpu.VMEM((Rpad, C), jnp.float32),   # padded conv1 output (never in HBM)
        ],
        compiler_params=pltpu.CompilerParams(
            dimension_semantics=("parallel",),    # batch across cores (megacore)
            vmem_limit_bytes=32 * 1024 * 1024,
        ),
    )(x_flat, w1, b1, w2, b2)

    return out.reshape(B, H, W, C)


def basic_block_forward(x_nchw, params, *, mxu_dtype=jnp.bfloat16):
    """NCHW wrapper matching the PyTorch convention.

    # TODO(synk): in a full network keep activations NHWC end-to-end and call
    # basic_block_forward_nhwc directly -- these two transposes are pure HBM
    # traffic that exists only to match the PyTorch NCHW interface.
    """
    x = jnp.transpose(x_nchw, (0, 2, 3, 1))
    out = basic_block_forward_nhwc(x, params, mxu_dtype=mxu_dtype)
    return jnp.transpose(out, (0, 3, 1, 2))


# ---------------------------------------------------------------------------
# Pure-JAX reference (for sanity checking the kernel)
# ---------------------------------------------------------------------------
def _ref_forward(x_nchw, params):
    def conv(x, w_hwio):
        return lax.conv_general_dilated(
            x, w_hwio, window_strides=(1, 1), padding=((1, 1), (1, 1)),
            dimension_numbers=("NCHW", "HWIO", "NCHW"))

    def bn(x, g, b, m, v, eps=1e-5):
        s = g / jnp.sqrt(v + eps)
        return x * s[None, :, None, None] + (b - m * s)[None, :, None, None]

    out = conv(x_nchw, params["w1"])
    out = jnp.maximum(bn(out, params["bn1_gamma"], params["bn1_beta"],
                         params["bn1_mean"], params["bn1_var"]), 0.0)
    out = conv(out, params["w2"])
    out = bn(out, params["bn2_gamma"], params["bn2_beta"],
             params["bn2_mean"], params["bn2_var"])
    return jnp.maximum(out + x_nchw, 0.0)


# ---------------------------------------------------------------------------
def init_params(key, inplanes, planes):
    k1, k2, k3, k4 = jax.random.split(key, 4)
    fan1 = 9 * inplanes
    fan2 = 9 * planes
    return {
        # conv weights stored as (kh, kw, Cin, Cout)  (PyTorch layout: (Cout,Cin,kh,kw))
        "w1": jax.random.normal(k1, (3, 3, inplanes, planes), jnp.float32)
              * (2.0 / fan1) ** 0.5,
        "w2": jax.random.normal(k2, (3, 3, planes, planes), jnp.float32)
              * (2.0 / fan2) ** 0.5,
        "bn1_gamma": 1.0 + 0.1 * jax.random.normal(k3, (planes,), jnp.float32),
        "bn1_beta": 0.05 * jnp.arange(planes, dtype=jnp.float32),
        "bn1_mean": 0.01 * jnp.arange(planes, dtype=jnp.float32),
        "bn1_var": jnp.linspace(0.5, 1.5, planes, dtype=jnp.float32),
        "bn2_gamma": 1.0 + 0.1 * jax.random.normal(k4, (planes,), jnp.float32),
        "bn2_beta": -0.03 * jnp.arange(planes, dtype=jnp.float32),
        "bn2_mean": 0.02 * jnp.arange(planes, dtype=jnp.float32),
        "bn2_var": jnp.linspace(0.8, 1.2, planes, dtype=jnp.float32),
    }


if __name__ == "__main__":
    B, C, H, W = 2, 4, 16, 16          # inplanes = planes = 4, stride = 1
    key = jax.random.PRNGKey(0)
    kx, kp = jax.random.split(key)

    x = jax.random.normal(kx, (B, C, H, W), jnp.float32)      # NCHW input
    params = init_params(kp, C, C)

    ref = jax.block_until_ready(_ref_forward(x, params))

    # f32 MXU operands: tight check against the XLA conv reference.
    out_f32 = jax.block_until_ready(
        basic_block_forward(x, params, mxu_dtype=jnp.float32))
    assert out_f32.shape == ref.shape == (B, C, H, W)
    assert jnp.allclose(out_f32, ref, rtol=1e-2, atol=1e-2), (
        f"f32 max abs err {jnp.max(jnp.abs(out_f32 - ref))}")

    # bf16 MXU operands (default fast path on v6e/v7x): loose check.
    out_bf16 = jax.block_until_ready(basic_block_forward(x, params))
    assert out_bf16.shape == ref.shape
    rel_l2 = jnp.linalg.norm(out_bf16 - ref) / (jnp.linalg.norm(ref) + 1e-12)
    assert float(rel_l2) < 2e-2, f"bf16 relative L2 err {float(rel_l2)}"

    print("KERNEL_OK")
</pallas_src>

<mosaic_0001>
module attributes {stable_mosaic.version = 11 : i64} {
  func.func @_basic_block_kernel(%arg0: i32, %arg1: memref<1x256x4xf32, #tpu.memory_space<vmem>>, %arg2: memref<9x4x4xf32, #tpu.memory_space<vmem>>, %arg3: memref<1x4xf32, #tpu.memory_space<vmem>>, %arg4: memref<9x4x4xf32, #tpu.memory_space<vmem>>, %arg5: memref<1x4xf32, #tpu.memory_space<vmem>>, %arg6: memref<1x256x4xf32, #tpu.memory_space<vmem>>, %arg7: memref<296x4xf32, #tpu.memory_space<vmem>>, %arg8: memref<296x4xf32, #tpu.memory_space<vmem>>) attributes {dimension_semantics = [#tpu.dimension_semantics<parallel>], iteration_bounds = array<i64: 2>, scalar_prefetch = 0 : i64, scratch_operands = 2 : i64, tpu.core_type = #tpu.core_type<tc>, window_params = [{transform_indices = @transform_0, window_bounds = array<i64: 1, 256, 4>}, {pipeline_mode = #tpu.pipeline_mode<synchronous>, transform_indices = @transform_1, window_bounds = array<i64: 9, 4, 4>}, {pipeline_mode = #tpu.pipeline_mode<synchronous>, transform_indices = @transform_2, window_bounds = array<i64: 1, 4>}, {pipeline_mode = #tpu.pipeline_mode<synchronous>, transform_indices = @transform_3, window_bounds = array<i64: 9, 4, 4>}, {pipeline_mode = #tpu.pipeline_mode<synchronous>, transform_indices = @transform_4, window_bounds = array<i64: 1, 4>}, {transform_indices = @transform_5, window_bounds = array<i64: 1, 256, 4>}]} {
    %cst = arith.constant 0.000000e+00 : f32
    %0 = vector.broadcast %cst : f32 to vector<17x4xf32>
    %cst_0 = arith.constant 0.000000e+00 : f32
    %1 = vector.broadcast %cst_0 : f32 to vector<23x4xf32>
    %c0 = arith.constant 0 : index
    %c0_1 = arith.constant 0 : index
    %2 = vector.load %arg7[%c0, %c0_1] : memref<296x4xf32, #tpu.memory_space<vmem>>, vector<17x4xf32>
    tpu.vector_store %arg7[%c0, %c0_1], %0 {strides = array<i32>} : memref<296x4xf32, #tpu.memory_space<vmem>>, vector<17x4xf32>,
    %c273 = arith.constant 273 : index
    %c0_2 = arith.constant 0 : index
    %3 = vector.load %arg7[%c273, %c0_2] : memref<296x4xf32, #tpu.memory_space<vmem>>, vector<23x4xf32>
    tpu.vector_store %arg7[%c273, %c0_2], %1 {strides = array<i32>} : memref<296x4xf32, #tpu.memory_space<vmem>>, vector<23x4xf32>,
    %c0_3 = arith.constant 0 : index
    %c0_4 = arith.constant 0 : index
    %4 = vector.load %arg8[%c0_3, %c0_4] : memref<296x4xf32, #tpu.memory_space<vmem>>, vector<17x4xf32>
    tpu.vector_store %arg8[%c0_3, %c0_4], %0 {strides = array<i32>} : memref<296x4xf32, #tpu.memory_space<vmem>>, vector<17x4xf32>,
    %c273_5 = arith.constant 273 : index
    %c0_6 = arith.constant 0 : index
    %5 = vector.load %arg8[%c273_5, %c0_6] : memref<296x4xf32, #tpu.memory_space<vmem>>, vector<23x4xf32>
    tpu.vector_store %arg8[%c273_5, %c0_6], %1 {strides = array<i32>} : memref<296x4xf32, #tpu.memory_space<vmem>>, vector<23x4xf32>,
    %c0_7 = arith.constant 0 : index
    %c0_8 = arith.constant 0 : index
    %c0_9 = arith.constant 0 : index
    %6 = vector.load %arg1[%c0_7, %c0_8, %c0_9] : memref<1x256x4xf32, #tpu.memory_space<vmem>>, vector<1x256x4xf32>
    %7 = vector.shape_cast %6 : vector<1x256x4xf32> to vector<256x4xf32>
    %c17 = arith.constant 17 : index
    %c0_10 = arith.constant 0 : index
    %8 = vector.load %arg7[%c17, %c0_10] : memref<296x4xf32, #tpu.memory_space<vmem>>, vector<256x4xf32>
    tpu.vector_store %arg7[%c17, %c0_10], %7 {strides = array<i32>} : memref<296x4xf32, #tpu.memory_space<vmem>>, vector<256x4xf32>,
    %9 = tpu.iota {dimensions = array<i32: 0>} : vector<256x1xi32>
    %c16_i32 = arith.constant 16 : i32
    %c0_i32 = arith.constant 0 : i32
    %10 = arith.cmpi eq, %c16_i32, %c0_i32 : i32
    %c1_i32 = arith.constant 1 : i32
    %11 = arith.select %10, %c1_i32, %c16_i32 : i32
    %12 = vector.broadcast %11 : i32 to vector<256x1xi32>
    %13 = arith.remsi %9, %12 : vector<256x1xi32>
    %c0_i32_11 = arith.constant 0 : i32
    %14 = vector.broadcast %c0_i32_11 : i32 to vector<256x1xi32>
    %15 = arith.cmpi ne, %13, %14 : vector<256x1xi32>
    %c0_i32_12 = arith.constant 0 : i32
    %16 = vector.broadcast %c0_i32_12 : i32 to vector<256x1xi32>
    %17 = arith.cmpi slt, %13, %16 : vector<256x1xi32>
    %c0_i32_13 = arith.constant 0 : i32
    %18 = arith.cmpi slt, %11, %c0_i32_13 : i32
    %19 = vector.broadcast %18 : i1 to vector<256x1xi1>
    %20 = vector.broadcast %19 : vector<256x1xi1> to vector<256x1xi1>
    %21 = arith.xori %17, %20 : vector<256x1xi1>
    %22 = arith.andi %21, %15 : vector<256x1xi1>
    %23 = vector.broadcast %11 : i32 to vector<256x1xi32>
    %24 = arith.addi %13, %23 : vector<256x1xi32>
    %25 = arith.select %22, %24, %13 : vector<256x1xi1>, vector<256x1xi32>
    %c0_i32_14 = arith.constant 0 : i32
    %26 = vector.broadcast %c0_i32_14 : i32 to vector<256x1xi32>
    %27 = arith.cmpi sgt, %25, %26 : vector<256x1xi32>
    %c15_i32 = arith.constant 15 : i32
    %28 = vector.broadcast %c15_i32 : i32 to vector<256x1xi32>
    %29 = arith.cmpi slt, %25, %28 : vector<256x1xi32>
    %c0_15 = arith.constant 0 : index
    %c0_16 = arith.constant 0 : index
    %30 = vector.load %arg3[%c0_15, %c0_16] : memref<1x4xf32, #tpu.memory_space<vmem>>, vector<1x4xf32>
    %31 = vector.shape_cast %30 : vector<1x4xf32> to vector<1x4xf32>
    %32 = vector.broadcast %31 : vector<1x4xf32> to vector<256x4xf32>
    %c0_17 = arith.constant 0 : index
    %c0_18 = arith.constant 0 : index
    %33 = vector.load %arg7[%c0_17, %c0_18] : memref<296x4xf32, #tpu.memory_space<vmem>>, vector<256x4xf32>
    %cst_19 = arith.constant 0.000000e+00 : f32
    %34 = vector.shape_cast %27 : vector<256x1xi1> to vector<256x1xi1>
    %35 = vector.broadcast %34 : vector<256x1xi1> to vector<256x4xi1>
    %36 = vector.broadcast %cst_19 : f32 to vector<256x4xf32>
    %37 = arith.select %35, %33, %36 : vector<256x4xi1>, vector<256x4xf32>
    %c0_20 = arith.constant 0 : index
    %c0_21 = arith.constant 0 : index
    %c0_22 = arith.constant 0 : index
    %38 = vector.load %arg2[%c0_20, %c0_21, %c0_22] : memref<9x4x4xf32, #tpu.memory_space<vmem>>, vector<1x4x4xf32>
    %39 = vector.shape_cast %38 : vector<1x4x4xf32> to vector<4x4xf32>
    %cst_23 = arith.constant dense<0.000000e+00> : vector<256x4xf32>
    %40 = tpu.matmul %37, %39, %cst_23 {dimension_numbers = #tpu.dot_dimension_numbers<[1], [0], [0], [1], [0, 0, 1, 1], [], []>} : vector<256x4xf32>, vector<4x4xf32>, vector<256x4xf32> -> vector<256x4xf32>
    %41 = arith.addf %32, %40 : vector<256x4xf32>
    %c1 = arith.constant 1 : index
    %c0_24 = arith.constant 0 : index
    %42 = vector.load %arg7[%c1, %c0_24] : memref<296x4xf32, #tpu.memory_space<vmem>>, vector<256x4xf32>
    %c1_25 = arith.constant 1 : index
    %c0_26 = arith.constant 0 : index
    %c0_27 = arith.constant 0 : index
    %43 = vector.load %arg2[%c1_25, %c0_26, %c0_27] : memref<9x4x4xf32, #tpu.memory_space<vmem>>, vector<1x4x4xf32>
    %44 = vector.shape_cast %43 : vector<1x4x4xf32> to vector<4x4xf32>
    %cst_28 = arith.constant dense<0.000000e+00> : vector<256x4xf32>
    %45 = tpu.matmul %42, %44, %cst_28 {dimension_numbers = #tpu.dot_dimension_numbers<[1], [0], [0], [1], [0, 0, 1, 1], [], []>} : vector<256x4xf32>, vector<4x4xf32>, vector<256x4xf32> -> vector<256x4xf32>
    %46 = arith.addf %41, %45 : vector<256x4xf32>
    %c2 = arith.constant 2 : index
    %c0_29 = arith.constant 0 : index
    %47 = vector.load %arg7[%c2, %c0_29] : memref<296x4xf32, #tpu.memory_space<vmem>>, vector<256x4xf32>
    %cst_30 = arith.constant 0.000000e+00 : f32
    %48 = vector.shape_cast %29 : vector<256x1xi1> to vector<256x1xi1>
    %49 = vector.broadcast %48 : vector<256x1xi1> to vector<256x4xi1>
    %50 = vector.broadcast %cst_30 : f32 to vector<256x4xf32>
    %51 = arith.select %49, %47, %50 : vector<256x4xi1>, vector<256x4xf32>
    %c2_31 = arith.constant 2 : index
    %c0_32 = arith.constant 0 : index
    %c0_33 = arith.constant 0 : index
    %52 = vector.load %arg2[%c2_31, %c0_32, %c0_33] : memref<9x4x4xf32, #tpu.memory_space<vmem>>, vector<1x4x4xf32>
    %53 = vector.shape_cast %52 : vector<1x4x4xf32> to vector<4x4xf32>
    %cst_34 = arith.constant dense<0.000000e+00> : vector<256x4xf32>
    %54 = tpu.matmul %51, %53, %cst_34 {dimension_numbers = #tpu.dot_dimension_numbers<[1], [0], [0], [1], [0, 0, 1, 1], [], []>} : vector<256x4xf32>, vector<4x4xf32>, vector<256x4xf32> -> vector<256x4xf32>
    %55 = arith.addf %46, %54 : vector<256x4xf32>
    %c16 = arith.constant 16 : index
    %c0_35 = arith.constant 0 : index
    %56 = vector.load %arg7[%c16, %c0_35] : memref<296x4xf32, #tpu.memory_space<vmem>>, vector<256x4xf32>
    %cst_36 = arith.constant 0.000000e+00 : f32
    %57 = vector.shape_cast %27 : vector<256x1xi1> to vector<256x1xi1>
    %58 = vector.broadcast %57 : vector<256x1xi1> to vector<256x4xi1>
    %59 = vector.broadcast %cst_36 : f32 to vector<256x4xf32>
    %60 = arith.select %58, %56, %59 : vector<256x4xi1>, vector<256x4xf32>
    %c3 = arith.constant 3 : index
    %c0_37 = arith.constant 0 : index
    %c0_38 = arith.constant 0 : index
    %61 = vector.load %arg2[%c3, %c0_37, %c0_38] : memref<9x4x4xf32, #tpu.memory_space<vmem>>, vector<1x4x4xf32>
    %62 = vector.shape_cast %61 : vector<1x4x4xf32> to vector<4x4xf32>
    %cst_39 = arith.constant dense<0.000000e+00> : vector<256x4xf32>
    %63 = tpu.matmul %60, %62, %cst_39 {dimension_numbers = #tpu.dot_dimension_numbers<[1], [0], [0], [1], [0, 0, 1, 1], [], []>} : vector<256x4xf32>, vector<4x4xf32>, vector<256x4xf32> -> vector<256x4xf32>
    %64 = arith.addf %55, %63 : vector<256x4xf32>
    %c17_40 = arith.constant 17 : index
    %c0_41 = arith.constant 0 : index
    %65 = vector.load %arg7[%c17_40, %c0_41] : memref<296x4xf32, #tpu.memory_space<vmem>>, vector<256x4xf32>
    %c4 = arith.constant 4 : index
    %c0_42 = arith.constant 0 : index
    %c0_43 = arith.constant 0 : index
    %66 = vector.load %arg2[%c4, %c0_42, %c0_43] : memref<9x4x4xf32, #tpu.memory_space<vmem>>, vector<1x4x4xf32>
    %67 = vector.shape_cast %66 : vector<1x4x4xf32> to vector<4x4xf32>
    %cst_44 = arith.constant dense<0.000000e+00> : vector<256x4xf32>
    %68 = tpu.matmul %65, %67, %cst_44 {dimension_numbers = #tpu.dot_dimension_numbers<[1], [0], [0], [1], [0, 0, 1, 1], [], []>} : vector<256x4xf32>, vector<4x4xf32>, vector<256x4xf32> -> vector<256x4xf32>
    %69 = arith.addf %64, %68 : vector<256x4xf32>
    %c18 = arith.constant 18 : index
    %c0_45 = arith.constant 0 : index
    %70 = vector.load %arg7[%c18, %c0_45] : memref<296x4xf32, #tpu.memory_space<vmem>>, vector<256x4xf32>
    %cst_46 = arith.constant 0.000000e+00 : f32
    %71 = vector.shape_cast %29 : vector<256x1xi1> to vector<256x1xi1>
    %72 = vector.broadcast %71 : vector<256x1xi1> to vector<256x4xi1>
    %73 = vector.broadcast %cst_46 : f32 to vector<256x4xf32>
    %74 = arith.select %72, %70, %73 : vector<256x4xi1>, vector<256x4xf32>
    %c5 = arith.constant 5 : index
    %c0_47 = arith.constant 0 : index
    %c0_48 = arith.constant 0 : index
    %75 = vector.load %arg2[%c5, %c0_47, %c0_48] : memref<9x4x4xf32, #tpu.memory_space<vmem>>, vector<1x4x4xf32>
    %76 = vector.shape_cast %75 : vector<1x4x4xf32> to vector<4x4xf32>
    %cst_49 = arith.constant dense<0.000000e+00> : vector<256x4xf32>
    %77 = tpu.matmul %74, %76, %cst_49 {dimension_numbers = #tpu.dot_dimension_numbers<[1], [0], [0], [1], [0, 0, 1, 1], [], []>} : vector<256x4xf32>, vector<4x4xf32>, vector<256x4xf32> -> vector<256x4xf32>
    %78 = arith.addf %69, %77 : vector<256x4xf32>
    %c32 = arith.constant 32 : index
    %c0_50 = arith.constant 0 : index
    %79 = vector.load %arg7[%c32, %c0_50] : memref<296x4xf32, #tpu.memory_space<vmem>>, vector<256x4xf32>
    %cst_51 = arith.constant 0.000000e+00 : f32
    %80 = vector.shape_cast %27 : vector<256x1xi1> to vector<256x1xi1>
    %81 = vector.broadcast %80 : vector<256x1xi1> to vector<256x4xi1>
    %82 = vector.broadcast %cst_51 : f32 to vector<256x4xf32>
    %83 = arith.select %81, %79, %82 : vector<256x4xi1>, vector<256x4xf32>
    %c6 = arith.constant 6 : index
    %c0_52 = arith.constant 0 : index
    %c0_53 = arith.constant 0 : index
    %84 = vector.load %arg2[%c6, %c0_52, %c0_53] : memref<9x4x4xf32, #tpu.memory_space<vmem>>, vector<1x4x4xf32>
    %85 = vector.shape_cast %84 : vector<1x4x4xf32> to vector<4x4xf32>
    %cst_54 = arith.constant dense<0.000000e+00> : vector<256x4xf32>
    %86 = tpu.matmul %83, %85, %cst_54 {dimension_numbers = #tpu.dot_dimension_numbers<[1], [0], [0], [1], [0, 0, 1, 1], [], []>} : vector<256x4xf32>, vector<4x4xf32>, vector<256x4xf32> -> vector<256x4xf32>
    %87 = arith.addf %78, %86 : vector<256x4xf32>
    %c33 = arith.constant 33 : index
    %c0_55 = arith.constant 0 : index
    %88 = vector.load %arg7[%c33, %c0_55] : memref<296x4xf32, #tpu.memory_space<vmem>>, vector<256x4xf32>
    %c7 = arith.constant 7 : index
    %c0_56 = arith.constant 0 : index
    %c0_57 = arith.constant 0 : index
    %89 = vector.load %arg2[%c7, %c0_56, %c0_57] : memref<9x4x4xf32, #tpu.memory_space<vmem>>, vector<1x4x4xf32>
    %90 = vector.shape_cast %89 : vector<1x4x4xf32> to vector<4x4xf32>
    %cst_58 = arith.constant dense<0.000000e+00> : vector<256x4xf32>
    %91 = tpu.matmul %88, %90, %cst_58 {dimension_numbers = #tpu.dot_dimension_numbers<[1], [0], [0], [1], [0, 0, 1, 1], [], []>} : vector<256x4xf32>, vector<4x4xf32>, vector<256x4xf32> -> vector<256x4xf32>
    %92 = arith.addf %87, %91 : vector<256x4xf32>
    %c34 = arith.constant 34 : index
    %c0_59 = arith.constant 0 : index
    %93 = vector.load %arg7[%c34, %c0_59] : memref<296x4xf32, #tpu.memory_space<vmem>>, vector<256x4xf32>
    %cst_60 = arith.constant 0.000000e+00 : f32
    %94 = vector.shape_cast %29 : vector<256x1xi1> to vector<256x1xi1>
    %95 = vector.broadcast %94 : vector<256x1xi1> to vector<256x4xi1>
    %96 = vector.broadcast %cst_60 : f32 to vector<256x4xf32>
    %97 = arith.select %95, %93, %96 : vector<256x4xi1>, vector<256x4xf32>
    %c8 = arith.constant 8 : index
    %c0_61 = arith.constant 0 : index
    %c0_62 = arith.constant 0 : index
    %98 = vector.load %arg2[%c8, %c0_61, %c0_62] : memref<9x4x4xf32, #tpu.memory_space<vmem>>, vector<1x4x4xf32>
    %99 = vector.shape_cast %98 : vector<1x4x4xf32> to vector<4x4xf32>
    %cst_63 = arith.constant dense<0.000000e+00> : vector<256x4xf32>
    %100 = tpu.matmul %97, %99, %cst_63 {dimension_numbers = #tpu.dot_dimension_numbers<[1], [0], [0], [1], [0, 0, 1, 1], [], []>} : vector<256x4xf32>, vector<4x4xf32>, vector<256x4xf32> -> vector<256x4xf32>
    %101 = arith.addf %92, %100 : vector<256x4xf32>
    %cst_64 = arith.constant 0.000000e+00 : f32
    %102 = vector.broadcast %cst_64 : f32 to vector<256x4xf32>
    %103 = arith.maximumf %101, %102 : vector<256x4xf32>
    %c17_65 = arith.constant 17 : index
    %c0_66 = arith.constant 0 : index
    %104 = vector.load %arg8[%c17_65, %c0_66] : memref<296x4xf32, #tpu.memory_space<vmem>>, vector<256x4xf32>
    tpu.vector_store %arg8[%c17_65, %c0_66], %103 {strides = array<i32>} : memref<296x4xf32, #tpu.memory_space<vmem>>, vector<256x4xf32>,
    %c0_67 = arith.constant 0 : index
    %c0_68 = arith.constant 0 : index
    %105 = vector.load %arg5[%c0_67, %c0_68] : memref<1x4xf32, #tpu.memory_space<vmem>>, vector<1x4xf32>
    %106 = vector.shape_cast %105 : vector<1x4xf32> to vector<1x4xf32>
    %107 = vector.broadcast %106 : vector<1x4xf32> to vector<256x4xf32>
    %c0_69 = arith.constant 0 : index
    %c0_70 = arith.constant 0 : index
    %c0_71 = arith.constant 0 : index
    %108 = vector.load %arg1[%c0_69, %c0_70, %c0_71] : memref<1x256x4xf32, #tpu.memory_space<vmem>>, vector<1x256x4xf32>
    %109 = vector.shape_cast %108 : vector<1x256x4xf32> to vector<256x4xf32>
    %110 = arith.addf %107, %109 : vector<256x4xf32>
    %c0_72 = arith.constant 0 : index
    %c0_73 = arith.constant 0 : index
    %111 = vector.load %arg8[%c0_72, %c0_73] : memref<296x4xf32, #tpu.memory_space<vmem>>, vector<256x4xf32>
    %cst_74 = arith.constant 0.000000e+00 : f32
    %112 = vector.shape_cast %27 : vector<256x1xi1> to vector<256x1xi1>
    %113 = vector.broadcast %112 : vector<256x1xi1> to vector<256x4xi1>
    %114 = vector.broadcast %cst_74 : f32 to vector<256x4xf32>
    %115 = arith.select %113, %111, %114 : vector<256x4xi1>, vector<256x4xf32>
    %c0_75 = arith.constant 0 : index
    %c0_76 = arith.constant 0 : index
    %c0_77 = arith.constant 0 : index
    %116 = vector.load %arg4[%c0_75, %c0_76, %c0_77] : memref<9x4x4xf32, #tpu.memory_space<vmem>>, vector<1x4x4xf32>
    %117 = vector.shape_cast %116 : vector<1x4x4xf32> to vector<4x4xf32>
    %cst_78 = arith.constant dense<0.000000e+00> : vector<256x4xf32>
    %118 = tpu.matmul %115, %117, %cst_78 {dimension_numbers = #tpu.dot_dimension_numbers<[1], [0], [0], [1], [0, 0, 1, 1], [], []>} : vector<256x4xf32>, vector<4x4xf32>, vector<256x4xf32> -> vector<256x4xf32>
    %119 = arith.addf %110, %118 : vector<256x4xf32>
    %c1_79 = arith.constant 1 : index
    %c0_80 = arith.constant 0 : index
    %120 = vector.load %arg8[%c1_79, %c0_80] : memref<296x4xf32, #tpu.memory_space<vmem>>, vector<256x4xf32>
    %c1_81 = arith.constant 1 : index
    %c0_82 = arith.constant 0 : index
    %c0_83 = arith.constant 0 : index
    %121 = vector.load %arg4[%c1_81, %c0_82, %c0_83] : memref<9x4x4xf32, #tpu.memory_space<vmem>>, vector<1x4x4xf32>
    %122 = vector.shape_cast %121 : vector<1x4x4xf32> to vector<4x4xf32>
    %cst_84 = arith.constant dense<0.000000e+00> : vector<256x4xf32>
    %123 = tpu.matmul %120, %122, %cst_84 {dimension_numbers = #tpu.dot_dimension_numbers<[1], [0], [0], [1], [0, 0, 1, 1], [], []>} : vector<256x4xf32>, vector<4x4xf32>, vector<256x4xf32> -> vector<256x4xf32>
    %124 = arith.addf %119, %123 : vector<256x4xf32>
    %c2_85 = arith.constant 2 : index
    %c0_86 = arith.constant 0 : index
    %125 = vector.load %arg8[%c2_85, %c0_86] : memref<296x4xf32, #tpu.memory_space<vmem>>, vector<256x4xf32>
    %cst_87 = arith.constant 0.000000e+00 : f32
    %126 = vector.shape_cast %29 : vector<256x1xi1> to vector<256x1xi1>
    %127 = vector.broadcast %126 : vector<256x1xi1> to vector<256x4xi1>
    %128 = vector.broadcast %cst_87 : f32 to vector<256x4xf32>
    %129 = arith.select %127, %125, %128 : vector<256x4xi1>, vector<256x4xf32>
    %c2_88 = arith.constant 2 : index
    %c0_89 = arith.constant 0 : index
    %c0_90 = arith.constant 0 : index
    %130 = vector.load %arg4[%c2_88, %c0_89, %c0_90] : memref<9x4x4xf32, #tpu.memory_space<vmem>>, vector<1x4x4xf32>
    %131 = vector.shape_cast %130 : vector<1x4x4xf32> to vector<4x4xf32>
    %cst_91 = arith.constant dense<0.000000e+00> : vector<256x4xf32>
    %132 = tpu.matmul %129, %131, %cst_91 {dimension_numbers = #tpu.dot_dimension_numbers<[1], [0], [0], [1], [0, 0, 1, 1], [], []>} : vector<256x4xf32>, vector<4x4xf32>, vector<256x4xf32> -> vector<256x4xf32>
    %133 = arith.addf %124, %132 : vector<256x4xf32>
    %c16_92 = arith.constant 16 : index
    %c0_93 = arith.constant 0 : index
    %134 = vector.load %arg8[%c16_92, %c0_93] : memref<296x4xf32, #tpu.memory_space<vmem>>, vector<256x4xf32>
    %cst_94 = arith.constant 0.000000e+00 : f32
    %135 = vector.shape_cast %27 : vector<256x1xi1> to vector<256x1xi1>
    %136 = vector.broadcast %135 : vector<256x1xi1> to vector<256x4xi1>
    %137 = vector.broadcast %cst_94 : f32 to vector<256x4xf32>
    %138 = arith.select %136, %134, %137 : vector<256x4xi1>, vector<256x4xf32>
    %c3_95 = arith.constant 3 : index
    %c0_96 = arith.constant 0 : index
    %c0_97 = arith.constant 0 : index
    %139 = vector.load %arg4[%c3_95, %c0_96, %c0_97] : memref<9x4x4xf32, #tpu.memory_space<vmem>>, vector<1x4x4xf32>
    %140 = vector.shape_cast %139 : vector<1x4x4xf32> to vector<4x4xf32>
    %cst_98 = arith.constant dense<0.000000e+00> : vector<256x4xf32>
    %141 = tpu.matmul %138, %140, %cst_98 {dimension_numbers = #tpu.dot_dimension_numbers<[1], [0], [0], [1], [0, 0, 1, 1], [], []>} : vector<256x4xf32>, vector<4x4xf32>, vector<256x4xf32> -> vector<256x4xf32>
    %142 = arith.addf %133, %141 : vector<256x4xf32>
    %c17_99 = arith.constant 17 : index
    %c0_100 = arith.constant 0 : index
    %143 = vector.load %arg8[%c17_99, %c0_100] : memref<296x4xf32, #tpu.memory_space<vmem>>, vector<256x4xf32>
    %c4_101 = arith.constant 4 : index
    %c0_102 = arith.constant 0 : index
    %c0_103 = arith.constant 0 : index
    %144 = vector.load %arg4[%c4_101, %c0_102, %c0_103] : memref<9x4x4xf32, #tpu.memory_space<vmem>>, vector<1x4x4xf32>
    %145 = vector.shape_cast %144 : vector<1x4x4xf32> to vector<4x4xf32>
    %cst_104 = arith.constant dense<0.000000e+00> : vector<256x4xf32>
    %146 = tpu.matmul %143, %145, %cst_104 {dimension_numbers = #tpu.dot_dimension_numbers<[1], [0], [0], [1], [0, 0, 1, 1], [], []>} : vector<256x4xf32>, vector<4x4xf32>, vector<256x4xf32> -> vector<256x4xf32>
    %147 = arith.addf %142, %146 : vector<256x4xf32>
    %c18_105 = arith.constant 18 : index
    %c0_106 = arith.constant 0 : index
    %148 = vector.load %arg8[%c18_105, %c0_106] : memref<296x4xf32, #tpu.memory_space<vmem>>, vector<256x4xf32>
    %cst_107 = arith.constant 0.000000e+00 : f32
    %149 = vector.shape_cast %29 : vector<256x1xi1> to vector<256x1xi1>
    %150 = vector.broadcast %149 : vector<256x1xi1> to vector<256x4xi1>
    %151 = vector.broadcast %cst_107 : f32 to vector<256x4xf32>
    %152 = arith.select %150, %148, %151 : vector<256x4xi1>, vector<256x4xf32>
    %c5_108 = arith.constant 5 : index
    %c0_109 = arith.constant 0 : index
    %c0_110 = arith.constant 0 : index
    %153 = vector.load %arg4[%c5_108, %c0_109, %c0_110] : memref<9x4x4xf32, #tpu.memory_space<vmem>>, vector<1x4x4xf32>
    %154 = vector.shape_cast %153 : vector<1x4x4xf32> to vector<4x4xf32>
    %cst_111 = arith.constant dense<0.000000e+00> : vector<256x4xf32>
    %155 = tpu.matmul %152, %154, %cst_111 {dimension_numbers = #tpu.dot_dimension_numbers<[1], [0], [0], [1], [0, 0, 1, 1], [], []>} : vector<256x4xf32>, vector<4x4xf32>, vector<256x4xf32> -> vector<256x4xf32>
    %156 = arith.addf %147, %155 : vector<256x4xf32>
    %c32_112 = arith.constant 32 : index
    %c0_113 = arith.constant 0 : index
    %157 = vector.load %arg8[%c32_112, %c0_113] : memref<296x4xf32, #tpu.memory_space<vmem>>, vector<256x4xf32>
    %cst_114 = arith.constant 0.000000e+00 : f32
    %158 = vector.shape_cast %27 : vector<256x1xi1> to vector<256x1xi1>
    %159 = vector.broadcast %158 : vector<256x1xi1> to vector<256x4xi1>
    %160 = vector.broadcast %cst_114 : f32 to vector<256x4xf32>
    %161 = arith.select %159, %157, %160 : vector<256x4xi1>, vector<256x4xf32>
    %c6_115 = arith.constant 6 : index
    %c0_116 = arith.constant 0 : index
    %c0_117 = arith.constant 0 : index
    %162 = vector.load %arg4[%c6_115, %c0_116, %c0_117] : memref<9x4x4xf32, #tpu.memory_space<vmem>>, vector<1x4x4xf32>
    %163 = vector.shape_cast %162 : vector<1x4x4xf32> to vector<4x4xf32>
    %cst_118 = arith.constant dense<0.000000e+00> : vector<256x4xf32>
    %164 = tpu.matmul %161, %163, %cst_118 {dimension_numbers = #tpu.dot_dimension_numbers<[1], [0], [0], [1], [0, 0, 1, 1], [], []>} : vector<256x4xf32>, vector<4x4xf32>, vector<256x4xf32> -> vector<256x4xf32>
    %165 = arith.addf %156, %164 : vector<256x4xf32>
    %c33_119 = arith.constant 33 : index
    %c0_120 = arith.constant 0 : index
    %166 = vector.load %arg8[%c33_119, %c0_120] : memref<296x4xf32, #tpu.memory_space<vmem>>, vector<256x4xf32>
    %c7_121 = arith.constant 7 : index
    %c0_122 = arith.constant 0 : index
    %c0_123 = arith.constant 0 : index
    %167 = vector.load %arg4[%c7_121, %c0_122, %c0_123] : memref<9x4x4xf32, #tpu.memory_space<vmem>>, vector<1x4x4xf32>
    %168 = vector.shape_cast %167 : vector<1x4x4xf32> to vector<4x4xf32>
    %cst_124 = arith.constant dense<0.000000e+00> : vector<256x4xf32>
    %169 = tpu.matmul %166, %168, %cst_124 {dimension_numbers = #tpu.dot_dimension_numbers<[1], [0], [0], [1], [0, 0, 1, 1], [], []>} : vector<256x4xf32>, vector<4x4xf32>, vector<256x4xf32> -> vector<256x4xf32>
    %170 = arith.addf %165, %169 : vector<256x4xf32>
    %c34_125 = arith.constant 34 : index
    %c0_126 = arith.constant 0 : index
    %171 = vector.load %arg8[%c34_125, %c0_126] : memref<296x4xf32, #tpu.memory_space<vmem>>, vector<256x4xf32>
    %cst_127 = arith.constant 0.000000e+00 : f32
    %172 = vector.shape_cast %29 : vector<256x1xi1> to vector<256x1xi1>
    %173 = vector.broadcast %172 : vector<256x1xi1> to vector<256x4xi1>
    %174 = vector.broadcast %cst_127 : f32 to vector<256x4xf32>
    %175 = arith.select %173, %171, %174 : vector<256x4xi1>, vector<256x4xf32>
    %c8_128 = arith.constant 8 : index
    %c0_129 = arith.constant 0 : index
    %c0_130 = arith.constant 0 : index
    %176 = vector.load %arg4[%c8_128, %c0_129, %c0_130] : memref<9x4x4xf32, #tpu.memory_space<vmem>>, vector<1x4x4xf32>
    %177 = vector.shape_cast %176 : vector<1x4x4xf32> to vector<4x4xf32>
    %cst_131 = arith.constant dense<0.000000e+00> : vector<256x4xf32>
    %178 = tpu.matmul %175, %177, %cst_131 {dimension_numbers = #tpu.dot_dimension_numbers<[1], [0], [0], [1], [0, 0, 1, 1], [], []>} : vector<256x4xf32>, vector<4x4xf32>, vector<256x4xf32> -> vector<256x4xf32>
    %179 = arith.addf %170, %178 : vector<256x4xf32>
    %cst_132 = arith.constant 0.000000e+00 : f32
    %180 = vector.broadcast %cst_132 : f32 to vector<256x4xf32>
    %181 = arith.maximumf %179, %180 : vector<256x4xf32>
    %c0_133 = arith.constant 0 : index
    %c0_134 = arith.constant 0 : index
    %c0_135 = arith.constant 0 : index
    %182 = vector.load %arg6[%c0_133, %c0_134, %c0_135] : memref<1x256x4xf32, #tpu.memory_space<vmem>>, vector<1x256x4xf32>
    %183 = vector.shape_cast %182 : vector<1x256x4xf32> to vector<256x4xf32>
    %184 = vector.shape_cast %181 : vector<256x4xf32> to vector<1x256x4xf32>
    tpu.vector_store %arg6[%c0_133, %c0_134, %c0_135], %184 {strides = array<i32>} : memref<1x256x4xf32, #tpu.memory_space<vmem>>, vector<1x256x4xf32>,
    return
  }
  func.func @transform_0(%arg0: i32) -> (i32, i32, i32) {
    %c0_i32 = arith.constant 0 : i32
    %c0_i32_0 = arith.constant 0 : i32
    %c0_i32_1 = arith.constant 0 : i32
    return %arg0, %c0_i32, %c0_i32_0 : i32, i32, i32
  }
  func.func @transform_1(%arg0: i32) -> (i32, i32, i32) {
    %c0_i32 = arith.constant 0 : i32
    %c0_i32_0 = arith.constant 0 : i32
    %c0_i32_1 = arith.constant 0 : i32
    %c0_i32_2 = arith.constant 0 : i32
    return %c0_i32, %c0_i32_0, %c0_i32_1 : i32, i32, i32
  }
  func.func @transform_2(%arg0: i32) -> (i32, i32) {
    %c0_i32 = arith.constant 0 : i32
    %c0_i32_0 = arith.constant 0 : i32
    %c0_i32_1 = arith.constant 0 : i32
    return %c0_i32, %c0_i32_0 : i32, i32
  }
  func.func @transform_3(%arg0: i32) -> (i32, i32, i32) {
    %c0_i32 = arith.constant 0 : i32
    %c0_i32_0 = arith.constant 0 : i32
    %c0_i32_1 = arith.constant 0 : i32
    %c0_i32_2 = arith.constant 0 : i32
    return %c0_i32, %c0_i32_0, %c0_i32_1 : i32, i32, i32
  }
  func.func @transform_4(%arg0: i32) -> (i32, i32) {
    %c0_i32 = arith.constant 0 : i32
    %c0_i32_0 = arith.constant 0 : i32
    %c0_i32_1 = arith.constant 0 : i32
    return %c0_i32, %c0_i32_0 : i32, i32
  }
  func.func @transform_5(%arg0: i32) -> (i32, i32, i32) {
    %c0_i32 = arith.constant 0 : i32
    %c0_i32_0 = arith.constant 0 : i32
    %c0_i32_1 = arith.constant 0 : i32
    return %arg0, %c0_i32, %c0_i32_0 : i32, i32, i32
  }
}

</mosaic_0001>

<llo_original>
// kernel: tpu_custom_call.1
$region0: #{tpu_custom_call.1}
  #allocation0 [shape = 'u32[]', space=smem, size = 0x4, offset = 0x4, fixed_abs, tag = 'smem constant byte address 0x4 - core index']
  #allocation1 [shape = 'u32[72,128]{1,0:T(1,128)}', space=vmem, size = 0x9000, scoped, tag = 'internal scratch']
  #allocation2 [shape = 'f32[296,4]{1,0:T(8,128)}', space=vmem, size = 0x25000, scoped, tag = 'scratch operand']
  #allocation3 [shape = 'f32[296,4]{1,0:T(8,128)}', space=vmem, size = 0x25000, scoped, tag = 'scratch operand']
  %s0 = inlined_call_operand.vmem [shape: f32[2,256,4], index: 0, kind: input, shape index: {}]
  %s1 = inlined_call_operand.vmem [shape: f32[9,4,4], index: 1, kind: input, shape index: {}]
  %s2 = inlined_call_operand.vmem [shape: f32[1,4], index: 2, kind: input, shape index: {}]
  %s3 = inlined_call_operand.vmem [shape: f32[9,4,4], index: 3, kind: input, shape index: {}]
  %s4 = inlined_call_operand.vmem [shape: f32[1,4], index: 4, kind: input, shape index: {}]
  %s5 = inlined_call_operand.vmem [shape: f32[2,256,4], index: 5, kind: output, shape index: {}]
  %s6 = sld [smem:[#allocation0]]
  $region53: #{tpu_custom_call.1} parent=0
    _
  %s8 = ssub.s32 1, %s6
  %s9 = scalar_select 0, %s8, %s6
  loop: start=0, step=1, limit=4
  $region2: #{tpu_custom_call.1} parent=0 // loop_pre_header
    _
  $region3: #{tpu_custom_call.1} parent=0 // loop_header
    %s11 = sphi 0, %s15
    %p12 = scmp.ge.s32.totalorder %s11, 4
    %s21 = sphi 0, %s23
    %s24 = sphi 0, %s21
    %s25 = sphi 0, %s24
    %s41 = sphi 0, %s25
    %s45 = sphi 0, %s45
    %s47 = sphi 0, %s45
    %s48 = sphi 0, %s47
    %s62 = sphi 0, %s48
    %s66 = sphi 0, %s66
    %s68 = sphi 0, %s66
    %s69 = sphi 0, %s68
    %s83 = sphi 0, %s69
    %s87 = sphi 0, %s87
    %s89 = sphi 0, %s87
    %s90 = sphi 0, %s89
    %s104 = sphi 0, %s90
    %s108 = sphi 0, %s108
    %s110 = sphi 0, %s108
    %s111 = sphi 0, %s110
    %s125 = sphi 0, %s111
    %s131 = sphi 0, %s133
    %s134 = sphi 0, %s131
    %s135 = sphi 0, %s134
    %s151 = sphi 0, %s135
  $region4: #{tpu_custom_call.1} parent=0 // loop_header_branch
    %14 = sbr.rel (%p12) target = $region8
  $region5: #{tpu_custom_call.1} parent=0 // loop_body
    %s16 = ssub.s32 %s11, 1
    %s17 = ssub.s32 %s11, 2
    %s18 = sadd.s32 %s11, 1
    %s19 = ssub.s32 %s11, %s18
    %p20 = scmp.eq.s32.totalorder %s19, 0
    %s22 = sadd.s32 %s21, 1
    %s23 = scalar_select %p20, %s21, %s22
    %p26 = pneg %p20
    %p27 = scmp.eq.s32.totalorder %s11, 1
    %p28 = por %p26, %p27
    %p29 = scmp.ne.s32.totalorder %s21, %s24
    %p30 = scmp.eq.s32.totalorder %s11, 0
    %p31 = por %p29, %p30
    %p32 = scmp.ne.s32.totalorder %s21, %s24
    %p33 = scmp.eq.s32.totalorder %s16, 1
    %p34 = por %p32, %p33
    %p35 = scmp.ne.s32.totalorder %s24, %s25
    %p36 = scmp.eq.s32.totalorder %s16, 0
    %p37 = por %p35, %p36
    %p38 = scmp.ne.s32.totalorder %s24, %s25
    %p39 = scmp.eq.s32.totalorder %s17, 1
    %p40 = por %p38, %p39
    %p42 = scmp.ne.s32.totalorder %s25, %s41
    %p43 = scmp.eq.s32.totalorder %s17, 0
    %p44 = por %p42, %p43
    %s46 = sadd.s32 %s45, 1
    %p49 = scmp.eq.s32.totalorder %s11, 1
    %p50 = scmp.ne.s32.totalorder %s45, %s47
    %p51 = scmp.eq.s32.totalorder %s11, 0
    %p52 = por %p50, %p51
    %p53 = scmp.ne.s32.totalorder %s45, %s47
    %p54 = scmp.eq.s32.totalorder %s16, 1
    %p55 = por %p53, %p54
    %p56 = scmp.ne.s32.totalorder %s47, %s48
    %p57 = scmp.eq.s32.totalorder %s16, 0
    %p58 = por %p56, %p57
    %p59 = scmp.ne.s32.totalorder %s47, %s48
    %p60 = scmp.eq.s32.totalorder %s17, 1
    %p61 = por %p59, %p60
    %p63 = scmp.ne.s32.totalorder %s48, %s62
    %p64 = scmp.eq.s32.totalorder %s17, 0
    %p65 = por %p63, %p64
    %s67 = sadd.s32 %s66, 1
    %p70 = scmp.eq.s32.totalorder %s11, 1
    %p71 = scmp.ne.s32.totalorder %s66, %s68
    %p72 = scmp.eq.s32.totalorder %s11, 0
    %p73 = por %p71, %p72
    %p74 = scmp.ne.s32.totalorder %s66, %s68
    %p75 = scmp.eq.s32.totalorder %s16, 1
    %p76 = por %p74, %p75
    %p77 = scmp.ne.s32.totalorder %s68, %s69
    %p78 = scmp.eq.s32.totalorder %s16, 0
    %p79 = por %p77, %p78
    %p80 = scmp.ne.s32.totalorder %s68, %s69
    %p81 = scmp.eq.s32.totalorder %s17, 1
    %p82 = por %p80, %p81
    %p84 = scmp.ne.s32.totalorder %s69, %s83
    %p85 = scmp.eq.s32.totalorder %s17, 0
    %p86 = por %p84, %p85
    %s88 = sadd.s32 %s87, 1
    %p91 = scmp.eq.s32.totalorder %s11, 1
    %p92 = scmp.ne.s32.totalorder %s87, %s89
    %p93 = scmp.eq.s32.totalorder %s11, 0
    %p94 = por %p92, %p93
    %p95 = scmp.ne.s32.totalorder %s87, %s89
    %p96 = scmp.eq.s32.totalorder %s16, 1
    %p97 = por %p95, %p96
    %p98 = scmp.ne.s32.totalorder %s89, %s90
    %p99 = scmp.eq.s32.totalorder %s16, 0
    %p100 = por %p98, %p99
    %p101 = scmp.ne.s32.totalorder %s89, %s90
    %p102 = scmp.eq.s32.totalorder %s17, 1
    %p103 = por %p101, %p102
    %p105 = scmp.ne.s32.totalorder %s90, %s104
    %p106 = scmp.eq.s32.totalorder %s17, 0
    %p107 = por %p105, %p106
    %s109 = sadd.s32 %s108, 1
    %p112 = scmp.eq.s32.totalorder %s11, 1
    %p113 = scmp.ne.s32.totalorder %s108, %s110
    %p114 = scmp.eq.s32.totalorder %s11, 0
    %p115 = por %p113, %p114
    %p116 = scmp.ne.s32.totalorder %s108, %s110
    %p117 = scmp.eq.s32.totalorder %s16, 1
    %p118 = por %p116, %p117
    %p119 = scmp.ne.s32.totalorder %s110, %s111
    %p120 = scmp.eq.s32.totalorder %s16, 0
    %p121 = por %p119, %p120
    %p122 = scmp.ne.s32.totalorder %s110, %s111
    %p123 = scmp.eq.s32.totalorder %s17, 1
    %p124 = por %p122, %p123
    %p126 = scmp.ne.s32.totalorder %s111, %s125
    %p127 = scmp.eq.s32.totalorder %s17, 0
    %p128 = por %p126, %p127
    %s129 = ssub.s32 %s11, %s18
    %p130 = scmp.eq.s32.totalorder %s129, 0
    %s132 = sadd.s32 %s131, 1
    %s133 = scalar_select %p130, %s131, %s132
    %p136 = pneg %p130
    %p137 = scmp.eq.s32.totalorder %s11, 1
    %p138 = por %p136, %p137
    %p139 = scmp.ne.s32.totalorder %s131, %s134
    %p140 = scmp.eq.s32.totalorder %s11, 0
    %p141 = por %p139, %p140
    %p142 = scmp.ne.s32.totalorder %s131, %s134
    %p143 = scmp.eq.s32.totalorder %s16, 1
    %p144 = por %p142, %p143
    %p145 = scmp.ne.s32.totalorder %s134, %s135
    %p146 = scmp.eq.s32.totalorder %s16, 0
    %p147 = por %p145, %p146
    %p148 = scmp.ne.s32.totalorder %s134, %s135
    %p149 = scmp.eq.s32.totalorder %s17, 1
    %p150 = por %p148, %p149
    %p152 = scmp.ne.s32.totalorder %s135, %s151
    %p153 = scmp.eq.s32.totalorder %s17, 0
    %p154 = por %p152, %p153
    %p155 = scmp.le.s32.totalorder 1, %s11
    %p156 = scmp.lt.s32.totalorder %s11, 3
    %p157 = pnand %p155, %p156
    %p158 = pneg %p157
    // Predicated region
    $region9: #{tpu_custom_call.1} parent=5 // pred_check
      _
    $region10: #{tpu_custom_call.1} parent=5 // pred_check_branch
      %160 = sbr.rel (%p157) target = $region12
    $region11: #{tpu_custom_call.1} parent=5 // pred_region
      %s161 = ssub.s32 %s11, 1
      // Predicated region
      $region13: #{tpu_custom_call.1} parent=11 // pred_check
        %p162 = pneg %p58
      $region14: #{tpu_custom_call.1} parent=11 // pred_check_branch
        %164 = sbr.rel (%p162) target = $region16
      $region15: #{tpu_custom_call.1} parent=11 // pred_region
        _
      $region16: #{tpu_custom_call.1} parent=11 // pred_fallthru
        _
      // Predicated region
      $region17: #{tpu_custom_call.1} parent=11 // pred_check
        %p165 = pneg %p79
      $region18: #{tpu_custom_call.1} parent=11 // pred_check_branch
        %167 = sbr.rel (%p165) target = $region20
      $region19: #{tpu_custom_call.1} parent=11 // pred_region
        _
      $region20: #{tpu_custom_call.1} parent=11 // pred_fallthru
        _
      // Predicated region
      $region21: #{tpu_custom_call.1} parent=11 // pred_check
        %p168 = pneg %p100
      $region22: #{tpu_custom_call.1} parent=11 // pred_check_branch
        %170 = sbr.rel (%p168) target = $region24
      $region23: #{tpu_custom_call.1} parent=11 // pred_region
        _
      $region24: #{tpu_custom_call.1} parent=11 // pred_fallthru
        _
      // Predicated region
      $region25: #{tpu_custom_call.1} parent=11 // pred_check
        %p171 = pneg %p121
      $region26: #{tpu_custom_call.1} parent=11 // pred_check_branch
        %173 = sbr.rel (%p171) target = $region28
      $region27: #{tpu_custom_call.1} parent=11 // pred_region
        _
      $region28: #{tpu_custom_call.1} parent=11 // pred_fallthru
        _
    $region12: #{tpu_custom_call.1} parent=5 // pred_fallthru
      _
    %p174 = scmp.lt.s32.totalorder %s11, 2
    // Predicated region
    $region29: #{tpu_custom_call.1} parent=5 // pred_check
      %p175 = pneg %p174
    $region30: #{tpu_custom_call.1} parent=5 // pred_check_branch
      %177 = sbr.rel (%p175) target = $region32
    $region31: #{tpu_custom_call.1} parent=5 // pred_region
      // Predicated region
      $region33: #{tpu_custom_call.1} parent=31 // pred_check
        %p178 = pneg %p31
      $region34: #{tpu_custom_call.1} parent=31 // pred_check_branch
        %180 = sbr.rel (%p178) target = $region36
      $region35: #{tpu_custom_call.1} parent=31 // pred_region
        %p181 = scmp.lt.s32.totalorder %s11, 1
        %s182 = scalar_select %p181, %s11, 1
        %s183 = smul.addr %s182, 32
        %s184 = smul.addr %s183, 8
        %s185 = scalar_lea.vmem %s0, %s184
      $region36: #{tpu_custom_call.1} parent=31 // pred_fallthru
        _
    $region32: #{tpu_custom_call.1} parent=5 // pred_fallthru
      _
    %p186 = scmp.le.s32.totalorder 1, %s11
    %p187 = scmp.lt.s32.totalorder %s11, 3
    %p188 = pnand %p186, %p187
    %p189 = pneg %p188
    // Predicated region
    $region37: #{tpu_custom_call.1} parent=5 // pred_check
      _
    $region38: #{tpu_custom_call.1} parent=5 // pred_check_branch
      %191 = sbr.rel (%p188) target = $region40
    $region39: #{tpu_custom_call.1} parent=5 // pred_region
      %s192 = ssub.s32 %s11, 1
      %p193 = scmp.lt.s32.totalorder %s16, 1
      %s194 = scalar_select %p193, %s16, 1
      %s195 = smul.addr %s194, 32
      %s196 = smul.addr %s195, 8
      %s197 = scalar_lea.vmem %s0, %s196
      %p198 = pneg %p37
      %p199 = pneg %p34
      %p200 = pneg %p58
      %p201 = pneg %p55
      %p202 = pneg %p79
      %p203 = pneg %p76
      %p204 = pneg %p100
      %p205 = pneg %p97
      %p206 = pneg %p121
      %p207 = pneg %p118
      %p208 = pneg %p147
      %p209 = pneg %p144
      %p210 = scmp.lt.s32.totalorder %s16, 1
      %s211 = scalar_select %p210, %s16, 1
      %s212 = smul.addr %s211, 32
      %s213 = smul.addr %s212, 8
      %s214 = scalar_lea.vmem %s5, %s213
      %p215 = scmp.lt.s32.totalorder %s16, 1
      %s216 = scalar_select %p215, %s16, 1
      %s217 = smul.addr %s216, 32
      %s218 = smul.addr %s217, 8
      %s219 = scalar_lea.vmem %s0, %s218
      %p220 = scmp.lt.s32.totalorder %s16, 1
      %s221 = scalar_select %p220, %s16, 1
      %s222 = smul.addr %s221, 32
      %s223 = smul.addr %s222, 8
      %s224 = scalar_lea.vmem %s5, %s223
      %vm225 = vcmask 31744
      %226 = vst.msk [vmem:[#allocation2] sm:$0xff] %vm225, 0.0
      %227 = vst.msk [vmem:[#allocation2 + $0x8] sm:$0xff] %vm225, 0.0
      %vm228 = vcmask 24576
      %229 = vst.msk [vmem:[#allocation2 + $0x10] sm:$0x1] %vm228, 0.0
      %230 = vst.msk [vmem:[#allocation2 + $0x111] sm:$0xff] %vm225, 0.0
      %231 = vst.msk [vmem:[#allocation2 + $0x119] sm:$0xff] %vm225, 0.0
      %vm232 = vcmask 30720
      %233 = vst.msk [vmem:[#allocation2 + $0x121] sm:$0x7f] %vm232, 0.0
      %234 = vst.msk [vmem:[#allocation3] sm:$0xff] %vm225, 0.0
      %235 = vst.msk [vmem:[#allocation3 + $0x8] sm:$0xff] %vm225, 0.0
      %236 = vst.msk [vmem:[#allocation3 + $0x10] sm:$0x1] %vm228, 0.0
      %237 = vst.msk [vmem:[#allocation3 + $0x111] sm:$0xff] %vm225, 0.0
      %238 = vst.msk [vmem:[#allocation3 + $0x119] sm:$0xff] %vm225, 0.0
      %239 = vst.msk [vmem:[#allocation3 + $0x121] sm:$0x7f] %vm232, 0.0
      %v240 = vld [vmem:[%s219] sm:$0xff]
      %v241 = vld [vmem:[%s219 + $0x8] sm:$0xff]
      %v242 = vld [vmem:[%s219 + $0x10] sm:$0xff]
      %v243 = vld [vmem:[%s219 + $0x18] sm:$0xff]
      %v244 = vld [vmem:[%s219 + $0x20] sm:$0xff]
      %v245 = vld [vmem:[%s219 + $0x28] sm:$0xff]
      %v246 = vld [vmem:[%s219 + $0x30] sm:$0xff]
      %v247 = vld [vmem:[%s219 + $0x38] sm:$0xff]
      %v248 = vld [vmem:[%s219 + $0x40] sm:$0xff]
      %v249 = vld [vmem:[%s219 + $0x48] sm:$0xff]
      %v250 = vld [vmem:[%s219 + $0x50] sm:$0xff]
      %v251 = vld [vmem:[%s219 + $0x58] sm:$0xff]
      %v252 = vld [vmem:[%s219 + $0x60] sm:$0xff]
      %v253 = vld [vmem:[%s219 + $0x68] sm:$0xff]
      %v254 = vld [vmem:[%s219 + $0x70] sm:$0xff]
      %v255 = vld [vmem:[%s219 + $0x78] sm:$0xff]
      %v256 = vld [vmem:[%s219 + $0x80] sm:$0xff]
      %v257 = vld [vmem:[%s219 + $0x88] sm:$0xff]
      %v258 = vld [vmem:[%s219 + $0x90] sm:$0xff]
      %v259 = vld [vmem:[%s219 + $0x98] sm:$0xff]
      %v260 = vld [vmem:[%s219 + $0xa0] sm:$0xff]
      %v261 = vld [vmem:[%s219 + $0xa8] sm:$0xff]
      %v262 = vld [vmem:[%s219 + $0xb0] sm:$0xff]
      %v263 = vld [vmem:[%s219 + $0xb8] sm:$0xff]
      %v264 = vld [vmem:[%s219 + $0xc0] sm:$0xff]
      %v265 = vld [vmem:[%s219 + $0xc8] sm:$0xff]
      %v266 = vld [vmem:[%s219 + $0xd0] sm:$0xff]
      %v267 = vld [vmem:[%s219 + $0xd8] sm:$0xff]
      %v268 = vld [vmem:[%s219 + $0xe0] sm:$0xff]
      %v269 = vld [vmem:[%s219 + $0xe8] sm:$0xff]
      %v270 = vld [vmem:[%s219 + $0xf0] sm:$0xff]
      %v271 = vld [vmem:[%s219 + $0xf8] sm:$0xff]
      %272 = vst.msk [vmem:[#allocation2 + $0x11] sm:$0xff] %vm225, %v240
      %273 = vst.msk [vmem:[#allocation2 + $0x19] sm:$0xff] %vm225, %v241
      %274 = vst.msk [vmem:[#allocation2 + $0x21] sm:$0xff] %vm225, %v242
      %275 = vst.msk [vmem:[#allocation2 + $0x29] sm:$0xff] %vm225, %v243
      %276 = vst.msk [vmem:[#allocation2 + $0x31] sm:$0xff] %vm225, %v244
      %277 = vst.msk [vmem:[#allocation2 + $0x39] sm:$0xff] %vm225, %v245
      %278 = vst.msk [vmem:[#allocation2 + $0x41] sm:$0xff] %vm225, %v246
      %279 = vst.msk [vmem:[#allocation2 + $0x49] sm:$0xff] %vm225, %v247
      %280 = vst.msk [vmem:[#allocation2 + $0x51] sm:$0xff] %vm225, %v248
      %281 = vst.msk [vmem:[#allocation2 + $0x59] sm:$0xff] %vm225, %v249
      %282 = vst.msk [vmem:[#allocation2 + $0x61] sm:$0xff] %vm225, %v250
      %283 = vst.msk [vmem:[#allocation2 + $0x69] sm:$0xff] %vm225, %v251
      %284 = vst.msk [vmem:[#allocation2 + $0x71] sm:$0xff] %vm225, %v252
      %285 = vst.msk [vmem:[#allocation2 + $0x79] sm:$0xff] %vm225, %v253
      %286 = vst.msk [vmem:[#allocation2 + $0x81] sm:$0xff] %vm225, %v254
      %287 = vst.msk [vmem:[#allocation2 + $0x89] sm:$0xff] %vm225, %v255
      %288 = vst.msk [vmem:[#allocation2 + $0x91] sm:$0xff] %vm225, %v256
      %289 = vst.msk [vmem:[#allocation2 + $0x99] sm:$0xff] %vm225, %v257
      %290 = vst.msk [vmem:[#allocation2 + $0xa1] sm:$0xff] %vm225, %v258
      %291 = vst.msk [vmem:[#allocation2 + $0xa9] sm:$0xff] %vm225, %v259
      %292 = vst.msk [vmem:[#allocation2 + $0xb1] sm:$0xff] %vm225, %v260
      %293 = vst.msk [vmem:[#allocation2 + $0xb9] sm:$0xff] %vm225, %v261
      %294 = vst.msk [vmem:[#allocation2 + $0xc1] sm:$0xff] %vm225, %v262
      %295 = vst.msk [vmem:[#allocation2 + $0xc9] sm:$0xff] %vm225, %v263
      %296 = vst.msk [vmem:[#allocation2 + $0xd1] sm:$0xff] %vm225, %v264
      %297 = vst.msk [vmem:[#allocation2 + $0xd9] sm:$0xff] %vm225, %v265
      %298 = vst.msk [vmem:[#allocation2 + $0xe1] sm:$0xff] %vm225, %v266
      %299 = vst.msk [vmem:[#allocation2 + $0xe9] sm:$0xff] %vm225, %v267
      %300 = vst.msk [vmem:[#allocation2 + $0xf1] sm:$0xff] %vm225, %v268
      %301 = vst.msk [vmem:[#allocation2 + $0xf9] sm:$0xff] %vm225, %v269
      %302 = vst.msk [vmem:[#allocation2 + $0x101] sm:$0xff] %vm225, %v270
      %303 = vst.msk [vmem:[#allocation2 + $0x109] sm:$0xff] %vm225, %v271
      %v304 = vlaneseq
      %v305 = vshrl.u32 %v304, 7
      %v306 = vadd.s32 %v305, 8
      %v307 = vadd.s32 %v305, 16
      %v308 = vadd.s32 %v305, 24
      %v309 = vadd.s32 %v305, 32
      %v310 = vadd.s32 %v305, 40
      %v311 = vadd.s32 %v305, 48
      %v312 = vadd.s32 %v305, 56
      %v313 = vadd.s32 %v305, 64
      %v314 = vadd.s32 %v305, 72
      %v315 = vadd.s32 %v305, 80
      %v316 = vadd.s32 %v305, 88
      %v317 = vadd.s32 %v305, 96
      %v318 = vadd.s32 %v305, 104
      %v319 = vadd.s32 %v305, 112
      %v320 = vadd.s32 %v305, 120
      %v321 = vadd.s32 %v305, 128
      %v322 = vadd.s32 %v305, 136
      %v323 = vadd.s32 %v305, 144
      %v324 = vadd.s32 %v305, 152
      %v325 = vadd.s32 %v305, 160
      %v326 = vadd.s32 %v305, 168
      %v327 = vadd.s32 %v305, 176
      %v328 = vadd.s32 %v305, 184
      %v329 = vadd.s32 %v305, 192
      %v330 = vadd.s32 %v305, 200
      %v331 = vadd.s32 %v305, 208
      %v332 = vadd.s32 %v305, 216
      %v333 = vadd.s32 %v305, 224
      %v334 = vadd.s32 %v305, 232
      %v335 = vadd.s32 %v305, 240
      %v336 = vadd.s32 %v305, 248
      %vm337 = vcmp.lt.s32.totalorder %v305, 0
      %v338 = vsub.s32 0, %v305
      %v339 = vsel %vm337, %v338, %v305
      %v340 = vshrl.u32 %v339, 4
      %v341 = vand.u32 %v339, 15
      %v342 = vsub.s32 0, %v341
      %v343 = vsel %vm337, %v342, %v341
      %vm344 = vcmp.lt.s32.totalorder %v306, 0
      %v345 = vsub.s32 0, %v306
      %v346 = vsel %vm344, %v345, %v306
      %v347 = vshrl.u32 %v346, 4
      %v348 = vand.u32 %v346, 15
      %v349 = vsub.s32 0, %v348
      %v350 = vsel %vm344, %v349, %v348
      %vm351 = vcmp.lt.s32.totalorder %v307, 0
      %v352 = vsub.s32 0, %v307
      %v353 = vsel %vm351, %v352, %v307
      %v354 = vshrl.u32 %v353, 4
      %v355 = vand.u32 %v353, 15
      %v356 = vsub.s32 0, %v355
      %v357 = vsel %vm351, %v356, %v355
      %vm358 = vcmp.lt.s32.totalorder %v308, 0
      %v359 = vsub.s32 0, %v308
      %v360 = vsel %vm358, %v359, %v308
      %v361 = vshrl.u32 %v360, 4
      %v362 = vand.u32 %v360, 15
      %v363 = vsub.s32 0, %v362
      %v364 = vsel %vm358, %v363, %v362
      %vm365 = vcmp.lt.s32.totalorder %v309, 0
      %v366 = vsub.s32 0, %v309
      %v367 = vsel %vm365, %v366, %v309
      %v368 = vshrl.u32 %v367, 4
      %v369 = vand.u32 %v367, 15
      %v370 = vsub.s32 0, %v369
      %v371 = vsel %vm365, %v370, %v369
      %vm372 = vcmp.lt.s32.totalorder %v310, 0
      %v373 = vsub.s32 0, %v310
      %v374 = vsel %vm372, %v373, %v310
      %v375 = vshrl.u32 %v374, 4
      %v376 = vand.u32 %v374, 15
      %v377 = vsub.s32 0, %v376
      %v378 = vsel %vm372, %v377, %v376
      %vm379 = vcmp.lt.s32.totalorder %v311, 0
      %v380 = vsub.s32 0, %v311
      %v381 = vsel %vm379, %v380, %v311
      %v382 = vshrl.u32 %v381, 4
      %v383 = vand.u32 %v381, 15
      %v384 = vsub.s32 0, %v383
      %v385 = vsel %vm379, %v384, %v383
      %vm386 = vcmp.lt.s32.totalorder %v312, 0
      %v387 = vsub.s32 0, %v312
      %v388 = vsel %vm386, %v387, %v312
      %v389 = vshrl.u32 %v388, 4
      %v390 = vand.u32 %v388, 15
      %v391 = vsub.s32 0, %v390
      %v392 = vsel %vm386, %v391, %v390
      %vm393 = vcmp.lt.s32.totalorder %v313, 0
      %v394 = vsub.s32 0, %v313
      %v395 = vsel %vm393, %v394, %v313
      %v396 = vshrl.u32 %v395, 4
      %v397 = vand.u32 %v395, 15
      %v398 = vsub.s32 0, %v397
      %v399 = vsel %vm393, %v398, %v397
      %vm400 = vcmp.lt.s32.totalorder %v314, 0
      %v401 = vsub.s32 0, %v314
      %v402 = vsel %vm400, %v401, %v314
      %v403 = vshrl.u32 %v402, 4
      %v404 = vand.u32 %v402, 15
      %v405 = vsub.s32 0, %v404
      %v406 = vsel %vm400, %v405, %v404
      %vm407 = vcmp.lt.s32.totalorder %v315, 0
      %v408 = vsub.s32 0, %v315
      %v409 = vsel %vm407, %v408, %v315
      %v410 = vshrl.u32 %v409, 4
      %v411 = vand.u32 %v409, 15
      %v412 = vsub.s32 0, %v411
      %v413 = vsel %vm407, %v412, %v411
      %vm414 = vcmp.lt.s32.totalorder %v316, 0
      %v415 = vsub.s32 0, %v316
      %v416 = vsel %vm414, %v415, %v316
      %v417 = vshrl.u32 %v416, 4
      %v418 = vand.u32 %v416, 15
      %v419 = vsub.s32 0, %v418
      %v420 = vsel %vm414, %v419, %v418
      %vm421 = vcmp.lt.s32.totalorder %v317, 0
      %v422 = vsub.s32 0, %v317
      %v423 = vsel %vm421, %v422, %v317
      %v424 = vshrl.u32 %v423, 4
      %v425 = vand.u32 %v423, 15
      %v426 = vsub.s32 0, %v425
      %v427 = vsel %vm421, %v426, %v425
      %vm428 = vcmp.lt.s32.totalorder %v318, 0
      %v429 = vsub.s32 0, %v318
      %v430 = vsel %vm428, %v429, %v318
      %v431 = vshrl.u32 %v430, 4
      %v432 = vand.u32 %v430, 15
      %v433 = vsub.s32 0, %v432
      %v434 = vsel %vm428, %v433, %v432
      %vm435 = vcmp.lt.s32.totalorder %v319, 0
      %v436 = vsub.s32 0, %v319
      %v437 = vsel %vm435, %v436, %v319
      %v438 = vshrl.u32 %v437, 4
      %v439 = vand.u32 %v437, 15
      %v440 = vsub.s32 0, %v439
      %v441 = vsel %vm435, %v440, %v439
      %vm442 = vcmp.lt.s32.totalorder %v320, 0
      %v443 = vsub.s32 0, %v320
      %v444 = vsel %vm442, %v443, %v320
      %v445 = vshrl.u32 %v444, 4
      %v446 = vand.u32 %v444, 15
      %v447 = vsub.s32 0, %v446
      %v448 = vsel %vm442, %v447, %v446
      %vm449 = vcmp.lt.s32.totalorder %v321, 0
      %v450 = vsub.s32 0, %v321
      %v451 = vsel %vm449, %v450, %v321
      %v452 = vshrl.u32 %v451, 4
      %v453 = vand.u32 %v451, 15
      %v454 = vsub.s32 0, %v453
      %v455 = vsel %vm449, %v454, %v453
      %vm456 = vcmp.lt.s32.totalorder %v322, 0
      %v457 = vsub.s32 0, %v322
      %v458 = vsel %vm456, %v457, %v322
      %v459 = vshrl.u32 %v458, 4
      %v460 = vand.u32 %v458, 15
      %v461 = vsub.s32 0, %v460
      %v462 = vsel %vm456, %v461, %v460
      %vm463 = vcmp.lt.s32.totalorder %v323, 0
      %v464 = vsub.s32 0, %v323
      %v465 = vsel %vm463, %v464, %v323
      %v466 = vshrl.u32 %v465, 4
      %v467 = vand.u32 %v465, 15
      %v468 = vsub.s32 0, %v467
      %v469 = vsel %vm463, %v468, %v467
      %vm470 = vcmp.lt.s32.totalorder %v324, 0
      %v471 = vsub.s32 0, %v324
      %v472 = vsel %vm470, %v471, %v324
      %v473 = vshrl.u32 %v472, 4
      %v474 = vand.u32 %v472, 15
      %v475 = vsub.s32 0, %v474
      %v476 = vsel %vm470, %v475, %v474
      %vm477 = vcmp.lt.s32.totalorder %v325, 0
      %v478 = vsub.s32 0, %v325
      %v479 = vsel %vm477, %v478, %v325
      %v480 = vshrl.u32 %v479, 4
      %v481 = vand.u32 %v479, 15
      %v482 = vsub.s32 0, %v481
      %v483 = vsel %vm477, %v482, %v481
      %vm484 = vcmp.lt.s32.totalorder %v326, 0
      %v485 = vsub.s32 0, %v326
      %v486 = vsel %vm484, %v485, %v326
      %v487 = vshrl.u32 %v486, 4
      %v488 = vand.u32 %v486, 15
      %v489 = vsub.s32 0, %v488
      %v490 = vsel %vm484, %v489, %v488
      %vm491 = vcmp.lt.s32.totalorder %v327, 0
      %v492 = vsub.s32 0, %v327
      %v493 = vsel %vm491, %v492, %v327
      %v494 = vshrl.u32 %v493, 4
      %v495 = vand.u32 %v493, 15
      %v496 = vsub.s32 0, %v495
      %v497 = vsel %vm491, %v496, %v495
      %vm498 = vcmp.lt.s32.totalorder %v328, 0
      %v499 = vsub.s32 0, %v328
      %v500 = vsel %vm498, %v499, %v328
      %v501 = vshrl.u32 %v500, 4
      %v502 = vand.u32 %v500, 15
      %v503 = vsub.s32 0, %v502
      %v504 = vsel %vm498, %v503, %v502
      %vm505 = vcmp.lt.s32.totalorder %v329, 0
      %v506 = vsub.s32 0, %v329
      %v507 = vsel %vm505, %v506, %v329
      %v508 = vshrl.u32 %v507, 4
      %v509 = vand.u32 %v507, 15
      %v510 = vsub.s32 0, %v509
      %v511 = vsel %vm505, %v510, %v509
      %vm512 = vcmp.lt.s32.totalorder %v330, 0
      %v513 = vsub.s32 0, %v330
      %v514 = vsel %vm512, %v513, %v330
      %v515 = vshrl.u32 %v514, 4
      %v516 = vand.u32 %v514, 15
      %v517 = vsub.s32 0, %v516
      %v518 = vsel %vm512, %v517, %v516
      %vm519 = vcmp.lt.s32.totalorder %v331, 0
      %v520 = vsub.s32 0, %v331
      %v521 = vsel %vm519, %v520, %v331
      %v522 = vshrl.u32 %v521, 4
      %v523 = vand.u32 %v521, 15
      %v524 = vsub.s32 0, %v523
      %v525 = vsel %vm519, %v524, %v523
      %vm526 = vcmp.lt.s32.totalorder %v332, 0
      %v527 = vsub.s32 0, %v332
      %v528 = vsel %vm526, %v527, %v332
      %v529 = vshrl.u32 %v528, 4
      %v530 = vand.u32 %v528, 15
      %v531 = vsub.s32 0, %v530
      %v532 = vsel %vm526, %v531, %v530
      %vm533 = vcmp.lt.s32.totalorder %v333, 0
      %v534 = vsub.s32 0, %v333
      %v535 = vsel %vm533, %v534, %v333
      %v536 = vshrl.u32 %v535, 4
      %v537 = vand.u32 %v535, 15
      %v538 = vsub.s32 0, %v537
      %v539 = vsel %vm533, %v538, %v537
      %vm540 = vcmp.lt.s32.totalorder %v334, 0
      %v541 = vsub.s32 0, %v334
      %v542 = vsel %vm540, %v541, %v334
      %v543 = vshrl.u32 %v542, 4
      %v544 = vand.u32 %v542, 15
      %v545 = vsub.s32 0, %v544
      %v546 = vsel %vm540, %v545, %v544
      %vm547 = vcmp.lt.s32.totalorder %v335, 0
      %v548 = vsub.s32 0, %v335
      %v549 = vsel %vm547, %v548, %v335
      %v550 = vshrl.u32 %v549, 4
      %v551 = vand.u32 %v549, 15
      %v552 = vsub.s32 0, %v551
      %v553 = vsel %vm547, %v552, %v551
      %vm554 = vcmp.lt.s32.totalorder %v336, 0
      %v555 = vsub.s32 0, %v336
      %v556 = vsel %vm554, %v555, %v336
      %v557 = vshrl.u32 %v556, 4
      %v558 = vand.u32 %v556, 15
      %v559 = vsub.s32 0, %v558
      %v560 = vsel %vm554, %v559, %v558
      %vm561 = vcmp.ne.s32.totalorder %v343, 0
      %vm562 = vcmp.ne.s32.totalorder %v350, 0
      %vm563 = vcmp.ne.s32.totalorder %v357, 0
      %vm564 = vcmp.ne.s32.totalorder %v364, 0
      %vm565 = vcmp.ne.s32.totalorder %v371, 0
      %vm566 = vcmp.ne.s32.totalorder %v378, 0
      %vm567 = vcmp.ne.s32.totalorder %v385, 0
      %vm568 = vcmp.ne.s32.totalorder %v392, 0
      %vm569 = vcmp.ne.s32.totalorder %v399, 0
      %vm570 = vcmp.ne.s32.totalorder %v406, 0
      %vm571 = vcmp.ne.s32.totalorder %v413, 0
      %vm572 = vcmp.ne.s32.totalorder %v420, 0
      %vm573 = vcmp.ne.s32.totalorder %v427, 0
      %vm574 = vcmp.ne.s32.totalorder %v434, 0
      %vm575 = vcmp.ne.s32.totalorder %v441, 0
      %vm576 = vcmp.ne.s32.totalorder %v448, 0
      %vm577 = vcmp.ne.s32.totalorder %v455, 0
      %vm578 = vcmp.ne.s32.totalorder %v462, 0
      %vm579 = vcmp.ne.s32.totalorder %v469, 0
      %vm580 = vcmp.ne.s32.totalorder %v476, 0
      %vm581 = vcmp.ne.s32.totalorder %v483, 0
      %vm582 = vcmp.ne.s32.totalorder %v490, 0
      %vm583 = vcmp.ne.s32.totalorder %v497, 0
      %vm584 = vcmp.ne.s32.totalorder %v504, 0
      %vm585 = vcmp.ne.s32.totalorder %v511, 0
      %vm586 = vcmp.ne.s32.totalorder %v518, 0
      %vm587 = vcmp.ne.s32.totalorder %v525, 0
      %vm588 = vcmp.ne.s32.totalorder %v532, 0
      %vm589 = vcmp.ne.s32.totalorder %v539, 0
      %vm590 = vcmp.ne.s32.totalorder %v546, 0
      %vm591 = vcmp.ne.s32.totalorder %v553, 0
      %vm592 = vcmp.ne.s32.totalorder %v560, 0
      %vm593 = vcmp.lt.s32.totalorder %v343, 0
      %vm594 = vcmp.lt.s32.totalorder %v350, 0
      %vm595 = vcmp.lt.s32.totalorder %v357, 0
      %vm596 = vcmp.lt.s32.totalorder %v364, 0
      %vm597 = vcmp.lt.s32.totalorder %v371, 0
      %vm598 = vcmp.lt.s32.totalorder %v378, 0
      %vm599 = vcmp.lt.s32.totalorder %v385, 0
      %vm600 = vcmp.lt.s32.totalorder %v392, 0
      %vm601 = vcmp.lt.s32.totalorder %v399, 0
      %vm602 = vcmp.lt.s32.totalorder %v406, 0
      %vm603 = vcmp.lt.s32.totalorder %v413, 0
      %vm604 = vcmp.lt.s32.totalorder %v420, 0
      %vm605 = vcmp.lt.s32.totalorder %v427, 0
      %vm606 = vcmp.lt.s32.totalorder %v434, 0
      %vm607 = vcmp.lt.s32.totalorder %v441, 0
      %vm608 = vcmp.lt.s32.totalorder %v448, 0
      %vm609 = vcmp.lt.s32.totalorder %v455, 0
      %vm610 = vcmp.lt.s32.totalorder %v462, 0
      %vm611 = vcmp.lt.s32.totalorder %v469, 0
      %vm612 = vcmp.lt.s32.totalorder %v476, 0
      %vm613 = vcmp.lt.s32.totalorder %v483, 0
      %vm614 = vcmp.lt.s32.totalorder %v490, 0
      %vm615 = vcmp.lt.s32.totalorder %v497, 0
      %vm616 = vcmp.lt.s32.totalorder %v504, 0
      %vm617 = vcmp.lt.s32.totalorder %v511, 0
      %vm618 = vcmp.lt.s32.totalorder %v518, 0
      %vm619 = vcmp.lt.s32.totalorder %v525, 0
      %vm620 = vcmp.lt.s32.totalorder %v532, 0
      %vm621 = vcmp.lt.s32.totalorder %v539, 0
      %vm622 = vcmp.lt.s32.totalorder %v546, 0
      %vm623 = vcmp.lt.s32.totalorder %v553, 0
      %vm624 = vcmp.lt.s32.totalorder %v560, 0
      %vm625 = vmand %vm593, %vm561
      %vm626 = vmand %vm594, %vm562
      %vm627 = vmand %vm595, %vm563
      %vm628 = vmand %vm596, %vm564
      %vm629 = vmand %vm597, %vm565
      %vm630 = vmand %vm598, %vm566
      %vm631 = vmand %vm599, %vm567
      %vm632 = vmand %vm600, %vm568
      %vm633 = vmand %vm601, %vm569
      %vm634 = vmand %vm602, %vm570
      %vm635 = vmand %vm603, %vm571
      %vm636 = vmand %vm604, %vm572
      %vm637 = vmand %vm605, %vm573
      %vm638 = vmand %vm606, %vm574
      %vm639 = vmand %vm607, %vm575
      %vm640 = vmand %vm608, %vm576
      %vm641 = vmand %vm609, %vm577
      %vm642 = vmand %vm610, %vm578
      %vm643 = vmand %vm611, %vm579
      %vm644 = vmand %vm612, %vm580
      %vm645 = vmand %vm613, %vm581
      %vm646 = vmand %vm614, %vm582
      %vm647 = vmand %vm615, %vm583
      %vm648 = vmand %vm616, %vm584
      %vm649 = vmand %vm617, %vm585
      %vm650 = vmand %vm618, %vm586
      %vm651 = vmand %vm619, %vm587
      %vm652 = vmand %vm620, %vm588
      %vm653 = vmand %vm621, %vm589
      %vm654 = vmand %vm622, %vm590
      %vm655 = vmand %vm623, %vm591
      %vm656 = vmand %vm624, %vm592
      %v657 = vadd.s32 %v343, 16
      %v658 = vadd.s32 %v350, 16
      %v659 = vadd.s32 %v357, 16
      %v660 = vadd.s32 %v364, 16
      %v661 = vadd.s32 %v371, 16
      %v662 = vadd.s32 %v378, 16
      %v663 = vadd.s32 %v385, 16
      %v664 = vadd.s32 %v392, 16
      %v665 = vadd.s32 %v399, 16
      %v666 = vadd.s32 %v406, 16
      %v667 = vadd.s32 %v413, 16
      %v668 = vadd.s32 %v420, 16
      %v669 = vadd.s32 %v427, 16
      %v670 = vadd.s32 %v434, 16
      %v671 = vadd.s32 %v441, 16
      %v672 = vadd.s32 %v448, 16
      %v673 = vadd.s32 %v455, 16
      %v674 = vadd.s32 %v462, 16
      %v675 = vadd.s32 %v469, 16
      %v676 = vadd.s32 %v476, 16
      %v677 = vadd.s32 %v483, 16
      %v678 = vadd.s32 %v490, 16
      %v679 = vadd.s32 %v497, 16
      %v680 = vadd.s32 %v504, 16
      %v681 = vadd.s32 %v511, 16
      %v682 = vadd.s32 %v518, 16
      %v683 = vadd.s32 %v525, 16
      %v684 = vadd.s32 %v532, 16
      %v685 = vadd.s32 %v539, 16
      %v686 = vadd.s32 %v546, 16
      %v687 = vadd.s32 %v553, 16
      %v688 = vadd.s32 %v560, 16
      %v689 = vsel %vm625, %v657, %v343
      %v690 = vsel %vm626, %v658, %v350
      %v691 = vsel %vm627, %v659, %v357
      %v692 = vsel %vm628, %v660, %v364
      %v693 = vsel %vm629, %v661, %v371
      %v694 = vsel %vm630, %v662, %v378
      %v695 = vsel %vm631, %v663, %v385
      %v696 = vsel %vm632, %v664, %v392
      %v697 = vsel %vm633, %v665, %v399
      %v698 = vsel %vm634, %v666, %v406
      %v699 = vsel %vm635, %v667, %v413
      %v700 = vsel %vm636, %v668, %v420
      %v701 = vsel %vm637, %v669, %v427
      %v702 = vsel %vm638, %v670, %v434
      %v703 = vsel %vm639, %v671, %v441
      %v704 = vsel %vm640, %v672, %v448
      %v705 = vsel %vm641, %v673, %v455
      %v706 = vsel %vm642, %v674, %v462
      %v707 = vsel %vm643, %v675, %v469
      %v708 = vsel %vm644, %v676, %v476
      %v709 = vsel %vm645, %v677, %v483
      %v710 = vsel %vm646, %v678, %v490
      %v711 = vsel %vm647, %v679, %v497
      %v712 = vsel %vm648, %v680, %v504
      %v713 = vsel %vm649, %v681, %v511
      %v714 = vsel %vm650, %v682, %v518
      %v715 = vsel %vm651, %v683, %v525
      %v716 = vsel %vm652, %v684, %v532
      %v717 = vsel %vm653, %v685, %v539
      %v718 = vsel %vm654, %v686, %v546
      %v719 = vsel %vm655, %v687, %v553
      %v720 = vsel %vm656, %v688, %v560
      %vm721 = vcmp.gt.s32.totalorder %v689, 0
      %vm722 = vcmp.gt.s32.totalorder %v690, 0
      %vm723 = vcmp.gt.s32.totalorder %v691, 0
      %vm724 = vcmp.gt.s32.totalorder %v692, 0
      %vm725 = vcmp.gt.s32.totalorder %v693, 0
      %vm726 = vcmp.gt.s32.totalorder %v694, 0
      %vm727 = vcmp.gt.s32.totalorder %v695, 0
      %vm728 = vcmp.gt.s32.totalorder %v696, 0
      %vm729 = vcmp.gt.s32.totalorder %v697, 0
      %vm730 = vcmp.gt.s32.totalorder %v698, 0
      %vm731 = vcmp.gt.s32.totalorder %v699, 0
      %vm732 = vcmp.gt.s32.totalorder %v700, 0
      %vm733 = vcmp.gt.s32.totalorder %v701, 0
      %vm734 = vcmp.gt.s32.totalorder %v702, 0
      %vm735 = vcmp.gt.s32.totalorder %v703, 0
      %vm736 = vcmp.gt.s32.totalorder %v704, 0
      %vm737 = vcmp.gt.s32.totalorder %v705, 0
      %vm738 = vcmp.gt.s32.totalorder %v706, 0
      %vm739 = vcmp.gt.s32.totalorder %v707, 0
      %vm740 = vcmp.gt.s32.totalorder %v708, 0
      %vm741 = vcmp.gt.s32.totalorder %v709, 0
      %vm742 = vcmp.gt.s32.totalorder %v710, 0
      %vm743 = vcmp.gt.s32.totalorder %v711, 0
      %vm744 = vcmp.gt.s32.totalorder %v712, 0
      %vm745 = vcmp.gt.s32.totalorder %v713, 0
      %vm746 = vcmp.gt.s32.totalorder %v714, 0
      %vm747 = vcmp.gt.s32.totalorder %v715, 0
      %vm748 = vcmp.gt.s32.totalorder %v716, 0
      %vm749 = vcmp.gt.s32.totalorder %v717, 0
      %vm750 = vcmp.gt.s32.totalorder %v718, 0
      %vm751 = vcmp.gt.s32.totalorder %v719, 0
      %vm752 = vcmp.gt.s32.totalorder %v720, 0
      %vm753 = vcmp.lt.s32.totalorder %v689, 15
      %vm754 = vcmp.lt.s32.totalorder %v690, 15
      %vm755 = vcmp.lt.s32.totalorder %v691, 15
      %vm756 = vcmp.lt.s32.totalorder %v692, 15
      %vm757 = vcmp.lt.s32.totalorder %v693, 15
      %vm758 = vcmp.lt.s32.totalorder %v694, 15
      %vm759 = vcmp.lt.s32.totalorder %v695, 15
      %vm760 = vcmp.lt.s32.totalorder %v696, 15
      %vm761 = vcmp.lt.s32.totalorder %v697, 15
      %vm762 = vcmp.lt.s32.totalorder %v698, 15
      %vm763 = vcmp.lt.s32.totalorder %v699, 15
      %vm764 = vcmp.lt.s32.totalorder %v700, 15
      %vm765 = vcmp.lt.s32.totalorder %v701, 15
      %vm766 = vcmp.lt.s32.totalorder %v702, 15
      %vm767 = vcmp.lt.s32.totalorder %v703, 15
      %vm768 = vcmp.lt.s32.totalorder %v704, 15
      %vm769 = vcmp.lt.s32.totalorder %v705, 15
      %vm770 = vcmp.lt.s32.totalorder %v706, 15
      %vm771 = vcmp.lt.s32.totalorder %v707, 15
      %vm772 = vcmp.lt.s32.totalorder %v708, 15
      %vm773 = vcmp.lt.s32.totalorder %v709, 15
      %vm774 = vcmp.lt.s32.totalorder %v710, 15
      %vm775 = vcmp.lt.s32.totalorder %v711, 15
      %vm776 = vcmp.lt.s32.totalorder %v712, 15
      %vm777 = vcmp.lt.s32.totalorder %v713, 15
      %vm778 = vcmp.lt.s32.totalorder %v714, 15
      %vm779 = vcmp.lt.s32.totalorder %v715, 15
      %vm780 = vcmp.lt.s32.totalorder %v716, 15
      %vm781 = vcmp.lt.s32.totalorder %v717, 15
      %vm782 = vcmp.lt.s32.totalorder %v718, 15
      %vm783 = vcmp.lt.s32.totalorder %v719, 15
      %vm784 = vcmp.lt.s32.totalorder %v720, 15
      %v785 = vld [vmem:[%s2] sm:$0x1]
      %v787 = vperm.slane %v785, 0
      %v789 = vld [vmem:[#allocation2] sm:$0xff]
      %v790 = vld [vmem:[#allocation2 + $0x8] sm:$0xff]
      %v791 = vld [vmem:[#allocation2 + $0x10] sm:$0xff]
      %v792 = vld [vmem:[#allocation2 + $0x18] sm:$0xff]
      %v793 = vld [vmem:[#allocation2 + $0x20] sm:$0xff]
      %v794 = vld [vmem:[#allocation2 + $0x28] sm:$0xff]
      %v795 = vld [vmem:[#allocation2 + $0x30] sm:$0xff]
      %v796 = vld [vmem:[#allocation2 + $0x38] sm:$0xff]
      %v797 = vld [vmem:[#allocation2 + $0x40] sm:$0xff]
      %v798 = vld [vmem:[#allocation2 + $0x48] sm:$0xff]
      %v799 = vld [vmem:[#allocation2 + $0x50] sm:$0xff]
      %v800 = vld [vmem:[#allocation2 + $0x58] sm:$0xff]
      %v801 = vld [vmem:[#allocation2 + $0x60] sm:$0xff]
      %v802 = vld [vmem:[#allocation2 + $0x68] sm:$0xff]
      %v803 = vld [vmem:[#allocation2 + $0x70] sm:$0xff]
      %v804 = vld [vmem:[#allocation2 + $0x78] sm:$0xff]
      %v805 = vld [vmem:[#allocation2 + $0x80] sm:$0xff]
      %v806 = vld [vmem:[#allocation2 + $0x88] sm:$0xff]
      %v807 = vld [vmem:[#allocation2 + $0x90] sm:$0xff]
      %v808 = vld [vmem:[#allocation2 + $0x98] sm:$0xff]
      %v809 = vld [vmem:[#allocation2 + $0xa0] sm:$0xff]
      %v810 = vld [vmem:[#allocation2 + $0xa8] sm:$0xff]
      %v811 = vld [vmem:[#allocation2 + $0xb0] sm:$0xff]
      %v812 = vld [vmem:[#allocation2 + $0xb8] sm:$0xff]
      %v813 = vld [vmem:[#allocation2 + $0xc0] sm:$0xff]
      %v814 = vld [vmem:[#allocation2 + $0xc8] sm:$0xff]
      %v815 = vld [vmem:[#allocation2 + $0xd0] sm:$0xff]
      %v816 = vld [vmem:[#allocation2 + $0xd8] sm:$0xff]
      %v817 = vld [vmem:[#allocation2 + $0xe0] sm:$0xff]
      %v818 = vld [vmem:[#allocation2 + $0xe8] sm:$0xff]
      %v819 = vld [vmem:[#allocation2 + $0xf0] sm:$0xff]
      %v820 = vld [vmem:[#allocation2 + $0xf8] sm:$0xff]
      %v821 = vsel %vm721, 1, 0
      %v822 = vsel %vm722, 1, 0
      %v823 = vsel %vm723, 1, 0
      %v824 = vsel %vm724, 1, 0
      %v825 = vsel %vm725, 1, 0
      %v826 = vsel %vm726, 1, 0
      %v827 = vsel %vm727, 1, 0
      %v828 = vsel %vm728, 1, 0
      %v829 = vsel %vm729, 1, 0
      %v830 = vsel %vm730, 1, 0
      %v831 = vsel %vm731, 1, 0
      %v832 = vsel %vm732, 1, 0
      %v833 = vsel %vm733, 1, 0
      %v834 = vsel %vm734, 1, 0
      %v835 = vsel %vm735, 1, 0
      %v836 = vsel %vm736, 1, 0
      %v837 = vsel %vm737, 1, 0
      %v838 = vsel %vm738, 1, 0
      %v839 = vsel %vm739, 1, 0
      %v840 = vsel %vm740, 1, 0
      %v841 = vsel %vm741, 1, 0
      %v842 = vsel %vm742, 1, 0
      %v843 = vsel %vm743, 1, 0
      %v844 = vsel %vm744, 1, 0
      %v845 = vsel %vm745, 1, 0
      %v846 = vsel %vm746, 1, 0
      %v847 = vsel %vm747, 1, 0
      %v848 = vsel %vm748, 1, 0
      %v849 = vsel %vm749, 1, 0
      %v850 = vsel %vm750, 1, 0
      %v851 = vsel %vm751, 1, 0
      %v852 = vsel %vm752, 1, 0
      %vm853 = vcmp.eq.s32.totalorder %v821, 1
      %vm854 = vcmp.eq.s32.totalorder %v822, 1
      %vm855 = vcmp.eq.s32.totalorder %v823, 1
      %vm856 = vcmp.eq.s32.totalorder %v824, 1
      %vm857 = vcmp.eq.s32.totalorder %v825, 1
      %vm858 = vcmp.eq.s32.totalorder %v826, 1
      %vm859 = vcmp.eq.s32.totalorder %v827, 1
      %vm860 = vcmp.eq.s32.totalorder %v828, 1
      %vm861 = vcmp.eq.s32.totalorder %v829, 1
      %vm862 = vcmp.eq.s32.totalorder %v830, 1
      %vm863 = vcmp.eq.s32.totalorder %v831, 1
      %vm864 = vcmp.eq.s32.totalorder %v832, 1
      %vm865 = vcmp.eq.s32.totalorder %v833, 1
      %vm866 = vcmp.eq.s32.totalorder %v834, 1
      %vm867 = vcmp.eq.s32.totalorder %v835, 1
      %vm868 = vcmp.eq.s32.totalorder %v836, 1
      %vm869 = vcmp.eq.s32.totalorder %v837, 1
      %vm870 = vcmp.eq.s32.totalorder %v838, 1
      %vm871 = vcmp.eq.s32.totalorder %v839, 1
      %vm872 = vcmp.eq.s32.totalorder %v840, 1
      %vm873 = vcmp.eq.s32.totalorder %v841, 1
      %vm874 = vcmp.eq.s32.totalorder %v842, 1
      %vm875 = vcmp.eq.s32.totalorder %v843, 1
      %vm876 = vcmp.eq.s32.totalorder %v844, 1
      %vm877 = vcmp.eq.s32.totalorder %v845, 1
      %vm878 = vcmp.eq.s32.totalorder %v846, 1
      %vm879 = vcmp.eq.s32.totalorder %v847, 1
      %vm880 = vcmp.eq.s32.totalorder %v848, 1
      %vm881 = vcmp.eq.s32.totalorder %v849, 1
      %vm882 = vcmp.eq.s32.totalorder %v850, 1
      %vm883 = vcmp.eq.s32.totalorder %v851, 1
      %vm884 = vcmp.eq.s32.totalorder %v852, 1
      %v885 = vsel %vm853, %v789, 0.0
      %v886 = vsel %vm854, %v790, 0.0
      %v887 = vsel %vm855, %v791, 0.0
      %v888 = vsel %vm856, %v792, 0.0
      %v889 = vsel %vm857, %v793, 0.0
      %v890 = vsel %vm858, %v794, 0.0
      %v891 = vsel %vm859, %v795, 0.0
      %v892 = vsel %vm860, %v796, 0.0
      %v893 = vsel %vm861, %v797, 0.0
      %v894 = vsel %vm862, %v798, 0.0
      %v895 = vsel %vm863, %v799, 0.0
      %v896 = vsel %vm864, %v800, 0.0
      %v897 = vsel %vm865, %v801, 0.0
      %v898 = vsel %vm866, %v802, 0.0
      %v899 = vsel %vm867, %v803, 0.0
      %v900 = vsel %vm868, %v804, 0.0
      %v901 = vsel %vm869, %v805, 0.0
      %v902 = vsel %vm870, %v806, 0.0
      %v903 = vsel %vm871, %v807, 0.0
      %v904 = vsel %vm872, %v808, 0.0
      %v905 = vsel %vm873, %v809, 0.0
      %v906 = vsel %vm874, %v810, 0.0
      %v907 = vsel %vm875, %v811, 0.0
      %v908 = vsel %vm876, %v812, 0.0
      %v909 = vsel %vm877, %v813, 0.0
      %v910 = vsel %vm878, %v814, 0.0
      %v911 = vsel %vm879, %v815, 0.0
      %v912 = vsel %vm880, %v816, 0.0
      %v913 = vsel %vm881, %v817, 0.0
      %v914 = vsel %vm882, %v818, 0.0
      %v915 = vsel %vm883, %v819, 0.0
      %v916 = vsel %vm884, %v820, 0.0
      %v917 = vld [vmem:[%s1] sm:$0xf]
      %v919 = vsel %vm225, %v885, 0
      %v922 = vsel %vm225, %v886, 0
      %v925 = vsel %vm225, %v887, 0
      %v928 = vsel %vm225, %v888, 0
      %v931 = vsel %vm225, %v889, 0
      %v934 = vsel %vm225, %v890, 0
      %v937 = vsel %vm225, %v891, 0
      %v940 = vsel %vm225, %v892, 0
      %v943 = vsel %vm225, %v893, 0
      %v946 = vsel %vm225, %v894, 0
      %v949 = vsel %vm225, %v895, 0
      %v952 = vsel %vm225, %v896, 0
      %v955 = vsel %vm225, %v897, 0
      %v958 = vsel %vm225, %v898, 0
      %v961 = vsel %vm225, %v899, 0
      %v964 = vsel %vm225, %v900, 0
      %v967 = vsel %vm225, %v901, 0
      %v970 = vsel %vm225, %v902, 0
      %v973 = vsel %vm225, %v903, 0
      %v976 = vsel %vm225, %v904, 0
      %v979 = vsel %vm225, %v905, 0
      %v982 = vsel %vm225, %v906, 0
      %v985 = vsel %vm225, %v907, 0
      %v988 = vsel %vm225, %v908, 0
      %v991 = vsel %vm225, %v909, 0
      %v994 = vsel %vm225, %v910, 0
      %v997 = vsel %vm225, %v911, 0
      %v1000 = vsel %vm225, %v912, 0
      %v1003 = vsel %vm225, %v913, 0
      %v1006 = vsel %vm225, %v914, 0
      %v1009 = vsel %vm225, %v915, 0
      %v1012 = vsel %vm225, %v916, 0
      %vm1014 = vcmask 1043456
      %v1016 = vsel %vm1014, %v917, 0
      %1018 = vmatpush.msra.mxu0 0.0
      %1019 = vmatpush.msra.mxu0 0.0
      %1020 = vmatpush.msra.mxu0 0.0
      %1021 = vmatpush.msra.mxu0 0.0
      %1022 = vmatpush.msra.mxu0 0.0
      %1023 = vmatpush.msra.mxu0 0.0
      %1024 = vmatpush.msra.mxu0 0.0
      %1025 = vmatpush.msra.mxu0 0.0
      %1026 = vmatpush.msra.mxu0 0.0
      %1027 = vmatpush.msra.mxu0 0.0
      %1028 = vmatpush.msra.mxu0 0.0
      %1029 = vmatpush.msra.mxu0 0.0
      %1030 = vmatpush.msra.mxu0 0.0
      %1031 = vmatpush.msra.mxu0 0.0
      %1032 = vmatpush.msra.mxu0 0.0
      %1033 = vmatpush.msra.mxu0 %v1016
      %1034 = vmatmul.f32.gmra.mxu0 %v919
      %v1035 = vpop.f32.mrf.mxu0
      %v1036 = vadd.f32 0.0, %v1035
      %1037 = vmatmul.f32.gmra.mxu0 %v922
      %v1038 = vpop.f32.mrf.mxu0
      %v1039 = vadd.f32 0.0, %v1038
      %1040 = vmatmul.f32.gmra.mxu0 %v925
      %v1041 = vpop.f32.mrf.mxu0
      %v1042 = vadd.f32 0.0, %v1041
      %1043 = vmatmul.f32.gmra.mxu0 %v928
      %v1044 = vpop.f32.mrf.mxu0
      %v1045 = vadd.f32 0.0, %v1044
      %1046 = vmatmul.f32.gmra.mxu0 %v931
      %v1047 = vpop.f32.mrf.mxu0
      %v1048 = vadd.f32 0.0, %v1047
      %1049 = vmatmul.f32.gmra.mxu0 %v934
      %v1050 = vpop.f32.mrf.mxu0
      %v1051 = vadd.f32 0.0, %v1050
      %1052 = vmatmul.f32.gmra.mxu0 %v937
      %v1053 = vpop.f32.mrf.mxu0
      %v1054 = vadd.f32 0.0, %v1053
      %1055 = vmatmul.f32.gmra.mxu0 %v940
      %v1056 = vpop.f32.mrf.mxu0
      %v1057 = vadd.f32 0.0, %v1056
      %1058 = vmatmul.f32.gmra.mxu0 %v943
      %v1059 = vpop.f32.mrf.mxu0
      %v1060 = vadd.f32 0.0, %v1059
      %1061 = vmatmul.f32.gmra.mxu0 %v946
      %v1062 = vpop.f32.mrf.mxu0
      %v1063 = vadd.f32 0.0, %v1062
      %1064 = vmatmul.f32.gmra.mxu0 %v949
      %v1065 = vpop.f32.mrf.mxu0
      %v1066 = vadd.f32 0.0, %v1065
      %1067 = vmatmul.f32.gmra.mxu0 %v952
      %v1068 = vpop.f32.mrf.mxu0
      %v1069 = vadd.f32 0.0, %v1068
      %1070 = vmatmul.f32.gmra.mxu0 %v955
      %v1071 = vpop.f32.mrf.mxu0
      %v1072 = vadd.f32 0.0, %v1071
      %1073 = vmatmul.f32.gmra.mxu0 %v958
      %v1074 = vpop.f32.mrf.mxu0
      %v1075 = vadd.f32 0.0, %v1074
      %1076 = vmatmul.f32.gmra.mxu0 %v961
      %v1077 = vpop.f32.mrf.mxu0
      %v1078 = vadd.f32 0.0, %v1077
      %1079 = vmatmul.f32.gmra.mxu0 %v964
      %v1080 = vpop.f32.mrf.mxu0
      %v1081 = vadd.f32 0.0, %v1080
      %1082 = vmatmul.f32.gmra.mxu0 %v967
      %v1083 = vpop.f32.mrf.mxu0
      %v1084 = vadd.f32 0.0, %v1083
      %1085 = vmatmul.f32.gmra.mxu0 %v970
      %v1086 = vpop.f32.mrf.mxu0
      %v1087 = vadd.f32 0.0, %v1086
      %1088 = vmatmul.f32.gmra.mxu0 %v973
      %v1089 = vpop.f32.mrf.mxu0
      %v1090 = vadd.f32 0.0, %v1089
      %1091 = vmatmul.f32.gmra.mxu0 %v976
      %v1092 = vpop.f32.mrf.mxu0
      %v1093 = vadd.f32 0.0, %v1092
      %1094 = vmatmul.f32.gmra.mxu0 %v979
      %v1095 = vpop.f32.mrf.mxu0
      %v1096 = vadd.f32 0.0, %v1095
      %1097 = vmatmul.f32.gmra.mxu0 %v982
      %v1098 = vpop.f32.mrf.mxu0
      %v1099 = vadd.f32 0.0, %v1098
      %1100 = vmatmul.f32.gmra.mxu0 %v985
      %v1101 = vpop.f32.mrf.mxu0
      %v1102 = vadd.f32 0.0, %v1101
      %1103 = vmatmul.f32.gmra.mxu0 %v988
      %v1104 = vpop.f32.mrf.mxu0
      %v1105 = vadd.f32 0.0, %v1104
      %1106 = vmatmul.f32.gmra.mxu0 %v991
      %v1107 = vpop.f32.mrf.mxu0
      %v1108 = vadd.f32 0.0, %v1107
      %1109 = vmatmul.f32.gmra.mxu0 %v994
      %v1110 = vpop.f32.mrf.mxu0
      %v1111 = vadd.f32 0.0, %v1110
      %1112 = vmatmul.f32.gmra.mxu0 %v997
      %v1113 = vpop.f32.mrf.mxu0
      %v1114 = vadd.f32 0.0, %v1113
      %1115 = vmatmul.f32.gmra.mxu0 %v1000
      %v1116 = vpop.f32.mrf.mxu0
      %v1117 = vadd.f32 0.0, %v1116
      %1118 = vmatmul.f32.gmra.mxu0 %v1003
      %v1119 = vpop.f32.mrf.mxu0
      %v1120 = vadd.f32 0.0, %v1119
      %1121 = vmatmul.f32.gmra.mxu0 %v1006
      %v1122 = vpop.f32.mrf.mxu0
      %v1123 = vadd.f32 0.0, %v1122
      %1124 = vmatmul.f32.gmra.mxu0 %v1009
      %v1125 = vpop.f32.mrf.mxu0
      %v1126 = vadd.f32 0.0, %v1125
      %1127 = vmatmul.f32.gmra.mxu0 %v1012
      %v1128 = vpop.f32.mrf.mxu0
      %v1129 = vadd.f32 0.0, %v1128
      %1130 = vdwg.mxu0
      %v1131 = vadd.f32 %v787, %v1036
      %v1132 = vadd.f32 %v787, %v1039
      %v1133 = vadd.f32 %v787, %v1042
      %v1134 = vadd.f32 %v787, %v1045
      %v1135 = vadd.f32 %v787, %v1048
      %v1136 = vadd.f32 %v787, %v1051
      %v1137 = vadd.f32 %v787, %v1054
      %v1138 = vadd.f32 %v787, %v1057
      %v1139 = vadd.f32 %v787, %v1060
      %v1140 = vadd.f32 %v787, %v1063
      %v1141 = vadd.f32 %v787, %v1066
      %v1142 = vadd.f32 %v787, %v1069
      %v1143 = vadd.f32 %v787, %v1072
      %v1144 = vadd.f32 %v787, %v1075
      %v1145 = vadd.f32 %v787, %v1078
      %v1146 = vadd.f32 %v787, %v1081
      %v1147 = vadd.f32 %v787, %v1084
      %v1148 = vadd.f32 %v787, %v1087
      %v1149 = vadd.f32 %v787, %v1090
      %v1150 = vadd.f32 %v787, %v1093
      %v1151 = vadd.f32 %v787, %v1096
      %v1152 = vadd.f32 %v787, %v1099
      %v1153 = vadd.f32 %v787, %v1102
      %v1154 = vadd.f32 %v787, %v1105
      %v1155 = vadd.f32 %v787, %v1108
      %v1156 = vadd.f32 %v787, %v1111
      %v1157 = vadd.f32 %v787, %v1114
      %v1158 = vadd.f32 %v787, %v1117
      %v1159 = vadd.f32 %v787, %v1120
      %v1160 = vadd.f32 %v787, %v1123
      %v1161 = vadd.f32 %v787, %v1126
      %v1162 = vadd.f32 %v787, %v1129
      %v1163 = vld [vmem:[#allocation2 + $0x1] sm:$0xff]
      %v1164 = vld [vmem:[#allocation2 + $0x9] sm:$0xff]
      %v1165 = vld [vmem:[#allocation2 + $0x11] sm:$0xff]
      %v1166 = vld [vmem:[#allocation2 + $0x19] sm:$0xff]
      %v1167 = vld [vmem:[#allocation2 + $0x21] sm:$0xff]
      %v1168 = vld [vmem:[#allocation2 + $0x29] sm:$0xff]
      %v1169 = vld [vmem:[#allocation2 + $0x31] sm:$0xff]
      %v1170 = vld [vmem:[#allocation2 + $0x39] sm:$0xff]
      %v1171 = vld [vmem:[#allocation2 + $0x41] sm:$0xff]
      %v1172 = vld [vmem:[#allocation2 + $0x49] sm:$0xff]
      %v1173 = vld [vmem:[#allocation2 + $0x51] sm:$0xff]
      %v1174 = vld [vmem:[#allocation2 + $0x59] sm:$0xff]
      %v1175 = vld [vmem:[#allocation2 + $0x61] sm:$0xff]
      %v1176 = vld [vmem:[#allocation2 + $0x69] sm:$0xff]
      %v1177 = vld [vmem:[#allocation2 + $0x71] sm:$0xff]
      %v1178 = vld [vmem:[#allocation2 + $0x79] sm:$0xff]
      %v1179 = vld [vmem:[#allocation2 + $0x81] sm:$0xff]
      %v1180 = vld [vmem:[#allocation2 + $0x89] sm:$0xff]
      %v1181 = vld [vmem:[#allocation2 + $0x91] sm:$0xff]
      %v1182 = vld [vmem:[#allocation2 + $0x99] sm:$0xff]
      %v1183 = vld [vmem:[#allocation2 + $0xa1] sm:$0xff]
      %v1184 = vld [vmem:[#allocation2 + $0xa9] sm:$0xff]
      %v1185 = vld [vmem:[#allocation2 + $0xb1] sm:$0xff]
      %v1186 = vld [vmem:[#allocation2 + $0xb9] sm:$0xff]
      %v1187 = vld [vmem:[#allocation2 + $0xc1] sm:$0xff]
      %v1188 = vld [vmem:[#allocation2 + $0xc9] sm:$0xff]
      %v1189 = vld [vmem:[#allocation2 + $0xd1] sm:$0xff]
      %v1190 = vld [vmem:[#allocation2 + $0xd9] sm:$0xff]
      %v1191 = vld [vmem:[#allocation2 + $0xe1] sm:$0xff]
      %v1192 = vld [vmem:[#allocation2 + $0xe9] sm:$0xff]
      %v1193 = vld [vmem:[#allocation2 + $0xf1] sm:$0xff]
      %v1194 = vld [vmem:[#allocation2 + $0xf9] sm:$0xff]
      %s1195 = scalar_lea.vmem %s1, 4
      %v1196 = vld [vmem:[%s1195] sm:$0xf]
      %v1198 = vsel %vm225, %v1163, 0
      %v1201 = vsel %vm225, %v1164, 0
      %v1204 = vsel %vm225, %v1165, 0
      %v1207 = vsel %vm225, %v1166, 0
      %v1210 = vsel %vm225, %v1167, 0
      %v1213 = vsel %vm225, %v1168, 0
      %v1216 = vsel %vm225, %v1169, 0
      %v1219 = vsel %vm225, %v1170, 0
      %v1222 = vsel %vm225, %v1171, 0
      %v1225 = vsel %vm225, %v1172, 0
      %v1228 = vsel %vm225, %v1173, 0
      %v1231 = vsel %vm225, %v1174, 0
      %v1234 = vsel %vm225, %v1175, 0
      %v1237 = vsel %vm225, %v1176, 0
      %v1240 = vsel %vm225, %v1177, 0
      %v1243 = vsel %vm225, %v1178, 0
      %v1246 = vsel %vm225, %v1179, 0
      %v1249 = vsel %vm225, %v1180, 0
      %v1252 = vsel %vm225, %v1181, 0
      %v1255 = vsel %vm225, %v1182, 0
      %v1258 = vsel %vm225, %v1183, 0
      %v1261 = vsel %vm225, %v1184, 0
      %v1264 = vsel %vm225, %v1185, 0
      %v1267 = vsel %vm225, %v1186, 0
      %v1270 = vsel %vm225, %v1187, 0
      %v1273 = vsel %vm225, %v1188, 0
      %v1276 = vsel %vm225, %v1189, 0
      %v1279 = vsel %vm225, %v1190, 0
      %v1282 = vsel %vm225, %v1191, 0
      %v1285 = vsel %vm225, %v1192, 0
      %v1288 = vsel %vm225, %v1193, 0
      %v1291 = vsel %vm225, %v1194, 0
      %v1294 = vsel %vm1014, %v1196, 0
      %1296 = vmatpush.msra.mxu0 0.0
      %1297 = vmatpush.msra.mxu0 0.0
      %1298 = vmatpush.msra.mxu0 0.0
      %1299 = vmatpush.msra.mxu0 0.0
      %1300 = vmatpush.msra.mxu0 0.0
      %1301 = vmatpush.msra.mxu0 0.0
      %1302 = vmatpush.msra.mxu0 0.0
      %1303 = vmatpush.msra.mxu0 0.0
      %1304 = vmatpush.msra.mxu0 0.0
      %1305 = vmatpush.msra.mxu0 0.0
      %1306 = vmatpush.msra.mxu0 0.0
      %1307 = vmatpush.msra.mxu0 0.0
      %1308 = vmatpush.msra.mxu0 0.0
      %1309 = vmatpush.msra.mxu0 0.0
      %1310 = vmatpush.msra.mxu0 0.0
      %1311 = vmatpush.msra.mxu0 %v1294
      %1312 = vmatmul.f32.gmra.mxu0 %v1198
      %v1313 = vpop.f32.mrf.mxu0
      %v1314 = vadd.f32 0.0, %v1313
      %1315 = vmatmul.f32.gmra.mxu0 %v1201
      %v1316 = vpop.f32.mrf.mxu0
      %v1317 = vadd.f32 0.0, %v1316
      %1318 = vmatmul.f32.gmra.mxu0 %v1204
      %v1319 = vpop.f32.mrf.mxu0
      %v1320 = vadd.f32 0.0, %v1319
      %1321 = vmatmul.f32.gmra.mxu0 %v1207
      %v1322 = vpop.f32.mrf.mxu0
      %v1323 = vadd.f32 0.0, %v1322
      %1324 = vmatmul.f32.gmra.mxu0 %v1210
      %v1325 = vpop.f32.mrf.mxu0
      %v1326 = vadd.f32 0.0, %v1325
      %1327 = vmatmul.f32.gmra.mxu0 %v1213
      %v1328 = vpop.f32.mrf.mxu0
      %v1329 = vadd.f32 0.0, %v1328
      %1330 = vmatmul.f32.gmra.mxu0 %v1216
      %v1331 = vpop.f32.mrf.mxu0
      %v1332 = vadd.f32 0.0, %v1331
      %1333 = vmatmul.f32.gmra.mxu0 %v1219
      %v1334 = vpop.f32.mrf.mxu0
      %v1335 = vadd.f32 0.0, %v1334
      %1336 = vmatmul.f32.gmra.mxu0 %v1222
      %v1337 = vpop.f32.mrf.mxu0
      %v1338 = vadd.f32 0.0, %v1337
      %1339 = vmatmul.f32.gmra.mxu0 %v1225
      %v1340 = vpop.f32.mrf.mxu0
      %v1341 = vadd.f32 0.0, %v1340
      %1342 = vmatmul.f32.gmra.mxu0 %v1228
      %v1343 = vpop.f32.mrf.mxu0
      %v1344 = vadd.f32 0.0, %v1343
      %1345 = vmatmul.f32.gmra.mxu0 %v1231
      %v1346 = vpop.f32.mrf.mxu0
      %v1347 = vadd.f32 0.0, %v1346
      %1348 = vmatmul.f32.gmra.mxu0 %v1234
      %v1349 = vpop.f32.mrf.mxu0
      %v1350 = vadd.f32 0.0, %v1349
      %1351 = vmatmul.f32.gmra.mxu0 %v1237
      %v1352 = vpop.f32.mrf.mxu0
      %v1353 = vadd.f32 0.0, %v1352
      %1354 = vmatmul.f32.gmra.mxu0 %v1240
      %v1355 = vpop.f32.mrf.mxu0
      %v1356 = vadd.f32 0.0, %v1355
      %1357 = vmatmul.f32.gmra.mxu0 %v1243
      %v1358 = vpop.f32.mrf.mxu0
      %v1359 = vadd.f32 0.0, %v1358
      %1360 = vmatmul.f32.gmra.mxu0 %v1246
      %v1361 = vpop.f32.mrf.mxu0
      %v1362 = vadd.f32 0.0, %v1361
      %1363 = vmatmul.f32.gmra.mxu0 %v1249
      %v1364 = vpop.f32.mrf.mxu0
      %v1365 = vadd.f32 0.0, %v1364
      %1366 = vmatmul.f32.gmra.mxu0 %v1252
      %v1367 = vpop.f32.mrf.mxu0
      %v1368 = vadd.f32 0.0, %v1367
      %1369 = vmatmul.f32.gmra.mxu0 %v1255
      %v1370 = vpop.f32.mrf.mxu0
      %v1371 = vadd.f32 0.0, %v1370
      %1372 = vmatmul.f32.gmra.mxu0 %v1258
      %v1373 = vpop.f32.mrf.mxu0
      %v1374 = vadd.f32 0.0, %v1373
      %1375 = vmatmul.f32.gmra.mxu0 %v1261
      %v1376 = vpop.f32.mrf.mxu0
      %v1377 = vadd.f32 0.0, %v1376
      %1378 = vmatmul.f32.gmra.mxu0 %v1264
      %v1379 = vpop.f32.mrf.mxu0
      %v1380 = vadd.f32 0.0, %v1379
      %1381 = vmatmul.f32.gmra.mxu0 %v1267
      %v1382 = vpop.f32.mrf.mxu0
      %v1383 = vadd.f32 0.0, %v1382
      %1384 = vmatmul.f32.gmra.mxu0 %v1270
      %v1385 = vpop.f32.mrf.mxu0
      %v1386 = vadd.f32 0.0, %v1385
      %1387 = vmatmul.f32.gmra.mxu0 %v1273
      %v1388 = vpop.f32.mrf.mxu0
      %v1389 = vadd.f32 0.0, %v1388
      %1390 = vmatmul.f32.gmra.mxu0 %v1276
      %v1391 = vpop.f32.mrf.mxu0
      %v1392 = vadd.f32 0.0, %v1391
      %1393 = vmatmul.f32.gmra.mxu0 %v1279
      %v1394 = vpop.f32.mrf.mxu0
      %v1395 = vadd.f32 0.0, %v1394
      %1396 = vmatmul.f32.gmra.mxu0 %v1282
      %v1397 = vpop.f32.mrf.mxu0
      %v1398 = vadd.f32 0.0, %v1397
      %1399 = vmatmul.f32.gmra.mxu0 %v1285
      %v1400 = vpop.f32.mrf.mxu0
      %v1401 = vadd.f32 0.0, %v1400
      %1402 = vmatmul.f32.gmra.mxu0 %v1288
      %v1403 = vpop.f32.mrf.mxu0
      %v1404 = vadd.f32 0.0, %v1403
      %1405 = vmatmul.f32.gmra.mxu0 %v1291
      %v1406 = vpop.f32.mrf.mxu0
      %v1407 = vadd.f32 0.0, %v1406
      %1408 = vdwg.mxu0
      %v1409 = vadd.f32 %v1131, %v1314
      %v1410 = vadd.f32 %v1132, %v1317
      %v1411 = vadd.f32 %v1133, %v1320
      %v1412 = vadd.f32 %v1134, %v1323
      %v1413 = vadd.f32 %v1135, %v1326
      %v1414 = vadd.f32 %v1136, %v1329
      %v1415 = vadd.f32 %v1137, %v1332
      %v1416 = vadd.f32 %v1138, %v1335
      %v1417 = vadd.f32 %v1139, %v1338
      %v1418 = vadd.f32 %v1140, %v1341
      %v1419 = vadd.f32 %v1141, %v1344
      %v1420 = vadd.f32 %v1142, %v1347
      %v1421 = vadd.f32 %v1143, %v1350
      %v1422 = vadd.f32 %v1144, %v1353
      %v1423 = vadd.f32 %v1145, %v1356
      %v1424 = vadd.f32 %v1146, %v1359
      %v1425 = vadd.f32 %v1147, %v1362
      %v1426 = vadd.f32 %v1148, %v1365
      %v1427 = vadd.f32 %v1149, %v1368
      %v1428 = vadd.f32 %v1150, %v1371
      %v1429 = vadd.f32 %v1151, %v1374
      %v1430 = vadd.f32 %v1152, %v1377
      %v1431 = vadd.f32 %v1153, %v1380
      %v1432 = vadd.f32 %v1154, %v1383
      %v1433 = vadd.f32 %v1155, %v1386
      %v1434 = vadd.f32 %v1156, %v1389
      %v1435 = vadd.f32 %v1157, %v1392
      %v1436 = vadd.f32 %v1158, %v1395
      %v1437 = vadd.f32 %v1159, %v1398
      %v1438 = vadd.f32 %v1160, %v1401
      %v1439 = vadd.f32 %v1161, %v1404
      %v1440 = vadd.f32 %v1162, %v1407
      %v1441 = vld [vmem:[#allocation2 + $0x2] sm:$0xff]
      %v1442 = vld [vmem:[#allocation2 + $0xa] sm:$0xff]
      %v1443 = vld [vmem:[#allocation2 + $0x12] sm:$0xff]
      %v1444 = vld [vmem:[#allocation2 + $0x1a] sm:$0xff]
      %v1445 = vld [vmem:[#allocation2 + $0x22] sm:$0xff]
      %v1446 = vld [vmem:[#allocation2 + $0x2a] sm:$0xff]
      %v1447 = vld [vmem:[#allocation2 + $0x32] sm:$0xff]
      %v1448 = vld [vmem:[#allocation2 + $0x3a] sm:$0xff]
      %v1449 = vld [vmem:[#allocation2 + $0x42] sm:$0xff]
      %v1450 = vld [vmem:[#allocation2 + $0x4a] sm:$0xff]
      %v1451 = vld [vmem:[#allocation2 + $0x52] sm:$0xff]
      %v1452 = vld [vmem:[#allocation2 + $0x5a] sm:$0xff]
      %v1453 = vld [vmem:[#allocation2 + $0x62] sm:$0xff]
      %v1454 = vld [vmem:[#allocation2 + $0x6a] sm:$0xff]
      %v1455 = vld [vmem:[#allocation2 + $0x72] sm:$0xff]
      %v1456 = vld [vmem:[#allocation2 + $0x7a] sm:$0xff]
      %v1457 = vld [vmem:[#allocation2 + $0x82] sm:$0xff]
      %v1458 = vld [vmem:[#allocation2 + $0x8a] sm:$0xff]
      %v1459 = vld [vmem:[#allocation2 + $0x92] sm:$0xff]
      %v1460 = vld [vmem:[#allocation2 + $0x9a] sm:$0xff]
      %v1461 = vld [vmem:[#allocation2 + $0xa2] sm:$0xff]
      %v1462 = vld [vmem:[#allocation2 + $0xaa] sm:$0xff]
      %v1463 = vld [vmem:[#allocation2 + $0xb2] sm:$0xff]
      %v1464 = vld [vmem:[#allocation2 + $0xba] sm:$0xff]
      %v1465 = vld [vmem:[#allocation2 + $0xc2] sm:$0xff]
      %v1466 = vld [vmem:[#allocation2 + $0xca] sm:$0xff]
      %v1467 = vld [vmem:[#allocation2 + $0xd2] sm:$0xff]
      %v1468 = vld [vmem:[#allocation2 + $0xda] sm:$0xff]
      %v1469 = vld [vmem:[#allocation2 + $0xe2] sm:$0xff]
      %v1470 = vld [vmem:[#allocation2 + $0xea] sm:$0xff]
      %v1471 = vld [vmem:[#allocation2 + $0xf2] sm:$0xff]
      %v1472 = vld [vmem:[#allocation2 + $0xfa] sm:$0xff]
      %v1473 = vsel %vm753, 1, 0
      %v1474 = vsel %vm754, 1, 0
      %v1475 = vsel %vm755, 1, 0
      %v1476 = vsel %vm756, 1, 0
      %v1477 = vsel %vm757, 1, 0
      %v1478 = vsel %vm758, 1, 0
      %v1479 = vsel %vm759, 1, 0
      %v1480 = vsel %vm760, 1, 0
      %v1481 = vsel %vm761, 1, 0
      %v1482 = vsel %vm762, 1, 0
      %v1483 = vsel %vm763, 1, 0
      %v1484 = vsel %vm764, 1, 0
      %v1485 = vsel %vm765, 1, 0
      %v1486 = vsel %vm766, 1, 0
      %v1487 = vsel %vm767, 1, 0
      %v1488 = vsel %vm768, 1, 0
      %v1489 = vsel %vm769, 1, 0
      %v1490 = vsel %vm770, 1, 0
      %v1491 = vsel %vm771, 1, 0
      %v1492 = vsel %vm772, 1, 0
      %v1493 = vsel %vm773, 1, 0
      %v1494 = vsel %vm774, 1, 0
      %v1495 = vsel %vm775, 1, 0
      %v1496 = vsel %vm776, 1, 0
      %v1497 = vsel %vm777, 1, 0
      %v1498 = vsel %vm778, 1, 0
      %v1499 = vsel %vm779, 1, 0
      %v1500 = vsel %vm780, 1, 0
      %v1501 = vsel %vm781, 1, 0
      %v1502 = vsel %vm782, 1, 0
      %v1503 = vsel %vm783, 1, 0
      %v1504 = vsel %vm784, 1, 0
      %vm1505 = vcmp.eq.s32.totalorder %v1473, 1
      %vm1506 = vcmp.eq.s32.totalorder %v1474, 1
      %vm1507 = vcmp.eq.s32.totalorder %v1475, 1
      %vm1508 = vcmp.eq.s32.totalorder %v1476, 1
      %vm1509 = vcmp.eq.s32.totalorder %v1477, 1
      %vm1510 = vcmp.eq.s32.totalorder %v1478, 1
      %vm1511 = vcmp.eq.s32.totalorder %v1479, 1
      %vm1512 = vcmp.eq.s32.totalorder %v1480, 1
      %vm1513 = vcmp.eq.s32.totalorder %v1481, 1
      %vm1514 = vcmp.eq.s32.totalorder %v1482, 1
      %vm1515 = vcmp.eq.s32.totalorder %v1483, 1
      %vm1516 = vcmp.eq.s32.totalorder %v1484, 1
      %vm1517 = vcmp.eq.s32.totalorder %v1485, 1
      %vm1518 = vcmp.eq.s32.totalorder %v1486, 1
      %vm1519 = vcmp.eq.s32.totalorder %v1487, 1
      %vm1520 = vcmp.eq.s32.totalorder %v1488, 1
      %vm1521 = vcmp.eq.s32.totalorder %v1489, 1
      %vm1522 = vcmp.eq.s32.totalorder %v1490, 1
      %vm1523 = vcmp.eq.s32.totalorder %v1491, 1
      %vm1524 = vcmp.eq.s32.totalorder %v1492, 1
      %vm1525 = vcmp.eq.s32.totalorder %v1493, 1
      %vm1526 = vcmp.eq.s32.totalorder %v1494, 1
      %vm1527 = vcmp.eq.s32.totalorder %v1495, 1
      %vm1528 = vcmp.eq.s32.totalorder %v1496, 1
      %vm1529 = vcmp.eq.s32.totalorder %v1497, 1
      %vm1530 = vcmp.eq.s32.totalorder %v1498, 1
      %vm1531 = vcmp.eq.s32.totalorder %v1499, 1
      %vm1532 = vcmp.eq.s32.totalorder %v1500, 1
      %vm1533 = vcmp.eq.s32.totalorder %v1501, 1
      %vm1534 = vcmp.eq.s32.totalorder %v1502, 1
      %vm1535 = vcmp.eq.s32.totalorder %v1503, 1
      %vm1536 = vcmp.eq.s32.totalorder %v1504, 1
      %v1537 = vsel %vm1505, %v1441, 0.0
      %v1538 = vsel %vm1506, %v1442, 0.0
      %v1539 = vsel %vm1507, %v1443, 0.0
      %v1540 = vsel %vm1508, %v1444, 0.0
      %v1541 = vsel %vm1509, %v1445, 0.0
      %v1542 = vsel %vm1510, %v1446, 0.0
      %v1543 = vsel %vm1511, %v1447, 0.0
      %v1544 = vsel %vm1512, %v1448, 0.0
      %v1545 = vsel %vm1513, %v1449, 0.0
      %v1546 = vsel %vm1514, %v1450, 0.0
      %v1547 = vsel %vm1515, %v1451, 0.0
      %v1548 = vsel %vm1516, %v1452, 0.0
      %v1549 = vsel %vm1517, %v1453, 0.0
      %v1550 = vsel %vm1518, %v1454, 0.0
      %v1551 = vsel %vm1519, %v1455, 0.0
      %v1552 = vsel %vm1520, %v1456, 0.0
      %v1553 = vsel %vm1521, %v1457, 0.0
      %v1554 = vsel %vm1522, %v1458, 0.0
      %v1555 = vsel %vm1523, %v1459, 0.0
      %v1556 = vsel %vm1524, %v1460, 0.0
      %v1557 = vsel %vm1525, %v1461, 0.0
      %v1558 = vsel %vm1526, %v1462, 0.0
      %v1559 = vsel %vm1527, %v1463, 0.0
      %v1560 = vsel %vm1528, %v1464, 0.0
      %v1561 = vsel %vm1529, %v1465, 0.0
      %v1562 = vsel %vm1530, %v1466, 0.0
      %v1563 = vsel %vm1531, %v1467, 0.0
      %v1564 = vsel %vm1532, %v1468, 0.0
      %v1565 = vsel %vm1533, %v1469, 0.0
      %v1566 = vsel %vm1534, %v1470, 0.0
      %v1567 = vsel %vm1535, %v1471, 0.0
      %v1568 = vsel %vm1536, %v1472, 0.0
      %s1569 = scalar_lea.vmem %s1, 8
      %v1570 = vld [vmem:[%s1569] sm:$0xf]
      %v1572 = vsel %vm225, %v1537, 0
      %v1575 = vsel %vm225, %v1538, 0
      %v1578 = vsel %vm225, %v1539, 0
      %v1581 = vsel %vm225, %v1540, 0
      %v1584 = vsel %vm225, %v1541, 0
      %v1587 = vsel %vm225, %v1542, 0
      %v1590 = vsel %vm225, %v1543, 0
      %v1593 = vsel %vm225, %v1544, 0
      %v1596 = vsel %vm225, %v1545, 0
      %v1599 = vsel %vm225, %v1546, 0
      %v1602 = vsel %vm225, %v1547, 0
      %v1605 = vsel %vm225, %v1548, 0
      %v1608 = vsel %vm225, %v1549, 0
      %v1611 = vsel %vm225, %v1550, 0
      %v1614 = vsel %vm225, %v1551, 0
      %v1617 = vsel %vm225, %v1552, 0
      %v1620 = vsel %vm225, %v1553, 0
      %v1623 = vsel %vm225, %v1554, 0
      %v1626 = vsel %vm225, %v1555, 0
      %v1629 = vsel %vm225, %v1556, 0
      %v1632 = vsel %vm225, %v1557, 0
      %v1635 = vsel %vm225, %v1558, 0
      %v1638 = vsel %vm225, %v1559, 0
      %v1641 = vsel %vm225, %v1560, 0
      %v1644 = vsel %vm225, %v1561, 0
      %v1647 = vsel %vm225, %v1562, 0
      %v1650 = vsel %vm225, %v1563, 0
      %v1653 = vsel %vm225, %v1564, 0
      %v1656 = vsel %vm225, %v1565, 0
      %v1659 = vsel %vm225, %v1566, 0
      %v1662 = vsel %vm225, %v1567, 0
      %v1665 = vsel %vm225, %v1568, 0
      %v1668 = vsel %vm1014, %v1570, 0
      %1670 = vmatpush.msra.mxu0 0.0
      %1671 = vmatpush.msra.mxu0 0.0
      %1672 = vmatpush.msra.mxu0 0.0
      %1673 = vmatpush.msra.mxu0 0.0
      %1674 = vmatpush.msra.mxu0 0.0
      %1675 = vmatpush.msra.mxu0 0.0
      %1676 = vmatpush.msra.mxu0 0.0
      %1677 = vmatpush.msra.mxu0 0.0
      %1678 = vmatpush.msra.mxu0 0.0
      %1679 = vmatpush.msra.mxu0 0.0
      %1680 = vmatpush.msra.mxu0 0.0
      %1681 = vmatpush.msra.mxu0 0.0
      %1682 = vmatpush.msra.mxu0 0.0
      %1683 = vmatpush.msra.mxu0 0.0
      %1684 = vmatpush.msra.mxu0 0.0
      %1685 = vmatpush.msra.mxu0 %v1668
      %1686 = vmatmul.f32.gmra.mxu0 %v1572
      %v1687 = vpop.f32.mrf.mxu0
      %v1688 = vadd.f32 0.0, %v1687
      %1689 = vmatmul.f32.gmra.mxu0 %v1575
      %v1690 = vpop.f32.mrf.mxu0
      %v1691 = vadd.f32 0.0, %v1690
      %1692 = vmatmul.f32.gmra.mxu0 %v1578
      %v1693 = vpop.f32.mrf.mxu0
      %v1694 = vadd.f32 0.0, %v1693
      %1695 = vmatmul.f32.gmra.mxu0 %v1581
      %v1696 = vpop.f32.mrf.mxu0
      %v1697 = vadd.f32 0.0, %v1696
      %1698 = vmatmul.f32.gmra.mxu0 %v1584
      %v1699 = vpop.f32.mrf.mxu0
      %v1700 = vadd.f32 0.0, %v1699
      %1701 = vmatmul.f32.gmra.mxu0 %v1587
      %v1702 = vpop.f32.mrf.mxu0
      %v1703 = vadd.f32 0.0, %v1702
      %1704 = vmatmul.f32.gmra.mxu0 %v1590
      %v1705 = vpop.f32.mrf.mxu0
      %v1706 = vadd.f32 0.0, %v1705
      %1707 = vmatmul.f32.gmra.mxu0 %v1593
      %v1708 = vpop.f32.mrf.mxu0
      %v1709 = vadd.f32 0.0, %v1708
      %1710 = vmatmul.f32.gmra.mxu0 %v1596
      %v1711 = vpop.f32.mrf.mxu0
      %v1712 = vadd.f32 0.0, %v1711
      %1713 = vmatmul.f32.gmra.mxu0 %v1599
      %v1714 = vpop.f32.mrf.mxu0
      %v1715 = vadd.f32 0.0, %v1714
      %1716 = vmatmul.f32.gmra.mxu0 %v1602
      %v1717 = vpop.f32.mrf.mxu0
      %v1718 = vadd.f32 0.0, %v1717
      %1719 = vmatmul.f32.gmra.mxu0 %v1605
      %v1720 = vpop.f32.mrf.mxu0
      %v1721 = vadd.f32 0.0, %v1720
      %1722 = vmatmul.f32.gmra.mxu0 %v1608
      %v1723 = vpop.f32.mrf.mxu0
      %v1724 = vadd.f32 0.0, %v1723
      %1725 = vmatmul.f32.gmra.mxu0 %v1611
      %v1726 = vpop.f32.mrf.mxu0
      %v1727 = vadd.f32 0.0, %v1726
      %1728 = vmatmul.f32.gmra.mxu0 %v1614
      %v1729 = vpop.f32.mrf.mxu0
      %v1730 = vadd.f32 0.0, %v1729
      %1731 = vmatmul.f32.gmra.mxu0 %v1617
      %v1732 = vpop.f32.mrf.mxu0
      %v1733 = vadd.f32 0.0, %v1732
      %1734 = vmatmul.f32.gmra.mxu0 %v1620
      %v1735 = vpop.f32.mrf.mxu0
      %v1736 = vadd.f32 0.0, %v1735
      %1737 = vmatmul.f32.gmra.mxu0 %v1623
      %v1738 = vpop.f32.mrf.mxu0
      %v1739 = vadd.f32 0.0, %v1738
      %1740 = vmatmul.f32.gmra.mxu0 %v1626
      %v1741 = vpop.f32.mrf.mxu0
      %v1742 = vadd.f32 0.0, %v1741
      %1743 = vmatmul.f32.gmra.mxu0 %v1629
      %v1744 = vpop.f32.mrf.mxu0
      %v1745 = vadd.f32 0.0, %v1744
      %1746 = vmatmul.f32.gmra.mxu0 %v1632
      %v1747 = vpop.f32.mrf.mxu0
      %v1748 = vadd.f32 0.0, %v1747
      %1749 = vmatmul.f32.gmra.mxu0 %v1635
      %v1750 = vpop.f32.mrf.mxu0
      %v1751 = vadd.f32 0.0, %v1750
      %1752 = vmatmul.f32.gmra.mxu0 %v1638
      %v1753 = vpop.f32.mrf.mxu0
      %v1754 = vadd.f32 0.0, %v1753
      %1755 = vmatmul.f32.gmra.mxu0 %v1641
      %v1756 = vpop.f32.mrf.mxu0
      %v1757 = vadd.f32 0.0, %v1756
      %1758 = vmatmul.f32.gmra.mxu0 %v1644
      %v1759 = vpop.f32.mrf.mxu0
      %v1760 = vadd.f32 0.0, %v1759
      %1761 = vmatmul.f32.gmra.mxu0 %v1647
      %v1762 = vpop.f32.mrf.mxu0
      %v1763 = vadd.f32 0.0, %v1762
      %1764 = vmatmul.f32.gmra.mxu0 %v1650
      %v1765 = vpop.f32.mrf.mxu0
      %v1766 = vadd.f32 0.0, %v1765
      %1767 = vmatmul.f32.gmra.mxu0 %v1653
      %v1768 = vpop.f32.mrf.mxu0
      %v1769 = vadd.f32 0.0, %v1768
      %1770 = vmatmul.f32.gmra.mxu0 %v1656
      %v1771 = vpop.f32.mrf.mxu0
      %v1772 = vadd.f32 0.0, %v1771
      %1773 = vmatmul.f32.gmra.mxu0 %v1659
      %v1774 = vpop.f32.mrf.mxu0
      %v1775 = vadd.f32 0.0, %v1774
      %1776 = vmatmul.f32.gmra.mxu0 %v1662
      %v1777 = vpop.f32.mrf.mxu0
      %v1778 = vadd.f32 0.0, %v1777
      %1779 = vmatmul.f32.gmra.mxu0 %v1665
      %v1780 = vpop.f32.mrf.mxu0
      %v1781 = vadd.f32 0.0, %v1780
      %1782 = vdwg.mxu0
      %v1783 = vadd.f32 %v1409, %v1688
      %v1784 = vadd.f32 %v1410, %v1691
      %v1785 = vadd.f32 %v1411, %v1694
      %v1786 = vadd.f32 %v1412, %v1697
      %v1787 = vadd.f32 %v1413, %v1700
      %v1788 = vadd.f32 %v1414, %v1703
      %v1789 = vadd.f32 %v1415, %v1706
      %v1790 = vadd.f32 %v1416, %v1709
      %v1791 = vadd.f32 %v1417, %v1712
      %v1792 = vadd.f32 %v1418, %v1715
      %v1793 = vadd.f32 %v1419, %v1718
      %v1794 = vadd.f32 %v1420, %v1721
      %v1795 = vadd.f32 %v1421, %v1724
      %v1796 = vadd.f32 %v1422, %v1727
      %v1797 = vadd.f32 %v1423, %v1730
      %v1798 = vadd.f32 %v1424, %v1733
      %v1799 = vadd.f32 %v1425, %v1736
      %v1800 = vadd.f32 %v1426, %v1739
      %v1801 = vadd.f32 %v1427, %v1742
      %v1802 = vadd.f32 %v1428, %v1745
      %v1803 = vadd.f32 %v1429, %v1748
      %v1804 = vadd.f32 %v1430, %v1751
      %v1805 = vadd.f32 %v1431, %v1754
      %v1806 = vadd.f32 %v1432, %v1757
      %v1807 = vadd.f32 %v1433, %v1760
      %v1808 = vadd.f32 %v1434, %v1763
      %v1809 = vadd.f32 %v1435, %v1766
      %v1810 = vadd.f32 %v1436, %v1769
      %v1811 = vadd.f32 %v1437, %v1772
      %v1812 = vadd.f32 %v1438, %v1775
      %v1813 = vadd.f32 %v1439, %v1778
      %v1814 = vadd.f32 %v1440, %v1781
      %v1815 = vld [vmem:[#allocation2 + $0x10] sm:$0xff]
      %v1816 = vld [vmem:[#allocation2 + $0x18] sm:$0xff]
      %v1817 = vld [vmem:[#allocation2 + $0x20] sm:$0xff]
      %v1818 = vld [vmem:[#allocation2 + $0x28] sm:$0xff]
      %v1819 = vld [vmem:[#allocation2 + $0x30] sm:$0xff]
      %v1820 = vld [vmem:[#allocation2 + $0x38] sm:$0xff]
      %v1821 = vld [vmem:[#allocation2 + $0x40] sm:$0xff]
      %v1822 = vld [vmem:[#allocation2 + $0x48] sm:$0xff]
      %v1823 = vld [vmem:[#allocation2 + $0x50] sm:$0xff]
      %v1824 = vld [vmem:[#allocation2 + $0x58] sm:$0xff]
      %v1825 = vld [vmem:[#allocation2 + $0x60] sm:$0xff]
      %v1826 = vld [vmem:[#allocation2 + $0x68] sm:$0xff]
      %v1827 = vld [vmem:[#allocation2 + $0x70] sm:$0xff]
      %v1828 = vld [vmem:[#allocation2 + $0x78] sm:$0xff]
      %v1829 = vld [vmem:[#allocation2 + $0x80] sm:$0xff]
      %v1830 = vld [vmem:[#allocation2 + $0x88] sm:$0xff]
      %v1831 = vld [vmem:[#allocation2 + $0x90] sm:$0xff]
      %v1832 = vld [vmem:[#allocation2 + $0x98] sm:$0xff]
      %v1833 = vld [vmem:[#allocation2 + $0xa0] sm:$0xff]
      %v1834 = vld [vmem:[#allocation2 + $0xa8] sm:$0xff]
      %v1835 = vld [vmem:[#allocation2 + $0xb0] sm:$0xff]
      %v1836 = vld [vmem:[#allocation2 + $0xb8] sm:$0xff]
      %v1837 = vld [vmem:[#allocation2 + $0xc0] sm:$0xff]
      %v1838 = vld [vmem:[#allocation2 + $0xc8] sm:$0xff]
      %v1839 = vld [vmem:[#allocation2 + $0xd0] sm:$0xff]
      %v1840 = vld [vmem:[#allocation2 + $0xd8] sm:$0xff]
      %v1841 = vld [vmem:[#allocation2 + $0xe0] sm:$0xff]
      %v1842 = vld [vmem:[#allocation2 + $0xe8] sm:$0xff]
      %v1843 = vld [vmem:[#allocation2 + $0xf0] sm:$0xff]
      %v1844 = vld [vmem:[#allocation2 + $0xf8] sm:$0xff]
      %v1845 = vld [vmem:[#allocation2 + $0x100] sm:$0xff]
      %v1846 = vld [vmem:[#allocation2 + $0x108] sm:$0xff]
      %v1847 = vsel %vm853, %v1815, 0.0
      %v1848 = vsel %vm854, %v1816, 0.0
      %v1849 = vsel %vm855, %v1817, 0.0
      %v1850 = vsel %vm856, %v1818, 0.0
      %v1851 = vsel %vm857, %v1819, 0.0
      %v1852 = vsel %vm858, %v1820, 0.0
      %v1853 = vsel %vm859, %v1821, 0.0
      %v1854 = vsel %vm860, %v1822, 0.0
      %v1855 = vsel %vm861, %v1823, 0.0
      %v1856 = vsel %vm862, %v1824, 0.0
      %v1857 = vsel %vm863, %v1825, 0.0
      %v1858 = vsel %vm864, %v1826, 0.0
      %v1859 = vsel %vm865, %v1827, 0.0
      %v1860 = vsel %vm866, %v1828, 0.0
      %v1861 = vsel %vm867, %v1829, 0.0
      %v1862 = vsel %vm868, %v1830, 0.0
      %v1863 = vsel %vm869, %v1831, 0.0
      %v1864 = vsel %vm870, %v1832, 0.0
      %v1865 = vsel %vm871, %v1833, 0.0
      %v1866 = vsel %vm872, %v1834, 0.0
      %v1867 = vsel %vm873, %v1835, 0.0
      %v1868 = vsel %vm874, %v1836, 0.0
      %v1869 = vsel %vm875, %v1837, 0.0
      %v1870 = vsel %vm876, %v1838, 0.0
      %v1871 = vsel %vm877, %v1839, 0.0
      %v1872 = vsel %vm878, %v1840, 0.0
      %v1873 = vsel %vm879, %v1841, 0.0
      %v1874 = vsel %vm880, %v1842, 0.0
      %v1875 = vsel %vm881, %v1843, 0.0
      %v1876 = vsel %vm882, %v1844, 0.0
      %v1877 = vsel %vm883, %v1845, 0.0
      %v1878 = vsel %vm884, %v1846, 0.0
      %s1879 = scalar_lea.vmem %s1, 12
      %v1880 = vld [vmem:[%s1879] sm:$0xf]
      %v1882 = vsel %vm225, %v1847, 0
      %v1885 = vsel %vm225, %v1848, 0
      %v1888 = vsel %vm225, %v1849, 0
      %v1891 = vsel %vm225, %v1850, 0
      %v1894 = vsel %vm225, %v1851, 0
      %v1897 = vsel %vm225, %v1852, 0
      %v1900 = vsel %vm225, %v1853, 0
      %v1903 = vsel %vm225, %v1854, 0
      %v1906 = vsel %vm225, %v1855, 0
      %v1909 = vsel %vm225, %v1856, 0
      %v1912 = vsel %vm225, %v1857, 0
      %v1915 = vsel %vm225, %v1858, 0
      %v1918 = vsel %vm225, %v1859, 0
      %v1921 = vsel %vm225, %v1860, 0
      %v1924 = vsel %vm225, %v1861, 0
      %v1927 = vsel %vm225, %v1862, 0
      %v1930 = vsel %vm225, %v1863, 0
      %v1933 = vsel %vm225, %v1864, 0
      %v1936 = vsel %vm225, %v1865, 0
      %v1939 = vsel %vm225, %v1866, 0
      %v1942 = vsel %vm225, %v1867, 0
      %v1945 = vsel %vm225, %v1868, 0
      %v1948 = vsel %vm225, %v1869, 0
      %v1951 = vsel %vm225, %v1870, 0
      %v1954 = vsel %vm225, %v1871, 0
      %v1957 = vsel %vm225, %v1872, 0
      %v1960 = vsel %vm225, %v1873, 0
      %v1963 = vsel %vm225, %v1874, 0
      %v1966 = vsel %vm225, %v1875, 0
      %v1969 = vsel %vm225, %v1876, 0
      %v1972 = vsel %vm225, %v1877, 0
      %v1975 = vsel %vm225, %v1878, 0
      %v1978 = vsel %vm1014, %v1880, 0
      %1980 = vmatpush.msra.mxu0 0.0
      %1981 = vmatpush.msra.mxu0 0.0
      %1982 = vmatpush.msra.mxu0 0.0
      %1983 = vmatpush.msra.mxu0 0.0
      %1984 = vmatpush.msra.mxu0 0.0
      %1985 = vmatpush.msra.mxu0 0.0
      %1986 = vmatpush.msra.mxu0 0.0
      %1987 = vmatpush.msra.mxu0 0.0
      %1988 = vmatpush.msra.mxu0 0.0
      %1989 = vmatpush.msra.mxu0 0.0
      %1990 = vmatpush.msra.mxu0 0.0
      %1991 = vmatpush.msra.mxu0 0.0
      %1992 = vmatpush.msra.mxu0 0.0
      %1993 = vmatpush.msra.mxu0 0.0
      %1994 = vmatpush.msra.mxu0 0.0
      %1995 = vmatpush.msra.mxu0 %v1978
      %1996 = vmatmul.f32.gmra.mxu0 %v1882
      %v1997 = vpop.f32.mrf.mxu0
      %v1998 = vadd.f32 0.0, %v1997
      %1999 = vmatmul.f32.gmra.mxu0 %v1885
      %v2000 = vpop.f32.mrf.mxu0
      %v2001 = vadd.f32 0.0, %v2000
      %2002 = vmatmul.f32.gmra.mxu0 %v1888
      %v2003 = vpop.f32.mrf.mxu0
      %v2004 = vadd.f32 0.0, %v2003
      %2005 = vmatmul.f32.gmra.mxu0 %v1891
      %v2006 = vpop.f32.mrf.mxu0
      %v2007 = vadd.f32 0.0, %v2006
      %2008 = vmatmul.f32.gmra.mxu0 %v1894
      %v2009 = vpop.f32.mrf.mxu0
      %v2010 = vadd.f32 0.0, %v2009
      %2011 = vmatmul.f32.gmra.mxu0 %v1897
      %v2012 = vpop.f32.mrf.mxu0
      %v2013 = vadd.f32 0.0, %v2012
      %2014 = vmatmul.f32.gmra.mxu0 %v1900
      %v2015 = vpop.f32.mrf.mxu0
      %v2016 = vadd.f32 0.0, %v2015
      %2017 = vmatmul.f32.gmra.mxu0 %v1903
      %v2018 = vpop.f32.mrf.mxu0
      %v2019 = vadd.f32 0.0, %v2018
      %2020 = vmatmul.f32.gmra.mxu0 %v1906
      %v2021 = vpop.f32.mrf.mxu0
      %v2022 = vadd.f32 0.0, %v2021
      %2023 = vmatmul.f32.gmra.mxu0 %v1909
      %v2024 = vpop.f32.mrf.mxu0
      %v2025 = vadd.f32 0.0, %v2024
      %2026 = vmatmul.f32.gmra.mxu0 %v1912
      %v2027 = vpop.f32.mrf.mxu0
      %v2028 = vadd.f32 0.0, %v2027
      %2029 = vmatmul.f32.gmra.mxu0 %v1915
      %v2030 = vpop.f32.mrf.mxu0
      %v2031 = vadd.f32 0.0, %v2030
      %2032 = vmatmul.f32.gmra.mxu0 %v1918
      %v2033 = vpop.f32.mrf.mxu0
      %v2034 = vadd.f32 0.0, %v2033
      %2035 = vmatmul.f32.gmra.mxu0 %v1921
      %v2036 = vpop.f32.mrf.mxu0
      %v2037 = vadd.f32 0.0, %v2036
      %2038 = vmatmul.f32.gmra.mxu0 %v1924
      %v2039 = vpop.f32.mrf.mxu0
      %v2040 = vadd.f32 0.0, %v2039
      %2041 = vmatmul.f32.gmra.mxu0 %v1927
      %v2042 = vpop.f32.mrf.mxu0
      %v2043 = vadd.f32 0.0, %v2042
      %2044 = vmatmul.f32.gmra.mxu0 %v1930
      %v2045 = vpop.f32.mrf.mxu0
      %v2046 = vadd.f32 0.0, %v2045
      %2047 = vmatmul.f32.gmra.mxu0 %v1933
      %v2048 = vpop.f32.mrf.mxu0
      %v2049 = vadd.f32 0.0, %v2048
      %2050 = vmatmul.f32.gmra.mxu0 %v1936
      %v2051 = vpop.f32.mrf.mxu0
      %v2052 = vadd.f32 0.0, %v2051
      %2053 = vmatmul.f32.gmra.mxu0 %v1939
      %v2054 = vpop.f32.mrf.mxu0
      %v2055 = vadd.f32 0.0, %v2054
      %2056 = vmatmul.f32.gmra.mxu0 %v1942
      %v2057 = vpop.f32.mrf.mxu0
      %v2058 = vadd.f32 0.0, %v2057
      %2059 = vmatmul.f32.gmra.mxu0 %v1945
      %v2060 = vpop.f32.mrf.mxu0
      %v2061 = vadd.f32 0.0, %v2060
      %2062 = vmatmul.f32.gmra.mxu0 %v1948
      %v2063 = vpop.f32.mrf.mxu0
      %v2064 = vadd.f32 0.0, %v2063
      %2065 = vmatmul.f32.gmra.mxu0 %v1951
      %v2066 = vpop.f32.mrf.mxu0
      %v2067 = vadd.f32 0.0, %v2066
      %2068 = vmatmul.f32.gmra.mxu0 %v1954
      %v2069 = vpop.f32.mrf.mxu0
      %v2070 = vadd.f32 0.0, %v2069
      %2071 = vmatmul.f32.gmra.mxu0 %v1957
      %v2072 = vpop.f32.mrf.mxu0
      %v2073 = vadd.f32 0.0, %v2072
      %2074 = vmatmul.f32.gmra.mxu0 %v1960
      %v2075 = vpop.f32.mrf.mxu0
      %v2076 = vadd.f32 0.0, %v2075
      %2077 = vmatmul.f32.gmra.mxu0 %v1963
      %v2078 = vpop.f32.mrf.mxu0
      %v2079 = vadd.f32 0.0, %v2078
      %2080 = vmatmul.f32.gmra.mxu0 %v1966
      %v2081 = vpop.f32.mrf.mxu0
      %v2082 = vadd.f32 0.0, %v2081
      %2083 = vmatmul.f32.gmra.mxu0 %v1969
      %v2084 = vpop.f32.mrf.mxu0
      %v2085 = vadd.f32 0.0, %v2084
      %2086 = vmatmul.f32.gmra.mxu0 %v1972
      %v2087 = vpop.f32.mrf.mxu0
      %v2088 = vadd.f32 0.0, %v2087
      %2089 = vmatmul.f32.gmra.mxu0 %v1975
      %v2090 = vpop.f32.mrf.mxu0
      %v2091 = vadd.f32 0.0, %v2090
      %2092 = vdwg.mxu0
      %v2093 = vadd.f32 %v1783, %v1998
      %v2094 = vadd.f32 %v1784, %v2001
      %v2095 = vadd.f32 %v1785, %v2004
      %v2096 = vadd.f32 %v1786, %v2007
      %v2097 = vadd.f32 %v1787, %v2010
      %v2098 = vadd.f32 %v1788, %v2013
      %v2099 = vadd.f32 %v1789, %v2016
      %v2100 = vadd.f32 %v1790, %v2019
      %v2101 = vadd.f32 %v1791, %v2022
      %v2102 = vadd.f32 %v1792, %v2025
      %v2103 = vadd.f32 %v1793, %v2028
      %v2104 = vadd.f32 %v1794, %v2031
      %v2105 = vadd.f32 %v1795, %v2034
      %v2106 = vadd.f32 %v1796, %v2037
      %v2107 = vadd.f32 %v1797, %v2040
      %v2108 = vadd.f32 %v1798, %v2043
      %v2109 = vadd.f32 %v1799, %v2046
      %v2110 = vadd.f32 %v1800, %v2049
      %v2111 = vadd.f32 %v1801, %v2052
      %v2112 = vadd.f32 %v1802, %v2055
      %v2113 = vadd.f32 %v1803, %v2058
      %v2114 = vadd.f32 %v1804, %v2061
      %v2115 = vadd.f32 %v1805, %v2064
      %v2116 = vadd.f32 %v1806, %v2067
      %v2117 = vadd.f32 %v1807, %v2070
      %v2118 = vadd.f32 %v1808, %v2073
      %v2119 = vadd.f32 %v1809, %v2076
      %v2120 = vadd.f32 %v1810, %v2079
      %v2121 = vadd.f32 %v1811, %v2082
      %v2122 = vadd.f32 %v1812, %v2085
      %v2123 = vadd.f32 %v1813, %v2088
      %v2124 = vadd.f32 %v1814, %v2091
      %v2125 = vld [vmem:[#allocation2 + $0x11] sm:$0xff]
      %v2126 = vld [vmem:[#allocation2 + $0x19] sm:$0xff]
      %v2127 = vld [vmem:[#allocation2 + $0x21] sm:$0xff]
      %v2128 = vld [vmem:[#allocation2 + $0x29] sm:$0xff]
      %v2129 = vld [vmem:[#allocation2 + $0x31] sm:$0xff]
      %v2130 = vld [vmem:[#allocation2 + $0x39] sm:$0xff]
      %v2131 = vld [vmem:[#allocation2 + $0x41] sm:$0xff]
      %v2132 = vld [vmem:[#allocation2 + $0x49] sm:$0xff]
      %v2133 = vld [vmem:[#allocation2 + $0x51] sm:$0xff]
      %v2134 = vld [vmem:[#allocation2 + $0x59] sm:$0xff]
      %v2135 = vld [vmem:[#allocation2 + $0x61] sm:$0xff]
      %v2136 = vld [vmem:[#allocation2 + $0x69] sm:$0xff]
      %v2137 = vld [vmem:[#allocation2 + $0x71] sm:$0xff]
      %v2138 = vld [vmem:[#allocation2 + $0x79] sm:$0xff]
      %v2139 = vld [vmem:[#allocation2 + $0x81] sm:$0xff]
      %v2140 = vld [vmem:[#allocation2 + $0x89] sm:$0xff]
      %v2141 = vld [vmem:[#allocation2 + $0x91] sm:$0xff]
      %v2142 = vld [vmem:[#allocation2 + $0x99] sm:$0xff]
      %v2143 = vld [vmem:[#allocation2 + $0xa1] sm:$0xff]
      %v2144 = vld [vmem:[#allocation2 + $0xa9] sm:$0xff]
      %v2145 = vld [vmem:[#allocation2 + $0xb1] sm:$0xff]
      %v2146 = vld [vmem:[#allocation2 + $0xb9] sm:$0xff]
      %v2147 = vld [vmem:[#allocation2 + $0xc1] sm:$0xff]
      %v2148 = vld [vmem:[#allocation2 + $0xc9] sm:$0xff]
      %v2149 = vld [vmem:[#allocation2 + $0xd1] sm:$0xff]
      %v2150 = vld [vmem:[#allocation2 + $0xd9] sm:$0xff]
      %v2151 = vld [vmem:[#allocation2 + $0xe1] sm:$0xff]
      %v2152 = vld [vmem:[#allocation2 + $0xe9] sm:$0xff]
      %v2153 = vld [vmem:[#allocation2 + $0xf1] sm:$0xff]
      %v2154 = vld [vmem:[#allocation2 + $0xf9] sm:$0xff]
      %v2155 = vld [vmem:[#allocation2 + $0x101] sm:$0xff]
      %v2156 = vld [vmem:[#allocation2 + $0x109] sm:$0xff]
      %s2157 = scalar_lea.vmem %s1, 16
      %v2158 = vld [vmem:[%s2157] sm:$0xf]
      %v2160 = vsel %vm225, %v2125, 0
      %v2163 = vsel %vm225, %v2126, 0
      %v2166 = vsel %vm225, %v2127, 0
      %v2169 = vsel %vm225, %v2128, 0
      %v2172 = vsel %vm225, %v2129, 0
      %v2175 = vsel %vm225, %v2130, 0
      %v2178 = vsel %vm225, %v2131, 0
      %v2181 = vsel %vm225, %v2132, 0
      %v2184 = vsel %vm225, %v2133, 0
      %v2187 = vsel %vm225, %v2134, 0
      %v2190 = vsel %vm225, %v2135, 0
      %v2193 = vsel %vm225, %v2136, 0
      %v2196 = vsel %vm225, %v2137, 0
      %v2199 = vsel %vm225, %v2138, 0
      %v2202 = vsel %vm225, %v2139, 0
      %v2205 = vsel %vm225, %v2140, 0
      %v2208 = vsel %vm225, %v2141, 0
      %v2211 = vsel %vm225, %v2142, 0
      %v2214 = vsel %vm225, %v2143, 0
      %v2217 = vsel %vm225, %v2144, 0
      %v2220 = vsel %vm225, %v2145, 0
      %v2223 = vsel %vm225, %v2146, 0
      %v2226 = vsel %vm225, %v2147, 0
      %v2229 = vsel %vm225, %v2148, 0
      %v2232 = vsel %vm225, %v2149, 0
      %v2235 = vsel %vm225, %v2150, 0
      %v2238 = vsel %vm225, %v2151, 0
      %v2241 = vsel %vm225, %v2152, 0
      %v2244 = vsel %vm225, %v2153, 0
      %v2247 = vsel %vm225, %v2154, 0
      %v2250 = vsel %vm225, %v2155, 0
      %v2253 = vsel %vm225, %v2156, 0
      %v2256 = vsel %vm1014, %v2158, 0
      %2258 = vmatpush.msra.mxu0 0.0
      %2259 = vmatpush.msra.mxu0 0.0
      %2260 = vmatpush.msra.mxu0 0.0
      %2261 = vmatpush.msra.mxu0 0.0
      %2262 = vmatpush.msra.mxu0 0.0
      %2263 = vmatpush.msra.mxu0 0.0
      %2264 = vmatpush.msra.mxu0 0.0
      %2265 = vmatpush.msra.mxu0 0.0
      %2266 = vmatpush.msra.mxu0 0.0
      %2267 = vmatpush.msra.mxu0 0.0
      %2268 = vmatpush.msra.mxu0 0.0
      %2269 = vmatpush.msra.mxu0 0.0
      %2270 = vmatpush.msra.mxu0 0.0
      %2271 = vmatpush.msra.mxu0 0.0
      %2272 = vmatpush.msra.mxu0 0.0
      %2273 = vmatpush.msra.mxu0 %v2256
      %2274 = vmatmul.f32.gmra.mxu0 %v2160
      %v2275 = vpop.f32.mrf.mxu0
      %v2276 = vadd.f32 0.0, %v2275
      %2277 = vmatmul.f32.gmra.mxu0 %v2163
      %v2278 = vpop.f32.mrf.mxu0
      %v2279 = vadd.f32 0.0, %v2278
      %2280 = vmatmul.f32.gmra.mxu0 %v2166
      %v2281 = vpop.f32.mrf.mxu0
      %v2282 = vadd.f32 0.0, %v2281
      %2283 = vmatmul.f32.gmra.mxu0 %v2169
      %v2284 = vpop.f32.mrf.mxu0
      %v2285 = vadd.f32 0.0, %v2284
      %2286 = vmatmul.f32.gmra.mxu0 %v2172
      %v2287 = vpop.f32.mrf.mxu0
      %v2288 = vadd.f32 0.0, %v2287
      %2289 = vmatmul.f32.gmra.mxu0 %v2175
      %v2290 = vpop.f32.mrf.mxu0
      %v2291 = vadd.f32 0.0, %v2290
      %2292 = vmatmul.f32.gmra.mxu0 %v2178
      %v2293 = vpop.f32.mrf.mxu0
      %v2294 = vadd.f32 0.0, %v2293
      %2295 = vmatmul.f32.gmra.mxu0 %v2181
      %v2296 = vpop.f32.mrf.mxu0
      %v2297 = vadd.f32 0.0, %v2296
      %2298 = vmatmul.f32.gmra.mxu0 %v2184
      %v2299 = vpop.f32.mrf.mxu0
      %v2300 = vadd.f32 0.0, %v2299
      %2301 = vmatmul.f32.gmra.mxu0 %v2187
      %v2302 = vpop.f32.mrf.mxu0
      %v2303 = vadd.f32 0.0, %v2302
      %2304 = vmatmul.f32.gmra.mxu0 %v2190
      %v2305 = vpop.f32.mrf.mxu0
      %v2306 = vadd.f32 0.0, %v2305
      %2307 = vmatmul.f32.gmra.mxu0 %v2193
      %v2308 = vpop.f32.mrf.mxu0
      %v2309 = vadd.f32 0.0, %v2308
      %2310 = vmatmul.f32.gmra.mxu0 %v2196
      %v2311 = vpop.f32.mrf.mxu0
      %v2312 = vadd.f32 0.0, %v2311
      %2313 = vmatmul.f32.gmra.mxu0 %v2199
      %v2314 = vpop.f32.mrf.mxu0
      %v2315 = vadd.f32 0.0, %v2314
      %2316 = vmatmul.f32.gmra.mxu0 %v2202
      %v2317 = vpop.f32.mrf.mxu0
      %v2318 = vadd.f32 0.0, %v2317
      %2319 = vmatmul.f32.gmra.mxu0 %v2205
      %v2320 = vpop.f32.mrf.mxu0
      %v2321 = vadd.f32 0.0, %v2320
      %2322 = vmatmul.f32.gmra.mxu0 %v2208
      %v2323 = vpop.f32.mrf.mxu0
      %v2324 = vadd.f32 0.0, %v2323
      %2325 = vmatmul.f32.gmra.mxu0 %v2211
      %v2326 = vpop.f32.mrf.mxu0
      %v2327 = vadd.f32 0.0, %v2326
      %2328 = vmatmul.f32.gmra.mxu0 %v2214
      %v2329 = vpop.f32.mrf.mxu0
      %v2330 = vadd.f32 0.0, %v2329
      %2331 = vmatmul.f32.gmra.mxu0 %v2217
      %v2332 = vpop.f32.mrf.mxu0
      %v2333 = vadd.f32 0.0, %v2332
      %2334 = vmatmul.f32.gmra.mxu0 %v2220
      %v2335 = vpop.f32.mrf.mxu0
      %v2336 = vadd.f32 0.0, %v2335
      %2337 = vmatmul.f32.gmra.mxu0 %v2223
      %v2338 = vpop.f32.mrf.mxu0
      %v2339 = vadd.f32 0.0, %v2338
      %2340 = vmatmul.f32.gmra.mxu0 %v2226
      %v2341 = vpop.f32.mrf.mxu0
      %v2342 = vadd.f32 0.0, %v2341
      %2343 = vmatmul.f32.gmra.mxu0 %v2229
      %v2344 = vpop.f32.mrf.mxu0
      %v2345 = vadd.f32 0.0, %v2344
      %2346 = vmatmul.f32.gmra.mxu0 %v2232
      %v2347 = vpop.f32.mrf.mxu0
      %v2348 = vadd.f32 0.0, %v2347
      %2349 = vmatmul.f32.gmra.mxu0 %v2235
      %v2350 = vpop.f32.mrf.mxu0
      %v2351 = vadd.f32 0.0, %v2350
      %2352 = vmatmul.f32.gmra.mxu0 %v2238
      %v2353 = vpop.f32.mrf.mxu0
      %v2354 = vadd.f32 0.0, %v2353
      %2355 = vmatmul.f32.gmra.mxu0 %v2241
      %v2356 = vpop.f32.mrf.mxu0
      %v2357 = vadd.f32 0.0, %v2356
      %2358 = vmatmul.f32.gmra.mxu0 %v2244
      %v2359 = vpop.f32.mrf.mxu0
      %v2360 = vadd.f32 0.0, %v2359
      %2361 = vmatmul.f32.gmra.mxu0 %v2247
      %v2362 = vpop.f32.mrf.mxu0
      %v2363 = vadd.f32 0.0, %v2362
      %2364 = vmatmul.f32.gmra.mxu0 %v2250
      %v2365 = vpop.f32.mrf.mxu0
      %v2366 = vadd.f32 0.0, %v2365
      %2367 = vmatmul.f32.gmra.mxu0 %v2253
      %v2368 = vpop.f32.mrf.mxu0
      %v2369 = vadd.f32 0.0, %v2368
      %2370 = vdwg.mxu0
      %v2371 = vadd.f32 %v2093, %v2276
      %v2372 = vadd.f32 %v2094, %v2279
      %v2373 = vadd.f32 %v2095, %v2282
      %v2374 = vadd.f32 %v2096, %v2285
      %v2375 = vadd.f32 %v2097, %v2288
      %v2376 = vadd.f32 %v2098, %v2291
      %v2377 = vadd.f32 %v2099, %v2294
      %v2378 = vadd.f32 %v2100, %v2297
      %v2379 = vadd.f32 %v2101, %v2300
      %v2380 = vadd.f32 %v2102, %v2303
      %v2381 = vadd.f32 %v2103, %v2306
      %v2382 = vadd.f32 %v2104, %v2309
      %v2383 = vadd.f32 %v2105, %v2312
      %v2384 = vadd.f32 %v2106, %v2315
      %v2385 = vadd.f32 %v2107, %v2318
      %v2386 = vadd.f32 %v2108, %v2321
      %v2387 = vadd.f32 %v2109, %v2324
      %v2388 = vadd.f32 %v2110, %v2327
      %v2389 = vadd.f32 %v2111, %v2330
      %v2390 = vadd.f32 %v2112, %v2333
      %v2391 = vadd.f32 %v2113, %v2336
      %v2392 = vadd.f32 %v2114, %v2339
      %v2393 = vadd.f32 %v2115, %v2342
      %v2394 = vadd.f32 %v2116, %v2345
      %v2395 = vadd.f32 %v2117, %v2348
      %v2396 = vadd.f32 %v2118, %v2351
      %v2397 = vadd.f32 %v2119, %v2354
      %v2398 = vadd.f32 %v2120, %v2357
      %v2399 = vadd.f32 %v2121, %v2360
      %v2400 = vadd.f32 %v2122, %v2363
      %v2401 = vadd.f32 %v2123, %v2366
      %v2402 = vadd.f32 %v2124, %v2369
      %v2403 = vld [vmem:[#allocation2 + $0x12] sm:$0xff]
      %v2404 = vld [vmem:[#allocation2 + $0x1a] sm:$0xff]
      %v2405 = vld [vmem:[#allocation2 + $0x22] sm:$0xff]
      %v2406 = vld [vmem:[#allocation2 + $0x2a] sm:$0xff]
      %v2407 = vld [vmem:[#allocation2 + $0x32] sm:$0xff]
      %v2408 = vld [vmem:[#allocation2 + $0x3a] sm:$0xff]
      %v2409 = vld [vmem:[#allocation2 + $0x42] sm:$0xff]
      %v2410 = vld [vmem:[#allocation2 + $0x4a] sm:$0xff]
      %v2411 = vld [vmem:[#allocation2 + $0x52] sm:$0xff]
      %v2412 = vld [vmem:[#allocation2 + $0x5a] sm:$0xff]
      %v2413 = vld [vmem:[#allocation2 + $0x62] sm:$0xff]
      %v2414 = vld [vmem:[#allocation2 + $0x6a] sm:$0xff]
      %v2415 = vld [vmem:[#allocation2 + $0x72] sm:$0xff]
      %v2416 = vld [vmem:[#allocation2 + $0x7a] sm:$0xff]
      %v2417 = vld [vmem:[#allocation2 + $0x82] sm:$0xff]
      %v2418 = vld [vmem:[#allocation2 + $0x8a] sm:$0xff]
      %v2419 = vld [vmem:[#allocation2 + $0x92] sm:$0xff]
      %v2420 = vld [vmem:[#allocation2 + $0x9a] sm:$0xff]
      %v2421 = vld [vmem:[#allocation2 + $0xa2] sm:$0xff]
      %v2422 = vld [vmem:[#allocation2 + $0xaa] sm:$0xff]
      %v2423 = vld [vmem:[#allocation2 + $0xb2] sm:$0xff]
      %v2424 = vld [vmem:[#allocation2 + $0xba] sm:$0xff]
      %v2425 = vld [vmem:[#allocation2 + $0xc2] sm:$0xff]
      %v2426 = vld [vmem:[#allocation2 + $0xca] sm:$0xff]
      %v2427 = vld [vmem:[#allocation2 + $0xd2] sm:$0xff]
      %v2428 = vld [vmem:[#allocation2 + $0xda] sm:$0xff]
      %v2429 = vld [vmem:[#allocation2 + $0xe2] sm:$0xff]
      %v2430 = vld [vmem:[#allocation2 + $0xea] sm:$0xff]
      %v2431 = vld [vmem:[#allocation2 + $0xf2] sm:$0xff]
      %v2432 = vld [vmem:[#allocation2 + $0xfa] sm:$0xff]
      %v2433 = vld [vmem:[#allocation2 + $0x102] sm:$0xff]
      %v2434 = vld [vmem:[#allocation2 + $0x10a] sm:$0xff]
      %v2435 = vsel %vm1505, %v2403, 0.0
      %v2436 = vsel %vm1506, %v2404, 0.0
      %v2437 = vsel %vm1507, %v2405, 0.0
      %v2438 = vsel %vm1508, %v2406, 0.0
      %v2439 = vsel %vm1509, %v2407, 0.0
      %v2440 = vsel %vm1510, %v2408, 0.0
      %v2441 = vsel %vm1511, %v2409, 0.0
      %v2442 = vsel %vm1512, %v2410, 0.0
      %v2443 = vsel %vm1513, %v2411, 0.0
      %v2444 = vsel %vm1514, %v2412, 0.0
      %v2445 = vsel %vm1515, %v2413, 0.0
      %v2446 = vsel %vm1516, %v2414, 0.0
      %v2447 = vsel %vm1517, %v2415, 0.0
      %v2448 = vsel %vm1518, %v2416, 0.0
      %v2449 = vsel %vm1519, %v2417, 0.0
      %v2450 = vsel %vm1520, %v2418, 0.0
      %v2451 = vsel %vm1521, %v2419, 0.0
      %v2452 = vsel %vm1522, %v2420, 0.0
      %v2453 = vsel %vm1523, %v2421, 0.0
      %v2454 = vsel %vm1524, %v2422, 0.0
      %v2455 = vsel %vm1525, %v2423, 0.0
      %v2456 = vsel %vm1526, %v2424, 0.0
      %v2457 = vsel %vm1527, %v2425, 0.0
      %v2458 = vsel %vm1528, %v2426, 0.0
      %v2459 = vsel %vm1529, %v2427, 0.0
      %v2460 = vsel %vm1530, %v2428, 0.0
      %v2461 = vsel %vm1531, %v2429, 0.0
      %v2462 = vsel %vm1532, %v2430, 0.0
      %v2463 = vsel %vm1533, %v2431, 0.0
      %v2464 = vsel %vm1534, %v2432, 0.0
      %v2465 = vsel %vm1535, %v2433, 0.0
      %v2466 = vsel %vm1536, %v2434, 0.0
      %s2467 = scalar_lea.vmem %s1, 20
      %v2468 = vld [vmem:[%s2467] sm:$0xf]
      %v2470 = vsel %vm225, %v2435, 0
      %v2473 = vsel %vm225, %v2436, 0
      %v2476 = vsel %vm225, %v2437, 0
      %v2479 = vsel %vm225, %v2438, 0
      %v2482 = vsel %vm225, %v2439, 0
      %v2485 = vsel %vm225, %v2440, 0
      %v2488 = vsel %vm225, %v2441, 0
      %v2491 = vsel %vm225, %v2442, 0
      %v2494 = vsel %vm225, %v2443, 0
      %v2497 = vsel %vm225, %v2444, 0
      %v2500 = vsel %vm225, %v2445, 0
      %v2503 = vsel %vm225, %v2446, 0
      %v2506 = vsel %vm225, %v2447, 0
      %v2509 = vsel %vm225, %v2448, 0
      %v2512 = vsel %vm225, %v2449, 0
      %v2515 = vsel %vm225, %v2450, 0
      %v2518 = vsel %vm225, %v2451, 0
      %v2521 = vsel %vm225, %v2452, 0
      %v2524 = vsel %vm225, %v2453, 0
      %v2527 = vsel %vm225, %v2454, 0
      %v2530 = vsel %vm225, %v2455, 0
      %v2533 = vsel %vm225, %v2456, 0
      %v2536 = vsel %vm225, %v2457, 0
      %v2539 = vsel %vm225, %v2458, 0
      %v2542 = vsel %vm225, %v2459, 0
      %v2545 = vsel %vm225, %v2460, 0
      %v2548 = vsel %vm225, %v2461, 0
      %v2551 = vsel %vm225, %v2462, 0
      %v2554 = vsel %vm225, %v2463, 0
      %v2557 = vsel %vm225, %v2464, 0
      %v2560 = vsel %vm225, %v2465, 0
      %v2563 = vsel %vm225, %v2466, 0
      %v2566 = vsel %vm1014, %v2468, 0
      %2568 = vmatpush.msra.mxu0 0.0
      %2569 = vmatpush.msra.mxu0 0.0
      %2570 = vmatpush.msra.mxu0 0.0
      %2571 = vmatpush.msra.mxu0 0.0
      %2572 = vmatpush.msra.mxu0 0.0
      %2573 = vmatpush.msra.mxu0 0.0
      %2574 = vmatpush.msra.mxu0 0.0
      %2575 = vmatpush.msra.mxu0 0.0
      %2576 = vmatpush.msra.mxu0 0.0
      %2577 = vmatpush.msra.mxu0 0.0
      %2578 = vmatpush.msra.mxu0 0.0
      %2579 = vmatpush.msra.mxu0 0.0
      %2580 = vmatpush.msra.mxu0 0.0
      %2581 = vmatpush.msra.mxu0 0.0
      %2582 = vmatpush.msra.mxu0 0.0
      %2583 = vmatpush.msra.mxu0 %v2566
      %2584 = vmatmul.f32.gmra.mxu0 %v2470
      %v2585 = vpop.f32.mrf.mxu0
      %v2586 = vadd.f32 0.0, %v2585
      %2587 = vmatmul.f32.gmra.mxu0 %v2473
      %v2588 = vpop.f32.mrf.mxu0
      %v2589 = vadd.f32 0.0, %v2588
      %2590 = vmatmul.f32.gmra.mxu0 %v2476
      %v2591 = vpop.f32.mrf.mxu0
      %v2592 = vadd.f32 0.0, %v2591
      %2593 = vmatmul.f32.gmra.mxu0 %v2479
      %v2594 = vpop.f32.mrf.mxu0
      %v2595 = vadd.f32 0.0, %v2594
      %2596 = vmatmul.f32.gmra.mxu0 %v2482
      %v2597 = vpop.f32.mrf.mxu0
      %v2598 = vadd.f32 0.0, %v2597
      %2599 = vmatmul.f32.gmra.mxu0 %v2485
      %v2600 = vpop.f32.mrf.mxu0
      %v2601 = vadd.f32 0.0, %v2600
      %2602 = vmatmul.f32.gmra.mxu0 %v2488
      %v2603 = vpop.f32.mrf.mxu0
      %v2604 = vadd.f32 0.0, %v2603
      %2605 = vmatmul.f32.gmra.mxu0 %v2491
      %v2606 = vpop.f32.mrf.mxu0
      %v2607 = vadd.f32 0.0, %v2606
      %2608 = vmatmul.f32.gmra.mxu0 %v2494
      %v2609 = vpop.f32.mrf.mxu0
      %v2610 = vadd.f32 0.0, %v2609
      %2611 = vmatmul.f32.gmra.mxu0 %v2497
      %v2612 = vpop.f32.mrf.mxu0
      %v2613 = vadd.f32 0.0, %v2612
      %2614 = vmatmul.f32.gmra.mxu0 %v2500
      %v2615 = vpop.f32.mrf.mxu0
      %v2616 = vadd.f32 0.0, %v2615
      %2617 = vmatmul.f32.gmra.mxu0 %v2503
      %v2618 = vpop.f32.mrf.mxu0
      %v2619 = vadd.f32 0.0, %v2618
      %2620 = vmatmul.f32.gmra.mxu0 %v2506
      %v2621 = vpop.f32.mrf.mxu0
      %v2622 = vadd.f32 0.0, %v2621
      %2623 = vmatmul.f32.gmra.mxu0 %v2509
      %v2624 = vpop.f32.mrf.mxu0
      %v2625 = vadd.f32 0.0, %v2624
      %2626 = vmatmul.f32.gmra.mxu0 %v2512
      %v2627 = vpop.f32.mrf.mxu0
      %v2628 = vadd.f32 0.0, %v2627
      %2629 = vmatmul.f32.gmra.mxu0 %v2515
      %v2630 = vpop.f32.mrf.mxu0
      %v2631 = vadd.f32 0.0, %v2630
      %2632 = vmatmul.f32.gmra.mxu0 %v2518
      %v2633 = vpop.f32.mrf.mxu0
      %v2634 = vadd.f32 0.0, %v2633
      %2635 = vmatmul.f32.gmra.mxu0 %v2521
      %v2636 = vpop.f32.mrf.mxu0
      %v2637 = vadd.f32 0.0, %v2636
      %2638 = vmatmul.f32.gmra.mxu0 %v2524
      %v2639 = vpop.f32.mrf.mxu0
      %v2640 = vadd.f32 0.0, %v2639
      %2641 = vmatmul.f32.gmra.mxu0 %v2527
      %v2642 = vpop.f32.mrf.mxu0
      %v2643 = vadd.f32 0.0, %v2642
      %2644 = vmatmul.f32.gmra.mxu0 %v2530
      %v2645 = vpop.f32.mrf.mxu0
      %v2646 = vadd.f32 0.0, %v2645
      %2647 = vmatmul.f32.gmra.mxu0 %v2533
      %v2648 = vpop.f32.mrf.mxu0
      %v2649 = vadd.f32 0.0, %v2648
      %2650 = vmatmul.f32.gmra.mxu0 %v2536
      %v2651 = vpop.f32.mrf.mxu0
      %v2652 = vadd.f32 0.0, %v2651
      %2653 = vmatmul.f32.gmra.mxu0 %v2539
      %v2654 = vpop.f32.mrf.mxu0
      %v2655 = vadd.f32 0.0, %v2654
      %2656 = vmatmul.f32.gmra.mxu0 %v2542
      %v2657 = vpop.f32.mrf.mxu0
      %v2658 = vadd.f32 0.0, %v2657
      %2659 = vmatmul.f32.gmra.mxu0 %v2545
      %v2660 = vpop.f32.mrf.mxu0
      %v2661 = vadd.f32 0.0, %v2660
      %2662 = vmatmul.f32.gmra.mxu0 %v2548
      %v2663 = vpop.f32.mrf.mxu0
      %v2664 = vadd.f32 0.0, %v2663
      %2665 = vmatmul.f32.gmra.mxu0 %v2551
      %v2666 = vpop.f32.mrf.mxu0
      %v2667 = vadd.f32 0.0, %v2666
      %2668 = vmatmul.f32.gmra.mxu0 %v2554
      %v2669 = vpop.f32.mrf.mxu0
      %v2670 = vadd.f32 0.0, %v2669
      %2671 = vmatmul.f32.gmra.mxu0 %v2557
      %v2672 = vpop.f32.mrf.mxu0
      %v2673 = vadd.f32 0.0, %v2672
      %2674 = vmatmul.f32.gmra.mxu0 %v2560
      %v2675 = vpop.f32.mrf.mxu0
      %v2676 = vadd.f32 0.0, %v2675
      %2677 = vmatmul.f32.gmra.mxu0 %v2563
      %v2678 = vpop.f32.mrf.mxu0
      %v2679 = vadd.f32 0.0, %v2678
      %2680 = vdwg.mxu0
      %v2681 = vadd.f32 %v2371, %v2586
      %v2682 = vadd.f32 %v2372, %v2589
      %v2683 = vadd.f32 %v2373, %v2592
      %v2684 = vadd.f32 %v2374, %v2595
      %v2685 = vadd.f32 %v2375, %v2598
      %v2686 = vadd.f32 %v2376, %v2601
      %v2687 = vadd.f32 %v2377, %v2604
      %v2688 = vadd.f32 %v2378, %v2607
      %v2689 = vadd.f32 %v2379, %v2610
      %v2690 = vadd.f32 %v2380, %v2613
      %v2691 = vadd.f32 %v2381, %v2616
      %v2692 = vadd.f32 %v2382, %v2619
      %v2693 = vadd.f32 %v2383, %v2622
      %v2694 = vadd.f32 %v2384, %v2625
      %v2695 = vadd.f32 %v2385, %v2628
      %v2696 = vadd.f32 %v2386, %v2631
      %v2697 = vadd.f32 %v2387, %v2634
      %v2698 = vadd.f32 %v2388, %v2637
      %v2699 = vadd.f32 %v2389, %v2640
      %v2700 = vadd.f32 %v2390, %v2643
      %v2701 = vadd.f32 %v2391, %v2646
      %v2702 = vadd.f32 %v2392, %v2649
      %v2703 = vadd.f32 %v2393, %v2652
      %v2704 = vadd.f32 %v2394, %v2655
      %v2705 = vadd.f32 %v2395, %v2658
      %v2706 = vadd.f32 %v2396, %v2661
      %v2707 = vadd.f32 %v2397, %v2664
      %v2708 = vadd.f32 %v2398, %v2667
      %v2709 = vadd.f32 %v2399, %v2670
      %v2710 = vadd.f32 %v2400, %v2673
      %v2711 = vadd.f32 %v2401, %v2676
      %v2712 = vadd.f32 %v2402, %v2679
      %v2713 = vld [vmem:[#allocation2 + $0x20] sm:$0xff]
      %v2714 = vld [vmem:[#allocation2 + $0x28] sm:$0xff]
      %v2715 = vld [vmem:[#allocation2 + $0x30] sm:$0xff]
      %v2716 = vld [vmem:[#allocation2 + $0x38] sm:$0xff]
      %v2717 = vld [vmem:[#allocation2 + $0x40] sm:$0xff]
      %v2718 = vld [vmem:[#allocation2 + $0x48] sm:$0xff]
      %v2719 = vld [vmem:[#allocation2 + $0x50] sm:$0xff]
      %v2720 = vld [vmem:[#allocation2 + $0x58] sm:$0xff]
      %v2721 = vld [vmem:[#allocation2 + $0x60] sm:$0xff]
      %v2722 = vld [vmem:[#allocation2 + $0x68] sm:$0xff]
      %v2723 = vld [vmem:[#allocation2 + $0x70] sm:$0xff]
      %v2724 = vld [vmem:[#allocation2 + $0x78] sm:$0xff]
      %v2725 = vld [vmem:[#allocation2 + $0x80] sm:$0xff]
      %v2726 = vld [vmem:[#allocation2 + $0x88] sm:$0xff]
      %v2727 = vld [vmem:[#allocation2 + $0x90] sm:$0xff]
      %v2728 = vld [vmem:[#allocation2 + $0x98] sm:$0xff]
      %v2729 = vld [vmem:[#allocation2 + $0xa0] sm:$0xff]
      %v2730 = vld [vmem:[#allocation2 + $0xa8] sm:$0xff]
      %v2731 = vld [vmem:[#allocation2 + $0xb0] sm:$0xff]
      %v2732 = vld [vmem:[#allocation2 + $0xb8] sm:$0xff]
      %v2733 = vld [vmem:[#allocation2 + $0xc0] sm:$0xff]
      %v2734 = vld [vmem:[#allocation2 + $0xc8] sm:$0xff]
      %v2735 = vld [vmem:[#allocation2 + $0xd0] sm:$0xff]
      %v2736 = vld [vmem:[#allocation2 + $0xd8] sm:$0xff]
      %v2737 = vld [vmem:[#allocation2 + $0xe0] sm:$0xff]
      %v2738 = vld [vmem:[#allocation2 + $0xe8] sm:$0xff]
      %v2739 = vld [vmem:[#allocation2 + $0xf0] sm:$0xff]
      %v2740 = vld [vmem:[#allocation2 + $0xf8] sm:$0xff]
      %v2741 = vld [vmem:[#allocation2 + $0x100] sm:$0xff]
      %v2742 = vld [vmem:[#allocation2 + $0x108] sm:$0xff]
      %v2743 = vld [vmem:[#allocation2 + $0x110] sm:$0xff]
      %v2744 = vld [vmem:[#allocation2 + $0x118] sm:$0xff]
      %v2745 = vsel %vm853, %v2713, 0.0
      %v2746 = vsel %vm854, %v2714, 0.0
      %v2747 = vsel %vm855, %v2715, 0.0
      %v2748 = vsel %vm856, %v2716, 0.0
      %v2749 = vsel %vm857, %v2717, 0.0
      %v2750 = vsel %vm858, %v2718, 0.0
      %v2751 = vsel %vm859, %v2719, 0.0
      %v2752 = vsel %vm860, %v2720, 0.0
      %v2753 = vsel %vm861, %v2721, 0.0
      %v2754 = vsel %vm862, %v2722, 0.0
      %v2755 = vsel %vm863, %v2723, 0.0
      %v2756 = vsel %vm864, %v2724, 0.0
      %v2757 = vsel %vm865, %v2725, 0.0
      %v2758 = vsel %vm866, %v2726, 0.0
      %v2759 = vsel %vm867, %v2727, 0.0
      %v2760 = vsel %vm868, %v2728, 0.0
      %v2761 = vsel %vm869, %v2729, 0.0
      %v2762 = vsel %vm870, %v2730, 0.0
      %v2763 = vsel %vm871, %v2731, 0.0
      %v2764 = vsel %vm872, %v2732, 0.0
      %v2765 = vsel %vm873, %v2733, 0.0
      %v2766 = vsel %vm874, %v2734, 0.0
      %v2767 = vsel %vm875, %v2735, 0.0
      %v2768 = vsel %vm876, %v2736, 0.0
      %v2769 = vsel %vm877, %v2737, 0.0
      %v2770 = vsel %vm878, %v2738, 0.0
      %v2771 = vsel %vm879, %v2739, 0.0
      %v2772 = vsel %vm880, %v2740, 0.0
      %v2773 = vsel %vm881, %v2741, 0.0
      %v2774 = vsel %vm882, %v2742, 0.0
      %v2775 = vsel %vm883, %v2743, 0.0
      %v2776 = vsel %vm884, %v2744, 0.0
      %s2777 = scalar_lea.vmem %s1, 24
      %v2778 = vld [vmem:[%s2777] sm:$0xf]
      %v2780 = vsel %vm225, %v2745, 0
      %v2783 = vsel %vm225, %v2746, 0
      %v2786 = vsel %vm225, %v2747, 0
      %v2789 = vsel %vm225, %v2748, 0
      %v2792 = vsel %vm225, %v2749, 0
      %v2795 = vsel %vm225, %v2750, 0
      %v2798 = vsel %vm225, %v2751, 0
      %v2801 = vsel %vm225, %v2752, 0
      %v2804 = vsel %vm225, %v2753, 0
      %v2807 = vsel %vm225, %v2754, 0
      %v2810 = vsel %vm225, %v2755, 0
      %v2813 = vsel %vm225, %v2756, 0
      %v2816 = vsel %vm225, %v2757, 0
      %v2819 = vsel %vm225, %v2758, 0
      %v2822 = vsel %vm225, %v2759, 0
      %v2825 = vsel %vm225, %v2760, 0
      %v2828 = vsel %vm225, %v2761, 0
      %v2831 = vsel %vm225, %v2762, 0
      %v2834 = vsel %vm225, %v2763, 0
      %v2837 = vsel %vm225, %v2764, 0
      %v2840 = vsel %vm225, %v2765, 0
      %v2843 = vsel %vm225, %v2766, 0
      %v2846 = vsel %vm225, %v2767, 0
      %v2849 = vsel %vm225, %v2768, 0
      %v2852 = vsel %vm225, %v2769, 0
      %v2855 = vsel %vm225, %v2770, 0
      %v2858 = vsel %vm225, %v2771, 0
      %v2861 = vsel %vm225, %v2772, 0
      %v2864 = vsel %vm225, %v2773, 0
      %v2867 = vsel %vm225, %v2774, 0
      %v2870 = vsel %vm225, %v2775, 0
      %v2873 = vsel %vm225, %v2776, 0
      %v2876 = vsel %vm1014, %v2778, 0
      %2878 = vmatpush.msra.mxu0 0.0
      %2879 = vmatpush.msra.mxu0 0.0
      %2880 = vmatpush.msra.mxu0 0.0
      %2881 = vmatpush.msra.mxu0 0.0
      %2882 = vmatpush.msra.mxu0 0.0
      %2883 = vmatpush.msra.mxu0 0.0
      %2884 = vmatpush.msra.mxu0 0.0
      %2885 = vmatpush.msra.mxu0 0.0
      %2886 = vmatpush.msra.mxu0 0.0
      %2887 = vmatpush.msra.mxu0 0.0
      %2888 = vmatpush.msra.mxu0 0.0
      %2889 = vmatpush.msra.mxu0 0.0
      %2890 = vmatpush.msra.mxu0 0.0
      %2891 = vmatpush.msra.mxu0 0.0
      %2892 = vmatpush.msra.mxu0 0.0
      %2893 = vmatpush.msra.mxu0 %v2876
      %2894 = vmatmul.f32.gmra.mxu0 %v2780
      %v2895 = vpop.f32.mrf.mxu0
      %v2896 = vadd.f32 0.0, %v2895
      %2897 = vmatmul.f32.gmra.mxu0 %v2783
      %v2898 = vpop.f32.mrf.mxu0
      %v2899 = vadd.f32 0.0, %v2898
      %2900 = vmatmul.f32.gmra.mxu0 %v2786
      %v2901 = vpop.f32.mrf.mxu0
      %v2902 = vadd.f32 0.0, %v2901
      %2903 = vmatmul.f32.gmra.mxu0 %v2789
      %v2904 = vpop.f32.mrf.mxu0
      %v2905 = vadd.f32 0.0, %v2904
      %2906 = vmatmul.f32.gmra.mxu0 %v2792
      %v2907 = vpop.f32.mrf.mxu0
      %v2908 = vadd.f32 0.0, %v2907
      %2909 = vmatmul.f32.gmra.mxu0 %v2795
      %v2910 = vpop.f32.mrf.mxu0
      %v2911 = vadd.f32 0.0, %v2910
      %2912 = vmatmul.f32.gmra.mxu0 %v2798
      %v2913 = vpop.f32.mrf.mxu0
      %v2914 = vadd.f32 0.0, %v2913
      %2915 = vmatmul.f32.gmra.mxu0 %v2801
      %v2916 = vpop.f32.mrf.mxu0
      %v2917 = vadd.f32 0.0, %v2916
      %2918 = vmatmul.f32.gmra.mxu0 %v2804
      %v2919 = vpop.f32.mrf.mxu0
      %v2920 = vadd.f32 0.0, %v2919
      %2921 = vmatmul.f32.gmra.mxu0 %v2807
      %v2922 = vpop.f32.mrf.mxu0
      %v2923 = vadd.f32 0.0, %v2922
      %2924 = vmatmul.f32.gmra.mxu0 %v2810
      %v2925 = vpop.f32.mrf.mxu0
      %v2926 = vadd.f32 0.0, %v2925
      %2927 = vmatmul.f32.gmra.mxu0 %v2813
      %v2928 = vpop.f32.mrf.mxu0
      %v2929 = vadd.f32 0.0, %v2928
      %2930 = vmatmul.f32.gmra.mxu0 %v2816
      %v2931 = vpop.f32.mrf.mxu0
      %v2932 = vadd.f32 0.0, %v2931
      %2933 = vmatmul.f32.gmra.mxu0 %v2819
      %v2934 = vpop.f32.mrf.mxu0
      %v2935 = vadd.f32 0.0, %v2934
      %2936 = vmatmul.f32.gmra.mxu0 %v2822
      %v2937 = vpop.f32.mrf.mxu0
      %v2938 = vadd.f32 0.0, %v2937
      %2939 = vmatmul.f32.gmra.mxu0 %v2825
      %v2940 = vpop.f32.mrf.mxu0
      %v2941 = vadd.f32 0.0, %v2940
      %2942 = vmatmul.f32.gmra.mxu0 %v2828
      %v2943 = vpop.f32.mrf.mxu0
      %v2944 = vadd.f32 0.0, %v2943
      %2945 = vmatmul.f32.gmra.mxu0 %v2831
      %v2946 = vpop.f32.mrf.mxu0
      %v2947 = vadd.f32 0.0, %v2946
      %2948 = vmatmul.f32.gmra.mxu0 %v2834
      %v2949 = vpop.f32.mrf.mxu0
      %v2950 = vadd.f32 0.0, %v2949
      %2951 = vmatmul.f32.gmra.mxu0 %v2837
      %v2952 = vpop.f32.mrf.mxu0
      %v2953 = vadd.f32 0.0, %v2952
      %2954 = vmatmul.f32.gmra.mxu0 %v2840
      %v2955 = vpop.f32.mrf.mxu0
      %v2956 = vadd.f32 0.0, %v2955
      %2957 = vmatmul.f32.gmra.mxu0 %v2843
      %v2958 = vpop.f32.mrf.mxu0
      %v2959 = vadd.f32 0.0, %v2958
      %2960 = vmatmul.f32.gmra.mxu0 %v2846
      %v2961 = vpop.f32.mrf.mxu0
      %v2962 = vadd.f32 0.0, %v2961
      %2963 = vmatmul.f32.gmra.mxu0 %v2849
      %v2964 = vpop.f32.mrf.mxu0
      %v2965 = vadd.f32 0.0, %v2964
      %2966 = vmatmul.f32.gmra.mxu0 %v2852
      %v2967 = vpop.f32.mrf.mxu0
      %v2968 = vadd.f32 0.0, %v2967
      %2969 = vmatmul.f32.gmra.mxu0 %v2855
      %v2970 = vpop.f32.mrf.mxu0
      %v2971 = vadd.f32 0.0, %v2970
      %2972 = vmatmul.f32.gmra.mxu0 %v2858
      %v2973 = vpop.f32.mrf.mxu0
      %v2974 = vadd.f32 0.0, %v2973
      %2975 = vmatmul.f32.gmra.mxu0 %v2861
      %v2976 = vpop.f32.mrf.mxu0
      %v2977 = vadd.f32 0.0, %v2976
      %2978 = vmatmul.f32.gmra.mxu0 %v2864
      %v2979 = vpop.f32.mrf.mxu0
      %v2980 = vadd.f32 0.0, %v2979
      %2981 = vmatmul.f32.gmra.mxu0 %v2867
      %v2982 = vpop.f32.mrf.mxu0
      %v2983 = vadd.f32 0.0, %v2982
      %2984 = vmatmul.f32.gmra.mxu0 %v2870
      %v2985 = vpop.f32.mrf.mxu0
      %v2986 = vadd.f32 0.0, %v2985
      %2987 = vmatmul.f32.gmra.mxu0 %v2873
      %v2988 = vpop.f32.mrf.mxu0
      %v2989 = vadd.f32 0.0, %v2988
      %2990 = vdwg.mxu0
      %v2991 = vadd.f32 %v2681, %v2896
      %v2992 = vadd.f32 %v2682, %v2899
      %v2993 = vadd.f32 %v2683, %v2902
      %v2994 = vadd.f32 %v2684, %v2905
      %v2995 = vadd.f32 %v2685, %v2908
      %v2996 = vadd.f32 %v2686, %v2911
      %v2997 = vadd.f32 %v2687, %v2914
      %v2998 = vadd.f32 %v2688, %v2917
      %v2999 = vadd.f32 %v2689, %v2920
      %v3000 = vadd.f32 %v2690, %v2923
      %v3001 = vadd.f32 %v2691, %v2926
      %v3002 = vadd.f32 %v2692, %v2929
      %v3003 = vadd.f32 %v2693, %v2932
      %v3004 = vadd.f32 %v2694, %v2935
      %v3005 = vadd.f32 %v2695, %v2938
      %v3006 = vadd.f32 %v2696, %v2941
      %v3007 = vadd.f32 %v2697, %v2944
      %v3008 = vadd.f32 %v2698, %v2947
      %v3009 = vadd.f32 %v2699, %v2950
      %v3010 = vadd.f32 %v2700, %v2953
      %v3011 = vadd.f32 %v2701, %v2956
      %v3012 = vadd.f32 %v2702, %v2959
      %v3013 = vadd.f32 %v2703, %v2962
      %v3014 = vadd.f32 %v2704, %v2965
      %v3015 = vadd.f32 %v2705, %v2968
      %v3016 = vadd.f32 %v2706, %v2971
      %v3017 = vadd.f32 %v2707, %v2974
      %v3018 = vadd.f32 %v2708, %v2977
      %v3019 = vadd.f32 %v2709, %v2980
      %v3020 = vadd.f32 %v2710, %v2983
      %v3021 = vadd.f32 %v2711, %v2986
      %v3022 = vadd.f32 %v2712, %v2989
      %v3023 = vld [vmem:[#allocation2 + $0x21] sm:$0xff]
      %v3024 = vld [vmem:[#allocation2 + $0x29] sm:$0xff]
      %v3025 = vld [vmem:[#allocation2 + $0x31] sm:$0xff]
      %v3026 = vld [vmem:[#allocation2 + $0x39] sm:$0xff]
      %v3027 = vld [vmem:[#allocation2 + $0x41] sm:$0xff]
      %v3028 = vld [vmem:[#allocation2 + $0x49] sm:$0xff]
      %v3029 = vld [vmem:[#allocation2 + $0x51] sm:$0xff]
      %v3030 = vld [vmem:[#allocation2 + $0x59] sm:$0xff]
      %v3031 = vld [vmem:[#allocation2 + $0x61] sm:$0xff]
      %v3032 = vld [vmem:[#allocation2 + $0x69] sm:$0xff]
      %v3033 = vld [vmem:[#allocation2 + $0x71] sm:$0xff]
      %v3034 = vld [vmem:[#allocation2 + $0x79] sm:$0xff]
      %v3035 = vld [vmem:[#allocation2 + $0x81] sm:$0xff]
      %v3036 = vld [vmem:[#allocation2 + $0x89] sm:$0xff]
      %v3037 = vld [vmem:[#allocation2 + $0x91] sm:$0xff]
      %v3038 = vld [vmem:[#allocation2 + $0x99] sm:$0xff]
      %v3039 = vld [vmem:[#allocation2 + $0xa1] sm:$0xff]
      %v3040 = vld [vmem:[#allocation2 + $0xa9] sm:$0xff]
      %v3041 = vld [vmem:[#allocation2 + $0xb1] sm:$0xff]
      %v3042 = vld [vmem:[#allocation2 + $0xb9] sm:$0xff]
      %v3043 = vld [vmem:[#allocation2 + $0xc1] sm:$0xff]
      %v3044 = vld [vmem:[#allocation2 + $0xc9] sm:$0xff]
      %v3045 = vld [vmem:[#allocation2 + $0xd1] sm:$0xff]
      %v3046 = vld [vmem:[#allocation2 + $0xd9] sm:$0xff]
      %v3047 = vld [vmem:[#allocation2 + $0xe1] sm:$0xff]
      %v3048 = vld [vmem:[#allocation2 + $0xe9] sm:$0xff]
      %v3049 = vld [vmem:[#allocation2 + $0xf1] sm:$0xff]
      %v3050 = vld [vmem:[#allocation2 + $0xf9] sm:$0xff]
      %v3051 = vld [vmem:[#allocation2 + $0x101] sm:$0xff]
      %v3052 = vld [vmem:[#allocation2 + $0x109] sm:$0xff]
      %v3053 = vld [vmem:[#allocation2 + $0x111] sm:$0xff]
      %v3054 = vld [vmem:[#allocation2 + $0x119] sm:$0xff]
      %s3055 = scalar_lea.vmem %s1, 28
      %v3056 = vld [vmem:[%s3055] sm:$0xf]
      %v3058 = vsel %vm225, %v3023, 0
      %v3061 = vsel %vm225, %v3024, 0
      %v3064 = vsel %vm225, %v3025, 0
      %v3067 = vsel %vm225, %v3026, 0
      %v3070 = vsel %vm225, %v3027, 0
      %v3073 = vsel %vm225, %v3028, 0
      %v3076 = vsel %vm225, %v3029, 0
      %v3079 = vsel %vm225, %v3030, 0
      %v3082 = vsel %vm225, %v3031, 0
      %v3085 = vsel %vm225, %v3032, 0
      %v3088 = vsel %vm225, %v3033, 0
      %v3091 = vsel %vm225, %v3034, 0
      %v3094 = vsel %vm225, %v3035, 0
      %v3097 = vsel %vm225, %v3036, 0
      %v3100 = vsel %vm225, %v3037, 0
      %v3103 = vsel %vm225, %v3038, 0
      %v3106 = vsel %vm225, %v3039, 0
      %v3109 = vsel %vm225, %v3040, 0
      %v3112 = vsel %vm225, %v3041, 0
      %v3115 = vsel %vm225, %v3042, 0
      %v3118 = vsel %vm225, %v3043, 0
      %v3121 = vsel %vm225, %v3044, 0
      %v3124 = vsel %vm225, %v3045, 0
      %v3127 = vsel %vm225, %v3046, 0
      %v3130 = vsel %vm225, %v3047, 0
      %v3133 = vsel %vm225, %v3048, 0
      %v3136 = vsel %vm225, %v3049, 0
      %v3139 = vsel %vm225, %v3050, 0
      %v3142 = vsel %vm225, %v3051, 0
      %v3145 = vsel %vm225, %v3052, 0
      %v3148 = vsel %vm225, %v3053, 0
      %v3151 = vsel %vm225, %v3054, 0
      %v3154 = vsel %vm1014, %v3056, 0
      %3156 = vmatpush.msra.mxu0 0.0
      %3157 = vmatpush.msra.mxu0 0.0
      %3158 = vmatpush.msra.mxu0 0.0
      %3159 = vmatpush.msra.mxu0 0.0
      %3160 = vmatpush.msra.mxu0 0.0
      %3161 = vmatpush.msra.mxu0 0.0
      %3162 = vmatpush.msra.mxu0 0.0
      %3163 = vmatpush.msra.mxu0 0.0
      %3164 = vmatpush.msra.mxu0 0.0
      %3165 = vmatpush.msra.mxu0 0.0
      %3166 = vmatpush.msra.mxu0 0.0
      %3167 = vmatpush.msra.mxu0 0.0
      %3168 = vmatpush.msra.mxu0 0.0
      %3169 = vmatpush.msra.mxu0 0.0
      %3170 = vmatpush.msra.mxu0 0.0
      %3171 = vmatpush.msra.mxu0 %v3154
      %3172 = vmatmul.f32.gmra.mxu0 %v3058
      %v3173 = vpop.f32.mrf.mxu0
      %v3174 = vadd.f32 0.0, %v3173
      %3175 = vmatmul.f32.gmra.mxu0 %v3061
      %v3176 = vpop.f32.mrf.mxu0
      %v3177 = vadd.f32 0.0, %v3176
      %3178 = vmatmul.f32.gmra.mxu0 %v3064
      %v3179 = vpop.f32.mrf.mxu0
      %v3180 = vadd.f32 0.0, %v3179
      %3181 = vmatmul.f32.gmra.mxu0 %v3067
      %v3182 = vpop.f32.mrf.mxu0
      %v3183 = vadd.f32 0.0, %v3182
      %3184 = vmatmul.f32.gmra.mxu0 %v3070
      %v3185 = vpop.f32.mrf.mxu0
      %v3186 = vadd.f32 0.0, %v3185
      %3187 = vmatmul.f32.gmra.mxu0 %v3073
      %v3188 = vpop.f32.mrf.mxu0
      %v3189 = vadd.f32 0.0, %v3188
      %3190 = vmatmul.f32.gmra.mxu0 %v3076
      %v3191 = vpop.f32.mrf.mxu0
      %v3192 = vadd.f32 0.0, %v3191
      %3193 = vmatmul.f32.gmra.mxu0 %v3079
      %v3194 = vpop.f32.mrf.mxu0
      %v3195 = vadd.f32 0.0, %v3194
      %3196 = vmatmul.f32.gmra.mxu0 %v3082
      %v3197 = vpop.f32.mrf.mxu0
      %v3198 = vadd.f32 0.0, %v3197
      %3199 = vmatmul.f32.gmra.mxu0 %v3085
      %v3200 = vpop.f32.mrf.mxu0
      %v3201 = vadd.f32 0.0, %v3200
      %3202 = vmatmul.f32.gmra.mxu0 %v3088
      %v3203 = vpop.f32.mrf.mxu0
      %v3204 = vadd.f32 0.0, %v3203
      %3205 = vmatmul.f32.gmra.mxu0 %v3091
      %v3206 = vpop.f32.mrf.mxu0
      %v3207 = vadd.f32 0.0, %v3206
      %3208 = vmatmul.f32.gmra.mxu0 %v3094
      %v3209 = vpop.f32.mrf.mxu0
      %v3210 = vadd.f32 0.0, %v3209
      %3211 = vmatmul.f32.gmra.mxu0 %v3097
      %v3212 = vpop.f32.mrf.mxu0
      %v3213 = vadd.f32 0.0, %v3212
      %3214 = vmatmul.f32.gmra.mxu0 %v3100
      %v3215 = vpop.f32.mrf.mxu0
      %v3216 = vadd.f32 0.0, %v3215
      %3217 = vmatmul.f32.gmra.mxu0 %v3103
      %v3218 = vpop.f32.mrf.mxu0
      %v3219 = vadd.f32 0.0, %v3218
      %3220 = vmatmul.f32.gmra.mxu0 %v3106
      %v3221 = vpop.f32.mrf.mxu0
      %v3222 = vadd.f32 0.0, %v3221
      %3223 = vmatmul.f32.gmra.mxu0 %v3109
      %v3224 = vpop.f32.mrf.mxu0
      %v3225 = vadd.f32 0.0, %v3224
      %3226 = vmatmul.f32.gmra.mxu0 %v3112
      %v3227 = vpop.f32.mrf.mxu0
      %v3228 = vadd.f32 0.0, %v3227
      %3229 = vmatmul.f32.gmra.mxu0 %v3115
      %v3230 = vpop.f32.mrf.mxu0
      %v3231 = vadd.f32 0.0, %v3230
      %3232 = vmatmul.f32.gmra.mxu0 %v3118
      %v3233 = vpop.f32.mrf.mxu0
      %v3234 = vadd.f32 0.0, %v3233
      %3235 = vmatmul.f32.gmra.mxu0 %v3121
      %v3236 = vpop.f32.mrf.mxu0
      %v3237 = vadd.f32 0.0, %v3236
      %3238 = vmatmul.f32.gmra.mxu0 %v3124
      %v3239 = vpop.f32.mrf.mxu0
      %v3240 = vadd.f32 0.0, %v3239
      %3241 = vmatmul.f32.gmra.mxu0 %v3127
      %v3242 = vpop.f32.mrf.mxu0
      %v3243 = vadd.f32 0.0, %v3242
      %3244 = vmatmul.f32.gmra.mxu0 %v3130
      %v3245 = vpop.f32.mrf.mxu0
      %v3246 = vadd.f32 0.0, %v3245
      %3247 = vmatmul.f32.gmra.mxu0 %v3133
      %v3248 = vpop.f32.mrf.mxu0
      %v3249 = vadd.f32 0.0, %v3248
      %3250 = vmatmul.f32.gmra.mxu0 %v3136
      %v3251 = vpop.f32.mrf.mxu0
      %v3252 = vadd.f32 0.0, %v3251
      %3253 = vmatmul.f32.gmra.mxu0 %v3139
      %v3254 = vpop.f32.mrf.mxu0
      %v3255 = vadd.f32 0.0, %v3254
      %3256 = vmatmul.f32.gmra.mxu0 %v3142
      %v3257 = vpop.f32.mrf.mxu0
      %v3258 = vadd.f32 0.0, %v3257
      %3259 = vmatmul.f32.gmra.mxu0 %v3145
      %v3260 = vpop.f32.mrf.mxu0
      %v3261 = vadd.f32 0.0, %v3260
      %3262 = vmatmul.f32.gmra.mxu0 %v3148
      %v3263 = vpop.f32.mrf.mxu0
      %v3264 = vadd.f32 0.0, %v3263
      %3265 = vmatmul.f32.gmra.mxu0 %v3151
      %v3266 = vpop.f32.mrf.mxu0
      %v3267 = vadd.f32 0.0, %v3266
      %3268 = vdwg.mxu0
      %v3269 = vadd.f32 %v2991, %v3174
      %v3270 = vadd.f32 %v2992, %v3177
      %v3271 = vadd.f32 %v2993, %v3180
      %v3272 = vadd.f32 %v2994, %v3183
      %v3273 = vadd.f32 %v2995, %v3186
      %v3274 = vadd.f32 %v2996, %v3189
      %v3275 = vadd.f32 %v2997, %v3192
      %v3276 = vadd.f32 %v2998, %v3195
      %v3277 = vadd.f32 %v2999, %v3198
      %v3278 = vadd.f32 %v3000, %v3201
      %v3279 = vadd.f32 %v3001, %v3204
      %v3280 = vadd.f32 %v3002, %v3207
      %v3281 = vadd.f32 %v3003, %v3210
      %v3282 = vadd.f32 %v3004, %v3213
      %v3283 = vadd.f32 %v3005, %v3216
      %v3284 = vadd.f32 %v3006, %v3219
      %v3285 = vadd.f32 %v3007, %v3222
      %v3286 = vadd.f32 %v3008, %v3225
      %v3287 = vadd.f32 %v3009, %v3228
      %v3288 = vadd.f32 %v3010, %v3231
      %v3289 = vadd.f32 %v3011, %v3234
      %v3290 = vadd.f32 %v3012, %v3237
      %v3291 = vadd.f32 %v3013, %v3240
      %v3292 = vadd.f32 %v3014, %v3243
      %v3293 = vadd.f32 %v3015, %v3246
      %v3294 = vadd.f32 %v3016, %v3249
      %v3295 = vadd.f32 %v3017, %v3252
      %v3296 = vadd.f32 %v3018, %v3255
      %v3297 = vadd.f32 %v3019, %v3258
      %v3298 = vadd.f32 %v3020, %v3261
      %v3299 = vadd.f32 %v3021, %v3264
      %v3300 = vadd.f32 %v3022, %v3267
      %v3301 = vld [vmem:[#allocation2 + $0x22] sm:$0xff]
      %v3302 = vld [vmem:[#allocation2 + $0x2a] sm:$0xff]
      %v3303 = vld [vmem:[#allocation2 + $0x32] sm:$0xff]
      %v3304 = vld [vmem:[#allocation2 + $0x3a] sm:$0xff]
      %v3305 = vld [vmem:[#allocation2 + $0x42] sm:$0xff]
      %v3306 = vld [vmem:[#allocation2 + $0x4a] sm:$0xff]
      %v3307 = vld [vmem:[#allocation2 + $0x52] sm:$0xff]
      %v3308 = vld [vmem:[#allocation2 + $0x5a] sm:$0xff]
      %v3309 = vld [vmem:[#allocation2 + $0x62] sm:$0xff]
      %v3310 = vld [vmem:[#allocation2 + $0x6a] sm:$0xff]
      %v3311 = vld [vmem:[#allocation2 + $0x72] sm:$0xff]
      %v3312 = vld [vmem:[#allocation2 + $0x7a] sm:$0xff]
      %v3313 = vld [vmem:[#allocation2 + $0x82] sm:$0xff]
      %v3314 = vld [vmem:[#allocation2 + $0x8a] sm:$0xff]
      %v3315 = vld [vmem:[#allocation2 + $0x92] sm:$0xff]
      %v3316 = vld [vmem:[#allocation2 + $0x9a] sm:$0xff]
      %v3317 = vld [vmem:[#allocation2 + $0xa2] sm:$0xff]
      %v3318 = vld [vmem:[#allocation2 + $0xaa] sm:$0xff]
      %v3319 = vld [vmem:[#allocation2 + $0xb2] sm:$0xff]
      %v3320 = vld [vmem:[#allocation2 + $0xba] sm:$0xff]
      %v3321 = vld [vmem:[#allocation2 + $0xc2] sm:$0xff]
      %v3322 = vld [vmem:[#allocation2 + $0xca] sm:$0xff]
      %v3323 = vld [vmem:[#allocation2 + $0xd2] sm:$0xff]
      %v3324 = vld [vmem:[#allocation2 + $0xda] sm:$0xff]
      %v3325 = vld [vmem:[#allocation2 + $0xe2] sm:$0xff]
      %v3326 = vld [vmem:[#allocation2 + $0xea] sm:$0xff]
      %v3327 = vld [vmem:[#allocation2 + $0xf2] sm:$0xff]
      %v3328 = vld [vmem:[#allocation2 + $0xfa] sm:$0xff]
      %v3329 = vld [vmem:[#allocation2 + $0x102] sm:$0xff]
      %v3330 = vld [vmem:[#allocation2 + $0x10a] sm:$0xff]
      %v3331 = vld [vmem:[#allocation2 + $0x112] sm:$0xff]
      %v3332 = vld [vmem:[#allocation2 + $0x11a] sm:$0xff]
      %v3333 = vsel %vm1505, %v3301, 0.0
      %v3334 = vsel %vm1506, %v3302, 0.0
      %v3335 = vsel %vm1507, %v3303, 0.0
      %v3336 = vsel %vm1508, %v3304, 0.0
      %v3337 = vsel %vm1509, %v3305, 0.0
      %v3338 = vsel %vm1510, %v3306, 0.0
      %v3339 = vsel %vm1511, %v3307, 0.0
      %v3340 = vsel %vm1512, %v3308, 0.0
      %v3341 = vsel %vm1513, %v3309, 0.0
      %v3342 = vsel %vm1514, %v3310, 0.0
      %v3343 = vsel %vm1515, %v3311, 0.0
      %v3344 = vsel %vm1516, %v3312, 0.0
      %v3345 = vsel %vm1517, %v3313, 0.0
      %v3346 = vsel %vm1518, %v3314, 0.0
      %v3347 = vsel %vm1519, %v3315, 0.0
      %v3348 = vsel %vm1520, %v3316, 0.0
      %v3349 = vsel %vm1521, %v3317, 0.0
      %v3350 = vsel %vm1522, %v3318, 0.0
      %v3351 = vsel %vm1523, %v3319, 0.0
      %v3352 = vsel %vm1524, %v3320, 0.0
      %v3353 = vsel %vm1525, %v3321, 0.0
      %v3354 = vsel %vm1526, %v3322, 0.0
      %v3355 = vsel %vm1527, %v3323, 0.0
      %v3356 = vsel %vm1528, %v3324, 0.0
      %v3357 = vsel %vm1529, %v3325, 0.0
      %v3358 = vsel %vm1530, %v3326, 0.0
      %v3359 = vsel %vm1531, %v3327, 0.0
      %v3360 = vsel %vm1532, %v3328, 0.0
      %v3361 = vsel %vm1533, %v3329, 0.0
      %v3362 = vsel %vm1534, %v3330, 0.0
      %v3363 = vsel %vm1535, %v3331, 0.0
      %v3364 = vsel %vm1536, %v3332, 0.0
      %s3365 = scalar_lea.vmem %s1, 32
      %v3366 = vld [vmem:[%s3365] sm:$0xf]
      %v3368 = vsel %vm225, %v3333, 0
      %v3371 = vsel %vm225, %v3334, 0
      %v3374 = vsel %vm225, %v3335, 0
      %v3377 = vsel %vm225, %v3336, 0
      %v3380 = vsel %vm225, %v3337, 0
      %v3383 = vsel %vm225, %v3338, 0
      %v3386 = vsel %vm225, %v3339, 0
      %v3389 = vsel %vm225, %v3340, 0
      %v3392 = vsel %vm225, %v3341, 0
      %v3395 = vsel %vm225, %v3342, 0
      %v3398 = vsel %vm225, %v3343, 0
      %v3401 = vsel %vm225, %v3344, 0
      %v3404 = vsel %vm225, %v3345, 0
      %v3407 = vsel %vm225, %v3346, 0
      %v3410 = vsel %vm225, %v3347, 0
      %v3413 = vsel %vm225, %v3348, 0
      %v3416 = vsel %vm225, %v3349, 0
      %v3419 = vsel %vm225, %v3350, 0
      %v3422 = vsel %vm225, %v3351, 0
      %v3425 = vsel %vm225, %v3352, 0
      %v3428 = vsel %vm225, %v3353, 0
      %v3431 = vsel %vm225, %v3354, 0
      %v3434 = vsel %vm225, %v3355, 0
      %v3437 = vsel %vm225, %v3356, 0
      %v3440 = vsel %vm225, %v3357, 0
      %v3443 = vsel %vm225, %v3358, 0
      %v3446 = vsel %vm225, %v3359, 0
      %v3449 = vsel %vm225, %v3360, 0
      %v3452 = vsel %vm225, %v3361, 0
      %v3455 = vsel %vm225, %v3362, 0
      %v3458 = vsel %vm225, %v3363, 0
      %v3461 = vsel %vm225, %v3364, 0
      %v3464 = vsel %vm1014, %v3366, 0
      %3466 = vmatpush.msra.mxu0 0.0
      %3467 = vmatpush.msra.mxu0 0.0
      %3468 = vmatpush.msra.mxu0 0.0
      %3469 = vmatpush.msra.mxu0 0.0
      %3470 = vmatpush.msra.mxu0 0.0
      %3471 = vmatpush.msra.mxu0 0.0
      %3472 = vmatpush.msra.mxu0 0.0
      %3473 = vmatpush.msra.mxu0 0.0
      %3474 = vmatpush.msra.mxu0 0.0
      %3475 = vmatpush.msra.mxu0 0.0
      %3476 = vmatpush.msra.mxu0 0.0
      %3477 = vmatpush.msra.mxu0 0.0
      %3478 = vmatpush.msra.mxu0 0.0
      %3479 = vmatpush.msra.mxu0 0.0
      %3480 = vmatpush.msra.mxu0 0.0
      %3481 = vmatpush.msra.mxu0 %v3464
      %3482 = vmatmul.f32.gmra.mxu0 %v3368
      %v3483 = vpop.f32.mrf.mxu0
      %v3484 = vadd.f32 0.0, %v3483
      %3485 = vmatmul.f32.gmra.mxu0 %v3371
      %v3486 = vpop.f32.mrf.mxu0
      %v3487 = vadd.f32 0.0, %v3486
      %3488 = vmatmul.f32.gmra.mxu0 %v3374
      %v3489 = vpop.f32.mrf.mxu0
      %v3490 = vadd.f32 0.0, %v3489
      %3491 = vmatmul.f32.gmra.mxu0 %v3377
      %v3492 = vpop.f32.mrf.mxu0
      %v3493 = vadd.f32 0.0, %v3492
      %3494 = vmatmul.f32.gmra.mxu0 %v3380
      %v3495 = vpop.f32.mrf.mxu0
      %v3496 = vadd.f32 0.0, %v3495
      %3497 = vmatmul.f32.gmra.mxu0 %v3383
      %v3498 = vpop.f32.mrf.mxu0
      %v3499 = vadd.f32 0.0, %v3498
      %3500 = vmatmul.f32.gmra.mxu0 %v3386
      %v3501 = vpop.f32.mrf.mxu0
      %v3502 = vadd.f32 0.0, %v3501
      %3503 = vmatmul.f32.gmra.mxu0 %v3389
      %v3504 = vpop.f32.mrf.mxu0
      %v3505 = vadd.f32 0.0, %v3504
      %3506 = vmatmul.f32.gmra.mxu0 %v3392
      %v3507 = vpop.f32.mrf.mxu0
      %v3508 = vadd.f32 0.0, %v3507
      %3509 = vmatmul.f32.gmra.mxu0 %v3395
      %v3510 = vpop.f32.mrf.mxu0
      %v3511 = vadd.f32 0.0, %v3510
      %3512 = vmatmul.f32.gmra.mxu0 %v3398
      %v3513 = vpop.f32.mrf.mxu0
      %v3514 = vadd.f32 0.0, %v3513
      %3515 = vmatmul.f32.gmra.mxu0 %v3401
      %v3516 = vpop.f32.mrf.mxu0
      %v3517 = vadd.f32 0.0, %v3516
      %3518 = vmatmul.f32.gmra.mxu0 %v3404
      %v3519 = vpop.f32.mrf.mxu0
      %v3520 = vadd.f32 0.0, %v3519
      %3521 = vmatmul.f32.gmra.mxu0 %v3407
      %v3522 = vpop.f32.mrf.mxu0
      %v3523 = vadd.f32 0.0, %v3522
      %3524 = vmatmul.f32.gmra.mxu0 %v3410
      %v3525 = vpop.f32.mrf.mxu0
      %v3526 = vadd.f32 0.0, %v3525
      %3527 = vmatmul.f32.gmra.mxu0 %v3413
      %v3528 = vpop.f32.mrf.mxu0
      %v3529 = vadd.f32 0.0, %v3528
      %3530 = vmatmul.f32.gmra.mxu0 %v3416
      %v3531 = vpop.f32.mrf.mxu0
      %v3532 = vadd.f32 0.0, %v3531
      %3533 = vmatmul.f32.gmra.mxu0 %v3419
      %v3534 = vpop.f32.mrf.mxu0
      %v3535 = vadd.f32 0.0, %v3534
      %3536 = vmatmul.f32.gmra.mxu0 %v3422
      %v3537 = vpop.f32.mrf.mxu0
      %v3538 = vadd.f32 0.0, %v3537
      %3539 = vmatmul.f32.gmra.mxu0 %v3425
      %v3540 = vpop.f32.mrf.mxu0
      %v3541 = vadd.f32 0.0, %v3540
      %3542 = vmatmul.f32.gmra.mxu0 %v3428
      %v3543 = vpop.f32.mrf.mxu0
      %v3544 = vadd.f32 0.0, %v3543
      %3545 = vmatmul.f32.gmra.mxu0 %v3431
      %v3546 = vpop.f32.mrf.mxu0
      %v3547 = vadd.f32 0.0, %v3546
      %3548 = vmatmul.f32.gmra.mxu0 %v3434
      %v3549 = vpop.f32.mrf.mxu0
      %v3550 = vadd.f32 0.0, %v3549
      %3551 = vmatmul.f32.gmra.mxu0 %v3437
      %v3552 = vpop.f32.mrf.mxu0
      %v3553 = vadd.f32 0.0, %v3552
      %3554 = vmatmul.f32.gmra.mxu0 %v3440
      %v3555 = vpop.f32.mrf.mxu0
      %v3556 = vadd.f32 0.0, %v3555
      %3557 = vmatmul.f32.gmra.mxu0 %v3443
      %v3558 = vpop.f32.mrf.mxu0
      %v3559 = vadd.f32 0.0, %v3558
      %3560 = vmatmul.f32.gmra.mxu0 %v3446
      %v3561 = vpop.f32.mrf.mxu0
      %v3562 = vadd.f32 0.0, %v3561
      %3563 = vmatmul.f32.gmra.mxu0 %v3449
      %v3564 = vpop.f32.mrf.mxu0
      %v3565 = vadd.f32 0.0, %v3564
      %3566 = vmatmul.f32.gmra.mxu0 %v3452
      %v3567 = vpop.f32.mrf.mxu0
      %v3568 = vadd.f32 0.0, %v3567
      %3569 = vmatmul.f32.gmra.mxu0 %v3455
      %v3570 = vpop.f32.mrf.mxu0
      %v3571 = vadd.f32 0.0, %v3570
      %3572 = vmatmul.f32.gmra.mxu0 %v3458
      %v3573 = vpop.f32.mrf.mxu0
      %v3574 = vadd.f32 0.0, %v3573
      %3575 = vmatmul.f32.gmra.mxu0 %v3461
      %v3576 = vpop.f32.mrf.mxu0
      %v3577 = vadd.f32 0.0, %v3576
      %3578 = vdwg.mxu0
      %v3579 = vadd.f32 %v3269, %v3484
      %v3580 = vadd.f32 %v3270, %v3487
      %v3581 = vadd.f32 %v3271, %v3490
      %v3582 = vadd.f32 %v3272, %v3493
      %v3583 = vadd.f32 %v3273, %v3496
      %v3584 = vadd.f32 %v3274, %v3499
      %v3585 = vadd.f32 %v3275, %v3502
      %v3586 = vadd.f32 %v3276, %v3505
      %v3587 = vadd.f32 %v3277, %v3508
      %v3588 = vadd.f32 %v3278, %v3511
      %v3589 = vadd.f32 %v3279, %v3514
      %v3590 = vadd.f32 %v3280, %v3517
      %v3591 = vadd.f32 %v3281, %v3520
      %v3592 = vadd.f32 %v3282, %v3523
      %v3593 = vadd.f32 %v3283, %v3526
      %v3594 = vadd.f32 %v3284, %v3529
      %v3595 = vadd.f32 %v3285, %v3532
      %v3596 = vadd.f32 %v3286, %v3535
      %v3597 = vadd.f32 %v3287, %v3538
      %v3598 = vadd.f32 %v3288, %v3541
      %v3599 = vadd.f32 %v3289, %v3544
      %v3600 = vadd.f32 %v3290, %v3547
      %v3601 = vadd.f32 %v3291, %v3550
      %v3602 = vadd.f32 %v3292, %v3553
      %v3603 = vadd.f32 %v3293, %v3556
      %v3604 = vadd.f32 %v3294, %v3559
      %v3605 = vadd.f32 %v3295, %v3562
      %v3606 = vadd.f32 %v3296, %v3565
      %v3607 = vadd.f32 %v3297, %v3568
      %v3608 = vadd.f32 %v3298, %v3571
      %v3609 = vadd.f32 %v3299, %v3574
      %v3610 = vadd.f32 %v3300, %v3577
      %v3611 = vmax.f32 %v3579, 0.0
      %v3612 = vmax.f32 %v3580, 0.0
      %v3613 = vmax.f32 %v3581, 0.0
      %v3614 = vmax.f32 %v3582, 0.0
      %v3615 = vmax.f32 %v3583, 0.0
      %v3616 = vmax.f32 %v3584, 0.0
      %v3617 = vmax.f32 %v3585, 0.0
      %v3618 = vmax.f32 %v3586, 0.0
      %v3619 = vmax.f32 %v3587, 0.0
      %v3620 = vmax.f32 %v3588, 0.0
      %v3621 = vmax.f32 %v3589, 0.0
      %v3622 = vmax.f32 %v3590, 0.0
      %v3623 = vmax.f32 %v3591, 0.0
      %v3624 = vmax.f32 %v3592, 0.0
      %v3625 = vmax.f32 %v3593, 0.0
      %v3626 = vmax.f32 %v3594, 0.0
      %v3627 = vmax.f32 %v3595, 0.0
      %v3628 = vmax.f32 %v3596, 0.0
      %v3629 = vmax.f32 %v3597, 0.0
      %v3630 = vmax.f32 %v3598, 0.0
      %v3631 = vmax.f32 %v3599, 0.0
      %v3632 = vmax.f32 %v3600, 0.0
      %v3633 = vmax.f32 %v3601, 0.0
      %v3634 = vmax.f32 %v3602, 0.0
      %v3635 = vmax.f32 %v3603, 0.0
      %v3636 = vmax.f32 %v3604, 0.0
      %v3637 = vmax.f32 %v3605, 0.0
      %v3638 = vmax.f32 %v3606, 0.0
      %v3639 = vmax.f32 %v3607, 0.0
      %v3640 = vmax.f32 %v3608, 0.0
      %v3641 = vmax.f32 %v3609, 0.0
      %v3642 = vmax.f32 %v3610, 0.0
      %3643 = vst.msk [vmem:[#allocation3 + $0x11] sm:$0xff] %vm225, %v3611
      %3644 = vst.msk [vmem:[#allocation3 + $0x19] sm:$0xff] %vm225, %v3612
      %3645 = vst.msk [vmem:[#allocation3 + $0x21] sm:$0xff] %vm225, %v3613
      %3646 = vst.msk [vmem:[#allocation3 + $0x29] sm:$0xff] %vm225, %v3614
      %3647 = vst.msk [vmem:[#allocation3 + $0x31] sm:$0xff] %vm225, %v3615
      %3648 = vst.msk [vmem:[#allocation3 + $0x39] sm:$0xff] %vm225, %v3616
      %3649 = vst.msk [vmem:[#allocation3 + $0x41] sm:$0xff] %vm225, %v3617
      %3650 = vst.msk [vmem:[#allocation3 + $0x49] sm:$0xff] %vm225, %v3618
      %3651 = vst.msk [vmem:[#allocation3 + $0x51] sm:$0xff] %vm225, %v3619
      %3652 = vst.msk [vmem:[#allocation3 + $0x59] sm:$0xff] %vm225, %v3620
      %3653 = vst.msk [vmem:[#allocation3 + $0x61] sm:$0xff] %vm225, %v3621
      %3654 = vst.msk [vmem:[#allocation3 + $0x69] sm:$0xff] %vm225, %v3622
      %3655 = vst.msk [vmem:[#allocation3 + $0x71] sm:$0xff] %vm225, %v3623
      %3656 = vst.msk [vmem:[#allocation3 + $0x79] sm:$0xff] %vm225, %v3624
      %3657 = vst.msk [vmem:[#allocation3 + $0x81] sm:$0xff] %vm225, %v3625
      %3658 = vst.msk [vmem:[#allocation3 + $0x89] sm:$0xff] %vm225, %v3626
      %3659 = vst.msk [vmem:[#allocation3 + $0x91] sm:$0xff] %vm225, %v3627
      %3660 = vst.msk [vmem:[#allocation3 + $0x99] sm:$0xff] %vm225, %v3628
      %3661 = vst.msk [vmem:[#allocation3 + $0xa1] sm:$0xff] %vm225, %v3629
      %3662 = vst.msk [vmem:[#allocation3 + $0xa9] sm:$0xff] %vm225, %v3630
      %3663 = vst.msk [vmem:[#allocation3 + $0xb1] sm:$0xff] %vm225, %v3631
      %3664 = vst.msk [vmem:[#allocation3 + $0xb9] sm:$0xff] %vm225, %v3632
      %3665 = vst.msk [vmem:[#allocation3 + $0xc1] sm:$0xff] %vm225, %v3633
      %3666 = vst.msk [vmem:[#allocation3 + $0xc9] sm:$0xff] %vm225, %v3634
      %3667 = vst.msk [vmem:[#allocation3 + $0xd1] sm:$0xff] %vm225, %v3635
      %3668 = vst.msk [vmem:[#allocation3 + $0xd9] sm:$0xff] %vm225, %v3636
      %3669 = vst.msk [vmem:[#allocation3 + $0xe1] sm:$0xff] %vm225, %v3637
      %3670 = vst.msk [vmem:[#allocation3 + $0xe9] sm:$0xff] %vm225, %v3638
      %3671 = vst.msk [vmem:[#allocation3 + $0xf1] sm:$0xff] %vm225, %v3639
      %3672 = vst.msk [vmem:[#allocation3 + $0xf9] sm:$0xff] %vm225, %v3640
      %3673 = vst.msk [vmem:[#allocation3 + $0x101] sm:$0xff] %vm225, %v3641
      %3674 = vst.msk [vmem:[#allocation3 + $0x109] sm:$0xff] %vm225, %v3642
      %v3675 = vld [vmem:[%s4] sm:$0x1]
      %v3677 = vperm.slane %v3675, 0
      %v3679 = vld [vmem:[%s219] sm:$0xff]
      %v3680 = vld [vmem:[%s219 + $0x8] sm:$0xff]
      %v3681 = vld [vmem:[%s219 + $0x10] sm:$0xff]
      %v3682 = vld [vmem:[%s219 + $0x18] sm:$0xff]
      %v3683 = vld [vmem:[%s219 + $0x20] sm:$0xff]
      %v3684 = vld [vmem:[%s219 + $0x28] sm:$0xff]
      %v3685 = vld [vmem:[%s219 + $0x30] sm:$0xff]
      %v3686 = vld [vmem:[%s219 + $0x38] sm:$0xff]
      %v3687 = vld [vmem:[%s219 + $0x40] sm:$0xff]
      %v3688 = vld [vmem:[%s219 + $0x48] sm:$0xff]
      %v3689 = vld [vmem:[%s219 + $0x50] sm:$0xff]
      %v3690 = vld [vmem:[%s219 + $0x58] sm:$0xff]
      %v3691 = vld [vmem:[%s219 + $0x60] sm:$0xff]
      %v3692 = vld [vmem:[%s219 + $0x68] sm:$0xff]
      %v3693 = vld [vmem:[%s219 + $0x70] sm:$0xff]
      %v3694 = vld [vmem:[%s219 + $0x78] sm:$0xff]
      %v3695 = vld [vmem:[%s219 + $0x80] sm:$0xff]
      %v3696 = vld [vmem:[%s219 + $0x88] sm:$0xff]
      %v3697 = vld [vmem:[%s219 + $0x90] sm:$0xff]
      %v3698 = vld [vmem:[%s219 + $0x98] sm:$0xff]
      %v3699 = vld [vmem:[%s219 + $0xa0] sm:$0xff]
      %v3700 = vld [vmem:[%s219 + $0xa8] sm:$0xff]
      %v3701 = vld [vmem:[%s219 + $0xb0] sm:$0xff]
      %v3702 = vld [vmem:[%s219 + $0xb8] sm:$0xff]
      %v3703 = vld [vmem:[%s219 + $0xc0] sm:$0xff]
      %v3704 = vld [vmem:[%s219 + $0xc8] sm:$0xff]
      %v3705 = vld [vmem:[%s219 + $0xd0] sm:$0xff]
      %v3706 = vld [vmem:[%s219 + $0xd8] sm:$0xff]
      %v3707 = vld [vmem:[%s219 + $0xe0] sm:$0xff]
      %v3708 = vld [vmem:[%s219 + $0xe8] sm:$0xff]
      %v3709 = vld [vmem:[%s219 + $0xf0] sm:$0xff]
      %v3710 = vld [vmem:[%s219 + $0xf8] sm:$0xff]
      %v3711 = vadd.f32 %v3677, %v3679
      %v3712 = vadd.f32 %v3677, %v3680
      %v3713 = vadd.f32 %v3677, %v3681
      %v3714 = vadd.f32 %v3677, %v3682
      %v3715 = vadd.f32 %v3677, %v3683
      %v3716 = vadd.f32 %v3677, %v3684
      %v3717 = vadd.f32 %v3677, %v3685
      %v3718 = vadd.f32 %v3677, %v3686
      %v3719 = vadd.f32 %v3677, %v3687
      %v3720 = vadd.f32 %v3677, %v3688
      %v3721 = vadd.f32 %v3677, %v3689
      %v3722 = vadd.f32 %v3677, %v3690
      %v3723 = vadd.f32 %v3677, %v3691
      %v3724 = vadd.f32 %v3677, %v3692
      %v3725 = vadd.f32 %v3677, %v3693
      %v3726 = vadd.f32 %v3677, %v3694
      %v3727 = vadd.f32 %v3677, %v3695
      %v3728 = vadd.f32 %v3677, %v3696
      %v3729 = vadd.f32 %v3677, %v3697
      %v3730 = vadd.f32 %v3677, %v3698
      %v3731 = vadd.f32 %v3677, %v3699
      %v3732 = vadd.f32 %v3677, %v3700
      %v3733 = vadd.f32 %v3677, %v3701
      %v3734 = vadd.f32 %v3677, %v3702
      %v3735 = vadd.f32 %v3677, %v3703
      %v3736 = vadd.f32 %v3677, %v3704
      %v3737 = vadd.f32 %v3677, %v3705
      %v3738 = vadd.f32 %v3677, %v3706
      %v3739 = vadd.f32 %v3677, %v3707
      %v3740 = vadd.f32 %v3677, %v3708
      %v3741 = vadd.f32 %v3677, %v3709
      %v3742 = vadd.f32 %v3677, %v3710
      %v3743 = vld [vmem:[#allocation3] sm:$0xff]
      %v3744 = vld [vmem:[#allocation3 + $0x8] sm:$0xff]
      %v3745 = vld [vmem:[#allocation3 + $0x10] sm:$0xff]
      %v3746 = vld [vmem:[#allocation3 + $0x18] sm:$0xff]
      %v3747 = vld [vmem:[#allocation3 + $0x20] sm:$0xff]
      %v3748 = vld [vmem:[#allocation3 + $0x28] sm:$0xff]
      %v3749 = vld [vmem:[#allocation3 + $0x30] sm:$0xff]
      %v3750 = vld [vmem:[#allocation3 + $0x38] sm:$0xff]
      %v3751 = vld [vmem:[#allocation3 + $0x40] sm:$0xff]
      %v3752 = vld [vmem:[#allocation3 + $0x48] sm:$0xff]
      %v3753 = vld [vmem:[#allocation3 + $0x50] sm:$0xff]
      %v3754 = vld [vmem:[#allocation3 + $0x58] sm:$0xff]
      %v3755 = vld [vmem:[#allocation3 + $0x60] sm:$0xff]
      %v3756 = vld [vmem:[#allocation3 + $0x68] sm:$0xff]
      %v3757 = vld [vmem:[#allocation3 + $0x70] sm:$0xff]
      %v3758 = vld [vmem:[#allocation3 + $0x78] sm:$0xff]
      %v3759 = vld [vmem:[#allocation3 + $0x80] sm:$0xff]
      %v3760 = vld [vmem:[#allocation3 + $0x88] sm:$0xff]
      %v3761 = vld [vmem:[#allocation3 + $0x90] sm:$0xff]
      %v3762 = vld [vmem:[#allocation3 + $0x98] sm:$0xff]
      %v3763 = vld [vmem:[#allocation3 + $0xa0] sm:$0xff]
      %v3764 = vld [vmem:[#allocation3 + $0xa8] sm:$0xff]
      %v3765 = vld [vmem:[#allocation3 + $0xb0] sm:$0xff]
      %v3766 = vld [vmem:[#allocation3 + $0xb8] sm:$0xff]
      %v3767 = vld [vmem:[#allocation3 + $0xc0] sm:$0xff]
      %v3768 = vld [vmem:[#allocation3 + $0xc8] sm:$0xff]
      %v3769 = vld [vmem:[#allocation3 + $0xd0] sm:$0xff]
      %v3770 = vld [vmem:[#allocation3 + $0xd8] sm:$0xff]
      %v3771 = vld [vmem:[#allocation3 + $0xe0] sm:$0xff]
      %v3772 = vld [vmem:[#allocation3 + $0xe8] sm:$0xff]
      %v3773 = vld [vmem:[#allocation3 + $0xf0] sm:$0xff]
      %v3774 = vld [vmem:[#allocation3 + $0xf8] sm:$0xff]
      %v3775 = vsel %vm853, %v3743, 0.0
      %v3776 = vsel %vm854, %v3744, 0.0
      %v3777 = vsel %vm855, %v3745, 0.0
      %v3778 = vsel %vm856, %v3746, 0.0
      %v3779 = vsel %vm857, %v3747, 0.0
      %v3780 = vsel %vm858, %v3748, 0.0
      %v3781 = vsel %vm859, %v3749, 0.0
      %v3782 = vsel %vm860, %v3750, 0.0
      %v3783 = vsel %vm861, %v3751, 0.0
      %v3784 = vsel %vm862, %v3752, 0.0
      %v3785 = vsel %vm863, %v3753, 0.0
      %v3786 = vsel %vm864, %v3754, 0.0
      %v3787 = vsel %vm865, %v3755, 0.0
      %v3788 = vsel %vm866, %v3756, 0.0
      %v3789 = vsel %vm867, %v3757, 0.0
      %v3790 = vsel %vm868, %v3758, 0.0
      %v3791 = vsel %vm869, %v3759, 0.0
      %v3792 = vsel %vm870, %v3760, 0.0
      %v3793 = vsel %vm871, %v3761, 0.0
      %v3794 = vsel %vm872, %v3762, 0.0
      %v3795 = vsel %vm873, %v3763, 0.0
      %v3796 = vsel %vm874, %v3764, 0.0
      %v3797 = vsel %vm875, %v3765, 0.0
      %v3798 = vsel %vm876, %v3766, 0.0
      %v3799 = vsel %vm877, %v3767, 0.0
      %v3800 = vsel %vm878, %v3768, 0.0
      %v3801 = vsel %vm879, %v3769, 0.0
      %v3802 = vsel %vm880, %v3770, 0.0
      %v3803 = vsel %vm881, %v3771, 0.0
      %v3804 = vsel %vm882, %v3772, 0.0
      %v3805 = vsel %vm883, %v3773, 0.0
      %v3806 = vsel %vm884, %v3774, 0.0
      %v3807 = vld [vmem:[%s3] sm:$0xf]
      %v3809 = vsel %vm225, %v3775, 0
      %v3812 = vsel %vm225, %v3776, 0
      %v3815 = vsel %vm225, %v3777, 0
      %v3818 = vsel %vm225, %v3778, 0
      %v3821 = vsel %vm225, %v3779, 0
      %v3824 = vsel %vm225, %v3780, 0
      %v3827 = vsel %vm225, %v3781, 0
      %v3830 = vsel %vm225, %v3782, 0
      %v3833 = vsel %vm225, %v3783, 0
      %v3836 = vsel %vm225, %v3784, 0
      %v3839 = vsel %vm225, %v3785, 0
      %v3842 = vsel %vm225, %v3786, 0
      %v3845 = vsel %vm225, %v3787, 0
      %v3848 = vsel %vm225, %v3788, 0
      %v3851 = vsel %vm225, %v3789, 0
      %v3854 = vsel %vm225, %v3790, 0
      %v3857 = vsel %vm225, %v3791, 0
      %v3860 = vsel %vm225, %v3792, 0
      %v3863 = vsel %vm225, %v3793, 0
      %v3866 = vsel %vm225, %v3794, 0
      %v3869 = vsel %vm225, %v3795, 0
      %v3872 = vsel %vm225, %v3796, 0
      %v3875 = vsel %vm225, %v3797, 0
      %v3878 = vsel %vm225, %v3798, 0
      %v3881 = vsel %vm225, %v3799, 0
      %v3884 = vsel %vm225, %v3800, 0
      %v3887 = vsel %vm225, %v3801, 0
      %v3890 = vsel %vm225, %v3802, 0
      %v3893 = vsel %vm225, %v3803, 0
      %v3896 = vsel %vm225, %v3804, 0
      %v3899 = vsel %vm225, %v3805, 0
      %v3902 = vsel %vm225, %v3806, 0
      %v3905 = vsel %vm1014, %v3807, 0
      %3907 = vmatpush.msra.mxu0 0.0
      %3908 = vmatpush.msra.mxu0 0.0
      %3909 = vmatpush.msra.mxu0 0.0
      %3910 = vmatpush.msra.mxu0 0.0
      %3911 = vmatpush.msra.mxu0 0.0
      %3912 = vmatpush.msra.mxu0 0.0
      %3913 = vmatpush.msra.mxu0 0.0
      %3914 = vmatpush.msra.mxu0 0.0
      %3915 = vmatpush.msra.mxu0 0.0
      %3916 = vmatpush.msra.mxu0 0.0
      %3917 = vmatpush.msra.mxu0 0.0
      %3918 = vmatpush.msra.mxu0 0.0
      %3919 = vmatpush.msra.mxu0 0.0
      %3920 = vmatpush.msra.mxu0 0.0
      %3921 = vmatpush.msra.mxu0 0.0
      %3922 = vmatpush.msra.mxu0 %v3905
      %3923 = vmatmul.f32.gmra.mxu0 %v3809
      %v3924 = vpop.f32.mrf.mxu0
      %v3925 = vadd.f32 0.0, %v3924
      %3926 = vmatmul.f32.gmra.mxu0 %v3812
      %v3927 = vpop.f32.mrf.mxu0
      %v3928 = vadd.f32 0.0, %v3927
      %3929 = vmatmul.f32.gmra.mxu0 %v3815
      %v3930 = vpop.f32.mrf.mxu0
      %v3931 = vadd.f32 0.0, %v3930
      %3932 = vmatmul.f32.gmra.mxu0 %v3818
      %v3933 = vpop.f32.mrf.mxu0
      %v3934 = vadd.f32 0.0, %v3933
      %3935 = vmatmul.f32.gmra.mxu0 %v3821
      %v3936 = vpop.f32.mrf.mxu0
      %v3937 = vadd.f32 0.0, %v3936
      %3938 = vmatmul.f32.gmra.mxu0 %v3824
      %v3939 = vpop.f32.mrf.mxu0
      %v3940 = vadd.f32 0.0, %v3939
      %3941 = vmatmul.f32.gmra.mxu0 %v3827
      %v3942 = vpop.f32.mrf.mxu0
      %v3943 = vadd.f32 0.0, %v3942
      %3944 = vmatmul.f32.gmra.mxu0 %v3830
      %v3945 = vpop.f32.mrf.mxu0
      %v3946 = vadd.f32 0.0, %v3945
      %3947 = vmatmul.f32.gmra.mxu0 %v3833
      %v3948 = vpop.f32.mrf.mxu0
      %v3949 = vadd.f32 0.0, %v3948
      %3950 = vmatmul.f32.gmra.mxu0 %v3836
      %v3951 = vpop.f32.mrf.mxu0
      %v3952 = vadd.f32 0.0, %v3951
      %3953 = vmatmul.f32.gmra.mxu0 %v3839
      %v3954 = vpop.f32.mrf.mxu0
      %v3955 = vadd.f32 0.0, %v3954
      %3956 = vmatmul.f32.gmra.mxu0 %v3842
      %v3957 = vpop.f32.mrf.mxu0
      %v3958 = vadd.f32 0.0, %v3957
      %3959 = vmatmul.f32.gmra.mxu0 %v3845
      %v3960 = vpop.f32.mrf.mxu0
      %v3961 = vadd.f32 0.0, %v3960
      %3962 = vmatmul.f32.gmra.mxu0 %v3848
      %v3963 = vpop.f32.mrf.mxu0
      %v3964 = vadd.f32 0.0, %v3963
      %3965 = vmatmul.f32.gmra.mxu0 %v3851
      %v3966 = vpop.f32.mrf.mxu0
      %v3967 = vadd.f32 0.0, %v3966
      %3968 = vmatmul.f32.gmra.mxu0 %v3854
      %v3969 = vpop.f32.mrf.mxu0
      %v3970 = vadd.f32 0.0, %v3969
      %3971 = vmatmul.f32.gmra.mxu0 %v3857
      %v3972 = vpop.f32.mrf.mxu0
      %v3973 = vadd.f32 0.0, %v3972
      %3974 = vmatmul.f32.gmra.mxu0 %v3860
      %v3975 = vpop.f32.mrf.mxu0
      %v3976 = vadd.f32 0.0, %v3975
      %3977 = vmatmul.f32.gmra.mxu0 %v3863
      %v3978 = vpop.f32.mrf.mxu0
      %v3979 = vadd.f32 0.0, %v3978
      %3980 = vmatmul.f32.gmra.mxu0 %v3866
      %v3981 = vpop.f32.mrf.mxu0
      %v3982 = vadd.f32 0.0, %v3981
      %3983 = vmatmul.f32.gmra.mxu0 %v3869
      %v3984 = vpop.f32.mrf.mxu0
      %v3985 = vadd.f32 0.0, %v3984
      %3986 = vmatmul.f32.gmra.mxu0 %v3872
      %v3987 = vpop.f32.mrf.mxu0
      %v3988 = vadd.f32 0.0, %v3987
      %3989 = vmatmul.f32.gmra.mxu0 %v3875
      %v3990 = vpop.f32.mrf.mxu0
      %v3991 = vadd.f32 0.0, %v3990
      %3992 = vmatmul.f32.gmra.mxu0 %v3878
      %v3993 = vpop.f32.mrf.mxu0
      %v3994 = vadd.f32 0.0, %v3993
      %3995 = vmatmul.f32.gmra.mxu0 %v3881
      %v3996 = vpop.f32.mrf.mxu0
      %v3997 = vadd.f32 0.0, %v3996
      %3998 = vmatmul.f32.gmra.mxu0 %v3884
      %v3999 = vpop.f32.mrf.mxu0
      %v4000 = vadd.f32 0.0, %v3999
      %4001 = vmatmul.f32.gmra.mxu0 %v3887
      %v4002 = vpop.f32.mrf.mxu0
      %v4003 = vadd.f32 0.0, %v4002
      %4004 = vmatmul.f32.gmra.mxu0 %v3890
      %v4005 = vpop.f32.mrf.mxu0
      %v4006 = vadd.f32 0.0, %v4005
      %4007 = vmatmul.f32.gmra.mxu0 %v3893
      %v4008 = vpop.f32.mrf.mxu0
      %v4009 = vadd.f32 0.0, %v4008
      %4010 = vmatmul.f32.gmra.mxu0 %v3896
      %v4011 = vpop.f32.mrf.mxu0
      %v4012 = vadd.f32 0.0, %v4011
      %4013 = vmatmul.f32.gmra.mxu0 %v3899
      %v4014 = vpop.f32.mrf.mxu0
      %v4015 = vadd.f32 0.0, %v4014
      %4016 = vmatmul.f32.gmra.mxu0 %v3902
      %v4017 = vpop.f32.mrf.mxu0
      %v4018 = vadd.f32 0.0, %v4017
      %4019 = vdwg.mxu0
      %v4020 = vadd.f32 %v3711, %v3925
      %v4021 = vadd.f32 %v3712, %v3928
      %v4022 = vadd.f32 %v3713, %v3931
      %v4023 = vadd.f32 %v3714, %v3934
      %v4024 = vadd.f32 %v3715, %v3937
      %v4025 = vadd.f32 %v3716, %v3940
      %v4026 = vadd.f32 %v3717, %v3943
      %v4027 = vadd.f32 %v3718, %v3946
      %v4028 = vadd.f32 %v3719, %v3949
      %v4029 = vadd.f32 %v3720, %v3952
      %v4030 = vadd.f32 %v3721, %v3955
      %v4031 = vadd.f32 %v3722, %v3958
      %v4032 = vadd.f32 %v3723, %v3961
      %v4033 = vadd.f32 %v3724, %v3964
      %v4034 = vadd.f32 %v3725, %v3967
      %v4035 = vadd.f32 %v3726, %v3970
      %v4036 = vadd.f32 %v3727, %v3973
      %v4037 = vadd.f32 %v3728, %v3976
      %v4038 = vadd.f32 %v3729, %v3979
      %v4039 = vadd.f32 %v3730, %v3982
      %v4040 = vadd.f32 %v3731, %v3985
      %v4041 = vadd.f32 %v3732, %v3988
      %v4042 = vadd.f32 %v3733, %v3991
      %v4043 = vadd.f32 %v3734, %v3994
      %v4044 = vadd.f32 %v3735, %v3997
      %v4045 = vadd.f32 %v3736, %v4000
      %v4046 = vadd.f32 %v3737, %v4003
      %v4047 = vadd.f32 %v3738, %v4006
      %v4048 = vadd.f32 %v3739, %v4009
      %v4049 = vadd.f32 %v3740, %v4012
      %v4050 = vadd.f32 %v3741, %v4015
      %v4051 = vadd.f32 %v3742, %v4018
      %v4052 = vld [vmem:[#allocation3 + $0x1] sm:$0xff]
      %v4053 = vld [vmem:[#allocation3 + $0x9] sm:$0xff]
      %v4054 = vld [vmem:[#allocation3 + $0x11] sm:$0xff]
      %v4055 = vld [vmem:[#allocation3 + $0x19] sm:$0xff]
      %v4056 = vld [vmem:[#allocation3 + $0x21] sm:$0xff]
      %v4057 = vld [vmem:[#allocation3 + $0x29] sm:$0xff]
      %v4058 = vld [vmem:[#allocation3 + $0x31] sm:$0xff]
      %v4059 = vld [vmem:[#allocation3 + $0x39] sm:$0xff]
      %v4060 = vld [vmem:[#allocation3 + $0x41] sm:$0xff]
      %v4061 = vld [vmem:[#allocation3 + $0x49] sm:$0xff]
      %v4062 = vld [vmem:[#allocation3 + $0x51] sm:$0xff]
      %v4063 = vld [vmem:[#allocation3 + $0x59] sm:$0xff]
      %v4064 = vld [vmem:[#allocation3 + $0x61] sm:$0xff]
      %v4065 = vld [vmem:[#allocation3 + $0x69] sm:$0xff]
      %v4066 = vld [vmem:[#allocation3 + $0x71] sm:$0xff]
      %v4067 = vld [vmem:[#allocation3 + $0x79] sm:$0xff]
      %v4068 = vld [vmem:[#allocation3 + $0x81] sm:$0xff]
      %v4069 = vld [vmem:[#allocation3 + $0x89] sm:$0xff]
      %v4070 = vld [vmem:[#allocation3 + $0x91] sm:$0xff]
      %v4071 = vld [vmem:[#allocation3 + $0x99] sm:$0xff]
      %v4072 = vld [vmem:[#allocation3 + $0xa1] sm:$0xff]
      %v4073 = vld [vmem:[#allocation3 + $0xa9] sm:$0xff]
      %v4074 = vld [vmem:[#allocation3 + $0xb1] sm:$0xff]
      %v4075 = vld [vmem:[#allocation3 + $0xb9] sm:$0xff]
      %v4076 = vld [vmem:[#allocation3 + $0xc1] sm:$0xff]
      %v4077 = vld [vmem:[#allocation3 + $0xc9] sm:$0xff]
      %v4078 = vld [vmem:[#allocation3 + $0xd1] sm:$0xff]
      %v4079 = vld [vmem:[#allocation3 + $0xd9] sm:$0xff]
      %v4080 = vld [vmem:[#allocation3 + $0xe1] sm:$0xff]
      %v4081 = vld [vmem:[#allocation3 + $0xe9] sm:$0xff]
      %v4082 = vld [vmem:[#allocation3 + $0xf1] sm:$0xff]
      %v4083 = vld [vmem:[#allocation3 + $0xf9] sm:$0xff]
      %s4084 = scalar_lea.vmem %s3, 4
      %v4085 = vld [vmem:[%s4084] sm:$0xf]
      %v4087 = vsel %vm225, %v4052, 0
      %v4090 = vsel %vm225, %v4053, 0
      %v4093 = vsel %vm225, %v4054, 0
      %v4096 = vsel %vm225, %v4055, 0
      %v4099 = vsel %vm225, %v4056, 0
      %v4102 = vsel %vm225, %v4057, 0
      %v4105 = vsel %vm225, %v4058, 0
      %v4108 = vsel %vm225, %v4059, 0
      %v4111 = vsel %vm225, %v4060, 0
      %v4114 = vsel %vm225, %v4061, 0
      %v4117 = vsel %vm225, %v4062, 0
      %v4120 = vsel %vm225, %v4063, 0
      %v4123 = vsel %vm225, %v4064, 0
      %v4126 = vsel %vm225, %v4065, 0
      %v4129 = vsel %vm225, %v4066, 0
      %v4132 = vsel %vm225, %v4067, 0
      %v4135 = vsel %vm225, %v4068, 0
      %v4138 = vsel %vm225, %v4069, 0
      %v4141 = vsel %vm225, %v4070, 0
      %v4144 = vsel %vm225, %v4071, 0
      %v4147 = vsel %vm225, %v4072, 0
      %v4150 = vsel %vm225, %v4073, 0
      %v4153 = vsel %vm225, %v4074, 0
      %v4156 = vsel %vm225, %v4075, 0
      %v4159 = vsel %vm225, %v4076, 0
      %v4162 = vsel %vm225, %v4077, 0
      %v4165 = vsel %vm225, %v4078, 0
      %v4168 = vsel %vm225, %v4079, 0
      %v4171 = vsel %vm225, %v4080, 0
      %v4174 = vsel %vm225, %v4081, 0
      %v4177 = vsel %vm225, %v4082, 0
      %v4180 = vsel %vm225, %v4083, 0
      %v4183 = vsel %vm1014, %v4085, 0
      %4185 = vmatpush.msra.mxu0 0.0
      %4186 = vmatpush.msra.mxu0 0.0
      %4187 = vmatpush.msra.mxu0 0.0
      %4188 = vmatpush.msra.mxu0 0.0
      %4189 = vmatpush.msra.mxu0 0.0
      %4190 = vmatpush.msra.mxu0 0.0
      %4191 = vmatpush.msra.mxu0 0.0
      %4192 = vmatpush.msra.mxu0 0.0
      %4193 = vmatpush.msra.mxu0 0.0
      %4194 = vmatpush.msra.mxu0 0.0
      %4195 = vmatpush.msra.mxu0 0.0
      %4196 = vmatpush.msra.mxu0 0.0
      %4197 = vmatpush.msra.mxu0 0.0
      %4198 = vmatpush.msra.mxu0 0.0
      %4199 = vmatpush.msra.mxu0 0.0
      %4200 = vmatpush.msra.mxu0 %v4183
      %4201 = vmatmul.f32.gmra.mxu0 %v4087
      %v4202 = vpop.f32.mrf.mxu0
      %v4203 = vadd.f32 0.0, %v4202
      %4204 = vmatmul.f32.gmra.mxu0 %v4090
      %v4205 = vpop.f32.mrf.mxu0
      %v4206 = vadd.f32 0.0, %v4205
      %4207 = vmatmul.f32.gmra.mxu0 %v4093
      %v4208 = vpop.f32.mrf.mxu0
      %v4209 = vadd.f32 0.0, %v4208
      %4210 = vmatmul.f32.gmra.mxu0 %v4096
      %v4211 = vpop.f32.mrf.mxu0
      %v4212 = vadd.f32 0.0, %v4211
      %4213 = vmatmul.f32.gmra.mxu0 %v4099
      %v4214 = vpop.f32.mrf.mxu0
      %v4215 = vadd.f32 0.0, %v4214
      %4216 = vmatmul.f32.gmra.mxu0 %v4102
      %v4217 = vpop.f32.mrf.mxu0
      %v4218 = vadd.f32 0.0, %v4217
      %4219 = vmatmul.f32.gmra.mxu0 %v4105
      %v4220 = vpop.f32.mrf.mxu0
      %v4221 = vadd.f32 0.0, %v4220
      %4222 = vmatmul.f32.gmra.mxu0 %v4108
      %v4223 = vpop.f32.mrf.mxu0
      %v4224 = vadd.f32 0.0, %v4223
      %4225 = vmatmul.f32.gmra.mxu0 %v4111
      %v4226 = vpop.f32.mrf.mxu0
      %v4227 = vadd.f32 0.0, %v4226
      %4228 = vmatmul.f32.gmra.mxu0 %v4114
      %v4229 = vpop.f32.mrf.mxu0
      %v4230 = vadd.f32 0.0, %v4229
      %4231 = vmatmul.f32.gmra.mxu0 %v4117
      %v4232 = vpop.f32.mrf.mxu0
      %v4233 = vadd.f32 0.0, %v4232
      %4234 = vmatmul.f32.gmra.mxu0 %v4120
      %v4235 = vpop.f32.mrf.mxu0
      %v4236 = vadd.f32 0.0, %v4235
      %4237 = vmatmul.f32.gmra.mxu0 %v4123
      %v4238 = vpop.f32.mrf.mxu0
      %v4239 = vadd.f32 0.0, %v4238
      %4240 = vmatmul.f32.gmra.mxu0 %v4126
      %v4241 = vpop.f32.mrf.mxu0
      %v4242 = vadd.f32 0.0, %v4241
      %4243 = vmatmul.f32.gmra.mxu0 %v4129
      %v4244 = vpop.f32.mrf.mxu0
      %v4245 = vadd.f32 0.0, %v4244
      %4246 = vmatmul.f32.gmra.mxu0 %v4132
      %v4247 = vpop.f32.mrf.mxu0
      %v4248 = vadd.f32 0.0, %v4247
      %4249 = vmatmul.f32.gmra.mxu0 %v4135
      %v4250 = vpop.f32.mrf.mxu0
      %v4251 = vadd.f32 0.0, %v4250
      %4252 = vmatmul.f32.gmra.mxu0 %v4138
      %v4253 = vpop.f32.mrf.mxu0
      %v4254 = vadd.f32 0.0, %v4253
      %4255 = vmatmul.f32.gmra.mxu0 %v4141
      %v4256 = vpop.f32.mrf.mxu0
      %v4257 = vadd.f32 0.0, %v4256
      %4258 = vmatmul.f32.gmra.mxu0 %v4144
      %v4259 = vpop.f32.mrf.mxu0
      %v4260 = vadd.f32 0.0, %v4259
      %4261 = vmatmul.f32.gmra.mxu0 %v4147
      %v4262 = vpop.f32.mrf.mxu0
      %v4263 = vadd.f32 0.0, %v4262
      %4264 = vmatmul.f32.gmra.mxu0 %v4150
      %v4265 = vpop.f32.mrf.mxu0
      %v4266 = vadd.f32 0.0, %v4265
      %4267 = vmatmul.f32.gmra.mxu0 %v4153
      %v4268 = vpop.f32.mrf.mxu0
      %v4269 = vadd.f32 0.0, %v4268
      %4270 = vmatmul.f32.gmra.mxu0 %v4156
      %v4271 = vpop.f32.mrf.mxu0
      %v4272 = vadd.f32 0.0, %v4271
      %4273 = vmatmul.f32.gmra.mxu0 %v4159
      %v4274 = vpop.f32.mrf.mxu0
      %v4275 = vadd.f32 0.0, %v4274
      %4276 = vmatmul.f32.gmra.mxu0 %v4162
      %v4277 = vpop.f32.mrf.mxu0
      %v4278 = vadd.f32 0.0, %v4277
      %4279 = vmatmul.f32.gmra.mxu0 %v4165
      %v4280 = vpop.f32.mrf.mxu0
      %v4281 = vadd.f32 0.0, %v4280
      %4282 = vmatmul.f32.gmra.mxu0 %v4168
      %v4283 = vpop.f32.mrf.mxu0
      %v4284 = vadd.f32 0.0, %v4283
      %4285 = vmatmul.f32.gmra.mxu0 %v4171
      %v4286 = vpop.f32.mrf.mxu0
      %v4287 = vadd.f32 0.0, %v4286
      %4288 = vmatmul.f32.gmra.mxu0 %v4174
      %v4289 = vpop.f32.mrf.mxu0
      %v4290 = vadd.f32 0.0, %v4289
      %4291 = vmatmul.f32.gmra.mxu0 %v4177
      %v4292 = vpop.f32.mrf.mxu0
      %v4293 = vadd.f32 0.0, %v4292
      %4294 = vmatmul.f32.gmra.mxu0 %v4180
      %v4295 = vpop.f32.mrf.mxu0
      %v4296 = vadd.f32 0.0, %v4295
      %4297 = vdwg.mxu0
      %v4298 = vadd.f32 %v4020, %v4203
      %v4299 = vadd.f32 %v4021, %v4206
      %v4300 = vadd.f32 %v4022, %v4209
      %v4301 = vadd.f32 %v4023, %v4212
      %v4302 = vadd.f32 %v4024, %v4215
      %v4303 = vadd.f32 %v4025, %v4218
      %v4304 = vadd.f32 %v4026, %v4221
      %v4305 = vadd.f32 %v4027, %v4224
      %v4306 = vadd.f32 %v4028, %v4227
      %v4307 = vadd.f32 %v4029, %v4230
      %v4308 = vadd.f32 %v4030, %v4233
      %v4309 = vadd.f32 %v4031, %v4236
      %v4310 = vadd.f32 %v4032, %v4239
      %v4311 = vadd.f32 %v4033, %v4242
      %v4312 = vadd.f32 %v4034, %v4245
      %v4313 = vadd.f32 %v4035, %v4248
      %v4314 = vadd.f32 %v4036, %v4251
      %v4315 = vadd.f32 %v4037, %v4254
      %v4316 = vadd.f32 %v4038, %v4257
      %v4317 = vadd.f32 %v4039, %v4260
      %v4318 = vadd.f32 %v4040, %v4263
      %v4319 = vadd.f32 %v4041, %v4266
      %v4320 = vadd.f32 %v4042, %v4269
      %v4321 = vadd.f32 %v4043, %v4272
      %v4322 = vadd.f32 %v4044, %v4275
      %v4323 = vadd.f32 %v4045, %v4278
      %v4324 = vadd.f32 %v4046, %v4281
      %v4325 = vadd.f32 %v4047, %v4284
      %v4326 = vadd.f32 %v4048, %v4287
      %v4327 = vadd.f32 %v4049, %v4290
      %v4328 = vadd.f32 %v4050, %v4293
      %v4329 = vadd.f32 %v4051, %v4296
      %v4330 = vld [vmem:[#allocation3 + $0x2] sm:$0xff]
      %v4331 = vld [vmem:[#allocation3 + $0xa] sm:$0xff]
      %v4332 = vld [vmem:[#allocation3 + $0x12] sm:$0xff]
      %v4333 = vld [vmem:[#allocation3 + $0x1a] sm:$0xff]
      %v4334 = vld [vmem:[#allocation3 + $0x22] sm:$0xff]
      %v4335 = vld [vmem:[#allocation3 + $0x2a] sm:$0xff]
      %v4336 = vld [vmem:[#allocation3 + $0x32] sm:$0xff]
      %v4337 = vld [vmem:[#allocation3 + $0x3a] sm:$0xff]
      %v4338 = vld [vmem:[#allocation3 + $0x42] sm:$0xff]
      %v4339 = vld [vmem:[#allocation3 + $0x4a] sm:$0xff]
      %v4340 = vld [vmem:[#allocation3 + $0x52] sm:$0xff]
      %v4341 = vld [vmem:[#allocation3 + $0x5a] sm:$0xff]
      %v4342 = vld [vmem:[#allocation3 + $0x62] sm:$0xff]
      %v4343 = vld [vmem:[#allocation3 + $0x6a] sm:$0xff]
      %v4344 = vld [vmem:[#allocation3 + $0x72] sm:$0xff]
      %v4345 = vld [vmem:[#allocation3 + $0x7a] sm:$0xff]
      %v4346 = vld [vmem:[#allocation3 + $0x82] sm:$0xff]
      %v4347 = vld [vmem:[#allocation3 + $0x8a] sm:$0xff]
      %v4348 = vld [vmem:[#allocation3 + $0x92] sm:$0xff]
      %v4349 = vld [vmem:[#allocation3 + $0x9a] sm:$0xff]
      %v4350 = vld [vmem:[#allocation3 + $0xa2] sm:$0xff]
      %v4351 = vld [vmem:[#allocation3 + $0xaa] sm:$0xff]
      %v4352 = vld [vmem:[#allocation3 + $0xb2] sm:$0xff]
      %v4353 = vld [vmem:[#allocation3 + $0xba] sm:$0xff]
      %v4354 = vld [vmem:[#allocation3 + $0xc2] sm:$0xff]
      %v4355 = vld [vmem:[#allocation3 + $0xca] sm:$0xff]
      %v4356 = vld [vmem:[#allocation3 + $0xd2] sm:$0xff]
      %v4357 = vld [vmem:[#allocation3 + $0xda] sm:$0xff]
      %v4358 = vld [vmem:[#allocation3 + $0xe2] sm:$0xff]
      %v4359 = vld [vmem:[#allocation3 + $0xea] sm:$0xff]
      %v4360 = vld [vmem:[#allocation3 + $0xf2] sm:$0xff]
      %v4361 = vld [vmem:[#allocation3 + $0xfa] sm:$0xff]
      %v4362 = vsel %vm1505, %v4330, 0.0
      %v4363 = vsel %vm1506, %v4331, 0.0
      %v4364 = vsel %vm1507, %v4332, 0.0
      %v4365 = vsel %vm1508, %v4333, 0.0
      %v4366 = vsel %vm1509, %v4334, 0.0
      %v4367 = vsel %vm1510, %v4335, 0.0
      %v4368 = vsel %vm1511, %v4336, 0.0
      %v4369 = vsel %vm1512, %v4337, 0.0
      %v4370 = vsel %vm1513, %v4338, 0.0
      %v4371 = vsel %vm1514, %v4339, 0.0
      %v4372 = vsel %vm1515, %v4340, 0.0
      %v4373 = vsel %vm1516, %v4341, 0.0
      %v4374 = vsel %vm1517, %v4342, 0.0
      %v4375 = vsel %vm1518, %v4343, 0.0
      %v4376 = vsel %vm1519, %v4344, 0.0
      %v4377 = vsel %vm1520, %v4345, 0.0
      %v4378 = vsel %vm1521, %v4346, 0.0
      %v4379 = vsel %vm1522, %v4347, 0.0
      %v4380 = vsel %vm1523, %v4348, 0.0
      %v4381 = vsel %vm1524, %v4349, 0.0
      %v4382 = vsel %vm1525, %v4350, 0.0
      %v4383 = vsel %vm1526, %v4351, 0.0
      %v4384 = vsel %vm1527, %v4352, 0.0
      %v4385 = vsel %vm1528, %v4353, 0.0
      %v4386 = vsel %vm1529, %v4354, 0.0
      %v4387 = vsel %vm1530, %v4355, 0.0
      %v4388 = vsel %vm1531, %v4356, 0.0
      %v4389 = vsel %vm1532, %v4357, 0.0
      %v4390 = vsel %vm1533, %v4358, 0.0
      %v4391 = vsel %vm1534, %v4359, 0.0
      %v4392 = vsel %vm1535, %v4360, 0.0
      %v4393 = vsel %vm1536, %v4361, 0.0
      %s4394 = scalar_lea.vmem %s3, 8
      %v4395 = vld [vmem:[%s4394] sm:$0xf]
      %v4397 = vsel %vm225, %v4362, 0
      %v4400 = vsel %vm225, %v4363, 0
      %v4403 = vsel %vm225, %v4364, 0
      %v4406 = vsel %vm225, %v4365, 0
      %v4409 = vsel %vm225, %v4366, 0
      %v4412 = vsel %vm225, %v4367, 0
      %v4415 = vsel %vm225, %v4368, 0
      %v4418 = vsel %vm225, %v4369, 0
      %v4421 = vsel %vm225, %v4370, 0
      %v4424 = vsel %vm225, %v4371, 0
      %v4427 = vsel %vm225, %v4372, 0
      %v4430 = vsel %vm225, %v4373, 0
      %v4433 = vsel %vm225, %v4374, 0
      %v4436 = vsel %vm225, %v4375, 0
      %v4439 = vsel %vm225, %v4376, 0
      %v4442 = vsel %vm225, %v4377, 0
      %v4445 = vsel %vm225, %v4378, 0
      %v4448 = vsel %vm225, %v4379, 0
      %v4451 = vsel %vm225, %v4380, 0
      %v4454 = vsel %vm225, %v4381, 0
      %v4457 = vsel %vm225, %v4382, 0
      %v4460 = vsel %vm225, %v4383, 0
      %v4463 = vsel %vm225, %v4384, 0
      %v4466 = vsel %vm225, %v4385, 0
      %v4469 = vsel %vm225, %v4386, 0
      %v4472 = vsel %vm225, %v4387, 0
      %v4475 = vsel %vm225, %v4388, 0
      %v4478 = vsel %vm225, %v4389, 0
      %v4481 = vsel %vm225, %v4390, 0
      %v4484 = vsel %vm225, %v4391, 0
      %v4487 = vsel %vm225, %v4392, 0
      %v4490 = vsel %vm225, %v4393, 0
      %v4493 = vsel %vm1014, %v4395, 0
      %4495 = vmatpush.msra.mxu0 0.0
      %4496 = vmatpush.msra.mxu0 0.0
      %4497 = vmatpush.msra.mxu0 0.0
      %4498 = vmatpush.msra.mxu0 0.0
      %4499 = vmatpush.msra.mxu0 0.0
      %4500 = vmatpush.msra.mxu0 0.0
      %4501 = vmatpush.msra.mxu0 0.0
      %4502 = vmatpush.msra.mxu0 0.0
      %4503 = vmatpush.msra.mxu0 0.0
      %4504 = vmatpush.msra.mxu0 0.0
      %4505 = vmatpush.msra.mxu0 0.0
      %4506 = vmatpush.msra.mxu0 0.0
      %4507 = vmatpush.msra.mxu0 0.0
      %4508 = vmatpush.msra.mxu0 0.0
      %4509 = vmatpush.msra.mxu0 0.0
      %4510 = vmatpush.msra.mxu0 %v4493
      %4511 = vmatmul.f32.gmra.mxu0 %v4397
      %v4512 = vpop.f32.mrf.mxu0
      %v4513 = vadd.f32 0.0, %v4512
      %4514 = vmatmul.f32.gmra.mxu0 %v4400
      %v4515 = vpop.f32.mrf.mxu0
      %v4516 = vadd.f32 0.0, %v4515
      %4517 = vmatmul.f32.gmra.mxu0 %v4403
      %v4518 = vpop.f32.mrf.mxu0
      %v4519 = vadd.f32 0.0, %v4518
      %4520 = vmatmul.f32.gmra.mxu0 %v4406
      %v4521 = vpop.f32.mrf.mxu0
      %v4522 = vadd.f32 0.0, %v4521
      %4523 = vmatmul.f32.gmra.mxu0 %v4409
      %v4524 = vpop.f32.mrf.mxu0
      %v4525 = vadd.f32 0.0, %v4524
      %4526 = vmatmul.f32.gmra.mxu0 %v4412
      %v4527 = vpop.f32.mrf.mxu0
      %v4528 = vadd.f32 0.0, %v4527
      %4529 = vmatmul.f32.gmra.mxu0 %v4415
      %v4530 = vpop.f32.mrf.mxu0
      %v4531 = vadd.f32 0.0, %v4530
      %4532 = vmatmul.f32.gmra.mxu0 %v4418
      %v4533 = vpop.f32.mrf.mxu0
      %v4534 = vadd.f32 0.0, %v4533
      %4535 = vmatmul.f32.gmra.mxu0 %v4421
      %v4536 = vpop.f32.mrf.mxu0
      %v4537 = vadd.f32 0.0, %v4536
      %4538 = vmatmul.f32.gmra.mxu0 %v4424
      %v4539 = vpop.f32.mrf.mxu0
      %v4540 = vadd.f32 0.0, %v4539
      %4541 = vmatmul.f32.gmra.mxu0 %v4427
      %v4542 = vpop.f32.mrf.mxu0
      %v4543 = vadd.f32 0.0, %v4542
      %4544 = vmatmul.f32.gmra.mxu0 %v4430
      %v4545 = vpop.f32.mrf.mxu0
      %v4546 = vadd.f32 0.0, %v4545
      %4547 = vmatmul.f32.gmra.mxu0 %v4433
      %v4548 = vpop.f32.mrf.mxu0
      %v4549 = vadd.f32 0.0, %v4548
      %4550 = vmatmul.f32.gmra.mxu0 %v4436
      %v4551 = vpop.f32.mrf.mxu0
      %v4552 = vadd.f32 0.0, %v4551
      %4553 = vmatmul.f32.gmra.mxu0 %v4439
      %v4554 = vpop.f32.mrf.mxu0
      %v4555 = vadd.f32 0.0, %v4554
      %4556 = vmatmul.f32.gmra.mxu0 %v4442
      %v4557 = vpop.f32.mrf.mxu0
      %v4558 = vadd.f32 0.0, %v4557
      %4559 = vmatmul.f32.gmra.mxu0 %v4445
      %v4560 = vpop.f32.mrf.mxu0
      %v4561 = vadd.f32 0.0, %v4560
      %4562 = vmatmul.f32.gmra.mxu0 %v4448
      %v4563 = vpop.f32.mrf.mxu0
      %v4564 = vadd.f32 0.0, %v4563
      %4565 = vmatmul.f32.gmra.mxu0 %v4451
      %v4566 = vpop.f32.mrf.mxu0
      %v4567 = vadd.f32 0.0, %v4566
      %4568 = vmatmul.f32.gmra.mxu0 %v4454
      %v4569 = vpop.f32.mrf.mxu0
      %v4570 = vadd.f32 0.0, %v4569
      %4571 = vmatmul.f32.gmra.mxu0 %v4457
      %v4572 = vpop.f32.mrf.mxu0
      %v4573 = vadd.f32 0.0, %v4572
      %4574 = vmatmul.f32.gmra.mxu0 %v4460
      %v4575 = vpop.f32.mrf.mxu0
      %v4576 = vadd.f32 0.0, %v4575
      %4577 = vmatmul.f32.gmra.mxu0 %v4463
      %v4578 = vpop.f32.mrf.mxu0
      %v4579 = vadd.f32 0.0, %v4578
      %4580 = vmatmul.f32.gmra.mxu0 %v4466
      %v4581 = vpop.f32.mrf.mxu0
      %v4582 = vadd.f32 0.0, %v4581
      %4583 = vmatmul.f32.gmra.mxu0 %v4469
      %v4584 = vpop.f32.mrf.mxu0
      %v4585 = vadd.f32 0.0, %v4584
      %4586 = vmatmul.f32.gmra.mxu0 %v4472
      %v4587 = vpop.f32.mrf.mxu0
      %v4588 = vadd.f32 0.0, %v4587
      %4589 = vmatmul.f32.gmra.mxu0 %v4475
      %v4590 = vpop.f32.mrf.mxu0
      %v4591 = vadd.f32 0.0, %v4590
      %4592 = vmatmul.f32.gmra.mxu0 %v4478
      %v4593 = vpop.f32.mrf.mxu0
      %v4594 = vadd.f32 0.0, %v4593
      %4595 = vmatmul.f32.gmra.mxu0 %v4481
      %v4596 = vpop.f32.mrf.mxu0
      %v4597 = vadd.f32 0.0, %v4596
      %4598 = vmatmul.f32.gmra.mxu0 %v4484
      %v4599 = vpop.f32.mrf.mxu0
      %v4600 = vadd.f32 0.0, %v4599
      %4601 = vmatmul.f32.gmra.mxu0 %v4487
      %v4602 = vpop.f32.mrf.mxu0
      %v4603 = vadd.f32 0.0, %v4602
      %4604 = vmatmul.f32.gmra.mxu0 %v4490
      %v4605 = vpop.f32.mrf.mxu0
      %v4606 = vadd.f32 0.0, %v4605
      %4607 = vdwg.mxu0
      %v4608 = vadd.f32 %v4298, %v4513
      %v4609 = vadd.f32 %v4299, %v4516
      %v4610 = vadd.f32 %v4300, %v4519
      %v4611 = vadd.f32 %v4301, %v4522
      %v4612 = vadd.f32 %v4302, %v4525
      %v4613 = vadd.f32 %v4303, %v4528
      %v4614 = vadd.f32 %v4304, %v4531
      %v4615 = vadd.f32 %v4305, %v4534
      %v4616 = vadd.f32 %v4306, %v4537
      %v4617 = vadd.f32 %v4307, %v4540
      %v4618 = vadd.f32 %v4308, %v4543
      %v4619 = vadd.f32 %v4309, %v4546
      %v4620 = vadd.f32 %v4310, %v4549
      %v4621 = vadd.f32 %v4311, %v4552
      %v4622 = vadd.f32 %v4312, %v4555
      %v4623 = vadd.f32 %v4313, %v4558
      %v4624 = vadd.f32 %v4314, %v4561
      %v4625 = vadd.f32 %v4315, %v4564
      %v4626 = vadd.f32 %v4316, %v4567
      %v4627 = vadd.f32 %v4317, %v4570
      %v4628 = vadd.f32 %v4318, %v4573
      %v4629 = vadd.f32 %v4319, %v4576
      %v4630 = vadd.f32 %v4320, %v4579
      %v4631 = vadd.f32 %v4321, %v4582
      %v4632 = vadd.f32 %v4322, %v4585
      %v4633 = vadd.f32 %v4323, %v4588
      %v4634 = vadd.f32 %v4324, %v4591
      %v4635 = vadd.f32 %v4325, %v4594
      %v4636 = vadd.f32 %v4326, %v4597
      %v4637 = vadd.f32 %v4327, %v4600
      %v4638 = vadd.f32 %v4328, %v4603
      %v4639 = vadd.f32 %v4329, %v4606
      %v4640 = vld [vmem:[#allocation3 + $0x10] sm:$0xff]
      %v4641 = vld [vmem:[#allocation3 + $0x18] sm:$0xff]
      %v4642 = vld [vmem:[#allocation3 + $0x20] sm:$0xff]
      %v4643 = vld [vmem:[#allocation3 + $0x28] sm:$0xff]
      %v4644 = vld [vmem:[#allocation3 + $0x30] sm:$0xff]
      %v4645 = vld [vmem:[#allocation3 + $0x38] sm:$0xff]
      %v4646 = vld [vmem:[#allocation3 + $0x40] sm:$0xff]
      %v4647 = vld [vmem:[#allocation3 + $0x48] sm:$0xff]
      %v4648 = vld [vmem:[#allocation3 + $0x50] sm:$0xff]
      %v4649 = vld [vmem:[#allocation3 + $0x58] sm:$0xff]
      %v4650 = vld [vmem:[#allocation3 + $0x60] sm:$0xff]
      %v4651 = vld [vmem:[#allocation3 + $0x68] sm:$0xff]
      %v4652 = vld [vmem:[#allocation3 + $0x70] sm:$0xff]
      %v4653 = vld [vmem:[#allocation3 + $0x78] sm:$0xff]
      %v4654 = vld [vmem:[#allocation3 + $0x80] sm:$0xff]
      %v4655 = vld [vmem:[#allocation3 + $0x88] sm:$0xff]
      %v4656 = vld [vmem:[#allocation3 + $0x90] sm:$0xff]
      %v4657 = vld [vmem:[#allocation3 + $0x98] sm:$0xff]
      %v4658 = vld [vmem:[#allocation3 + $0xa0] sm:$0xff]
      %v4659 = vld [vmem:[#allocation3 + $0xa8] sm:$0xff]
      %v4660 = vld [vmem:[#allocation3 + $0xb0] sm:$0xff]
      %v4661 = vld [vmem:[#allocation3 + $0xb8] sm:$0xff]
      %v4662 = vld [vmem:[#allocation3 + $0xc0] sm:$0xff]
      %v4663 = vld [vmem:[#allocation3 + $0xc8] sm:$0xff]
      %v4664 = vld [vmem:[#allocation3 + $0xd0] sm:$0xff]
      %v4665 = vld [vmem:[#allocation3 + $0xd8] sm:$0xff]
      %v4666 = vld [vmem:[#allocation3 + $0xe0] sm:$0xff]
      %v4667 = vld [vmem:[#allocation3 + $0xe8] sm:$0xff]
      %v4668 = vld [vmem:[#allocation3 + $0xf0] sm:$0xff]
      %v4669 = vld [vmem:[#allocation3 + $0xf8] sm:$0xff]
      %v4670 = vld [vmem:[#allocation3 + $0x100] sm:$0xff]
      %v4671 = vld [vmem:[#allocation3 + $0x108] sm:$0xff]
      %v4672 = vsel %vm853, %v4640, 0.0
      %v4673 = vsel %vm854, %v4641, 0.0
      %v4674 = vsel %vm855, %v4642, 0.0
      %v4675 = vsel %vm856, %v4643, 0.0
      %v4676 = vsel %vm857, %v4644, 0.0
      %v4677 = vsel %vm858, %v4645, 0.0
      %v4678 = vsel %vm859, %v4646, 0.0
      %v4679 = vsel %vm860, %v4647, 0.0
      %v4680 = vsel %vm861, %v4648, 0.0
      %v4681 = vsel %vm862, %v4649, 0.0
      %v4682 = vsel %vm863, %v4650, 0.0
      %v4683 = vsel %vm864, %v4651, 0.0
      %v4684 = vsel %vm865, %v4652, 0.0
      %v4685 = vsel %vm866, %v4653, 0.0
      %v4686 = vsel %vm867, %v4654, 0.0
      %v4687 = vsel %vm868, %v4655, 0.0
      %v4688 = vsel %vm869, %v4656, 0.0
      %v4689 = vsel %vm870, %v4657, 0.0
      %v4690 = vsel %vm871, %v4658, 0.0
      %v4691 = vsel %vm872, %v4659, 0.0
      %v4692 = vsel %vm873, %v4660, 0.0
      %v4693 = vsel %vm874, %v4661, 0.0
      %v4694 = vsel %vm875, %v4662, 0.0
      %v4695 = vsel %vm876, %v4663, 0.0
      %v4696 = vsel %vm877, %v4664, 0.0
      %v4697 = vsel %vm878, %v4665, 0.0
      %v4698 = vsel %vm879, %v4666, 0.0
      %v4699 = vsel %vm880, %v4667, 0.0
      %v4700 = vsel %vm881, %v4668, 0.0
      %v4701 = vsel %vm882, %v4669, 0.0
      %v4702 = vsel %vm883, %v4670, 0.0
      %v4703 = vsel %vm884, %v4671, 0.0
      %s4704 = scalar_lea.vmem %s3, 12
      %v4705 = vld [vmem:[%s4704] sm:$0xf]
      %v4707 = vsel %vm225, %v4672, 0
      %v4710 = vsel %vm225, %v4673, 0
      %v4713 = vsel %vm225, %v4674, 0
      %v4716 = vsel %vm225, %v4675, 0
      %v4719 = vsel %vm225, %v4676, 0
      %v4722 = vsel %vm225, %v4677, 0
      %v4725 = vsel %vm225, %v4678, 0
      %v4728 = vsel %vm225, %v4679, 0
      %v4731 = vsel %vm225, %v4680, 0
      %v4734 = vsel %vm225, %v4681, 0
      %v4737 = vsel %vm225, %v4682, 0
      %v4740 = vsel %vm225, %v4683, 0
      %v4743 = vsel %vm225, %v4684, 0
      %v4746 = vsel %vm225, %v4685, 0
      %v4749 = vsel %vm225, %v4686, 0
      %v4752 = vsel %vm225, %v4687, 0
      %v4755 = vsel %vm225, %v4688, 0
      %v4758 = vsel %vm225, %v4689, 0
      %v4761 = vsel %vm225, %v4690, 0
      %v4764 = vsel %vm225, %v4691, 0
      %v4767 = vsel %vm225, %v4692, 0
      %v4770 = vsel %vm225, %v4693, 0
      %v4773 = vsel %vm225, %v4694, 0
      %v4776 = vsel %vm225, %v4695, 0
      %v4779 = vsel %vm225, %v4696, 0
      %v4782 = vsel %vm225, %v4697, 0
      %v4785 = vsel %vm225, %v4698, 0
      %v4788 = vsel %vm225, %v4699, 0
      %v4791 = vsel %vm225, %v4700, 0
      %v4794 = vsel %vm225, %v4701, 0
      %v4797 = vsel %vm225, %v4702, 0
      %v4800 = vsel %vm225, %v4703, 0
      %v4803 = vsel %vm1014, %v4705, 0
      %4805 = vmatpush.msra.mxu0 0.0
      %4806 = vmatpush.msra.mxu0 0.0
      %4807 = vmatpush.msra.mxu0 0.0
      %4808 = vmatpush.msra.mxu0 0.0
      %4809 = vmatpush.msra.mxu0 0.0
      %4810 = vmatpush.msra.mxu0 0.0
      %4811 = vmatpush.msra.mxu0 0.0
      %4812 = vmatpush.msra.mxu0 0.0
      %4813 = vmatpush.msra.mxu0 0.0
      %4814 = vmatpush.msra.mxu0 0.0
      %4815 = vmatpush.msra.mxu0 0.0
      %4816 = vmatpush.msra.mxu0 0.0
      %4817 = vmatpush.msra.mxu0 0.0
      %4818 = vmatpush.msra.mxu0 0.0
      %4819 = vmatpush.msra.mxu0 0.0
      %4820 = vmatpush.msra.mxu0 %v4803
      %4821 = vmatmul.f32.gmra.mxu0 %v4707
      %v4822 = vpop.f32.mrf.mxu0
      %v4823 = vadd.f32 0.0, %v4822
      %4824 = vmatmul.f32.gmra.mxu0 %v4710
      %v4825 = vpop.f32.mrf.mxu0
      %v4826 = vadd.f32 0.0, %v4825
      %4827 = vmatmul.f32.gmra.mxu0 %v4713
      %v4828 = vpop.f32.mrf.mxu0
      %v4829 = vadd.f32 0.0, %v4828
      %4830 = vmatmul.f32.gmra.mxu0 %v4716
      %v4831 = vpop.f32.mrf.mxu0
      %v4832 = vadd.f32 0.0, %v4831
      %4833 = vmatmul.f32.gmra.mxu0 %v4719
      %v4834 = vpop.f32.mrf.mxu0
      %v4835 = vadd.f32 0.0, %v4834
      %4836 = vmatmul.f32.gmra.mxu0 %v4722
      %v4837 = vpop.f32.mrf.mxu0
      %v4838 = vadd.f32 0.0, %v4837
      %4839 = vmatmul.f32.gmra.mxu0 %v4725
      %v4840 = vpop.f32.mrf.mxu0
      %v4841 = vadd.f32 0.0, %v4840
      %4842 = vmatmul.f32.gmra.mxu0 %v4728
      %v4843 = vpop.f32.mrf.mxu0
      %v4844 = vadd.f32 0.0, %v4843
      %4845 = vmatmul.f32.gmra.mxu0 %v4731
      %v4846 = vpop.f32.mrf.mxu0
      %v4847 = vadd.f32 0.0, %v4846
      %4848 = vmatmul.f32.gmra.mxu0 %v4734
      %v4849 = vpop.f32.mrf.mxu0
      %v4850 = vadd.f32 0.0, %v4849
      %4851 = vmatmul.f32.gmra.mxu0 %v4737
      %v4852 = vpop.f32.mrf.mxu0
      %v4853 = vadd.f32 0.0, %v4852
      %4854 = vmatmul.f32.gmra.mxu0 %v4740
      %v4855 = vpop.f32.mrf.mxu0
      %v4856 = vadd.f32 0.0, %v4855
      %4857 = vmatmul.f32.gmra.mxu0 %v4743
      %v4858 = vpop.f32.mrf.mxu0
      %v4859 = vadd.f32 0.0, %v4858
      %4860 = vmatmul.f32.gmra.mxu0 %v4746
      %v4861 = vpop.f32.mrf.mxu0
      %v4862 = vadd.f32 0.0, %v4861
      %4863 = vmatmul.f32.gmra.mxu0 %v4749
      %v4864 = vpop.f32.mrf.mxu0
      %v4865 = vadd.f32 0.0, %v4864
      %4866 = vmatmul.f32.gmra.mxu0 %v4752
      %v4867 = vpop.f32.mrf.mxu0
      %v4868 = vadd.f32 0.0, %v4867
      %4869 = vmatmul.f32.gmra.mxu0 %v4755
      %v4870 = vpop.f32.mrf.mxu0
      %v4871 = vadd.f32 0.0, %v4870
      %4872 = vmatmul.f32.gmra.mxu0 %v4758
      %v4873 = vpop.f32.mrf.mxu0
      %v4874 = vadd.f32 0.0, %v4873
      %4875 = vmatmul.f32.gmra.mxu0 %v4761
      %v4876 = vpop.f32.mrf.mxu0
      %v4877 = vadd.f32 0.0, %v4876
      %4878 = vmatmul.f32.gmra.mxu0 %v4764
      %v4879 = vpop.f32.mrf.mxu0
      %v4880 = vadd.f32 0.0, %v4879
      %4881 = vmatmul.f32.gmra.mxu0 %v4767
      %v4882 = vpop.f32.mrf.mxu0
      %v4883 = vadd.f32 0.0, %v4882
      %4884 = vmatmul.f32.gmra.mxu0 %v4770
      %v4885 = vpop.f32.mrf.mxu0
      %v4886 = vadd.f32 0.0, %v4885
      %4887 = vmatmul.f32.gmra.mxu0 %v4773
      %v4888 = vpop.f32.mrf.mxu0
      %v4889 = vadd.f32 0.0, %v4888
      %4890 = vmatmul.f32.gmra.mxu0 %v4776
      %v4891 = vpop.f32.mrf.mxu0
      %v4892 = vadd.f32 0.0, %v4891
      %4893 = vmatmul.f32.gmra.mxu0 %v4779
      %v4894 = vpop.f32.mrf.mxu0
      %v4895 = vadd.f32 0.0, %v4894
      %4896 = vmatmul.f32.gmra.mxu0 %v4782
      %v4897 = vpop.f32.mrf.mxu0
      %v4898 = vadd.f32 0.0, %v4897
      %4899 = vmatmul.f32.gmra.mxu0 %v4785
      %v4900 = vpop.f32.mrf.mxu0
      %v4901 = vadd.f32 0.0, %v4900
      %4902 = vmatmul.f32.gmra.mxu0 %v4788
      %v4903 = vpop.f32.mrf.mxu0
      %v4904 = vadd.f32 0.0, %v4903
      %4905 = vmatmul.f32.gmra.mxu0 %v4791
      %v4906 = vpop.f32.mrf.mxu0
      %v4907 = vadd.f32 0.0, %v4906
      %4908 = vmatmul.f32.gmra.mxu0 %v4794
      %v4909 = vpop.f32.mrf.mxu0
      %v4910 = vadd.f32 0.0, %v4909
      %4911 = vmatmul.f32.gmra.mxu0 %v4797
      %v4912 = vpop.f32.mrf.mxu0
      %v4913 = vadd.f32 0.0, %v4912
      %4914 = vmatmul.f32.gmra.mxu0 %v4800
      %v4915 = vpop.f32.mrf.mxu0
      %v4916 = vadd.f32 0.0, %v4915
      %4917 = vdwg.mxu0
      %v4918 = vadd.f32 %v4608, %v4823
      %v4919 = vadd.f32 %v4609, %v4826
      %v4920 = vadd.f32 %v4610, %v4829
      %v4921 = vadd.f32 %v4611, %v4832
      %v4922 = vadd.f32 %v4612, %v4835
      %v4923 = vadd.f32 %v4613, %v4838
      %v4924 = vadd.f32 %v4614, %v4841
      %v4925 = vadd.f32 %v4615, %v4844
      %v4926 = vadd.f32 %v4616, %v4847
      %v4927 = vadd.f32 %v4617, %v4850
      %v4928 = vadd.f32 %v4618, %v4853
      %v4929 = vadd.f32 %v4619, %v4856
      %v4930 = vadd.f32 %v4620, %v4859
      %v4931 = vadd.f32 %v4621, %v4862
      %v4932 = vadd.f32 %v4622, %v4865
      %v4933 = vadd.f32 %v4623, %v4868
      %v4934 = vadd.f32 %v4624, %v4871
      %v4935 = vadd.f32 %v4625, %v4874
      %v4936 = vadd.f32 %v4626, %v4877
      %v4937 = vadd.f32 %v4627, %v4880
      %v4938 = vadd.f32 %v4628, %v4883
      %v4939 = vadd.f32 %v4629, %v4886
      %v4940 = vadd.f32 %v4630, %v4889
      %v4941 = vadd.f32 %v4631, %v4892
      %v4942 = vadd.f32 %v4632, %v4895
      %v4943 = vadd.f32 %v4633, %v4898
      %v4944 = vadd.f32 %v4634, %v4901
      %v4945 = vadd.f32 %v4635, %v4904
      %v4946 = vadd.f32 %v4636, %v4907
      %v4947 = vadd.f32 %v4637, %v4910
      %v4948 = vadd.f32 %v4638, %v4913
      %v4949 = vadd.f32 %v4639, %v4916
      %v4950 = vld [vmem:[#allocation3 + $0x11] sm:$0xff]
      %v4951 = vld [vmem:[#allocation3 + $0x19] sm:$0xff]
      %v4952 = vld [vmem:[#allocation3 + $0x21] sm:$0xff]
      %v4953 = vld [vmem:[#allocation3 + $0x29] sm:$0xff]
      %v4954 = vld [vmem:[#allocation3 + $0x31] sm:$0xff]
      %v4955 = vld [vmem:[#allocation3 + $0x39] sm:$0xff]
      %v4956 = vld [vmem:[#allocation3 + $0x41] sm:$0xff]
      %v4957 = vld [vmem:[#allocation3 + $0x49] sm:$0xff]
      %v4958 = vld [vmem:[#allocation3 + $0x51] sm:$0xff]
      %v4959 = vld [vmem:[#allocation3 + $0x59] sm:$0xff]
      %v4960 = vld [vmem:[#allocation3 + $0x61] sm:$0xff]
      %v4961 = vld [vmem:[#allocation3 + $0x69] sm:$0xff]
      %v4962 = vld [vmem:[#allocation3 + $0x71] sm:$0xff]
      %v4963 = vld [vmem:[#allocation3 + $0x79] sm:$0xff]
      %v4964 = vld [vmem:[#allocation3 + $0x81] sm:$0xff]
      %v4965 = vld [vmem:[#allocation3 + $0x89] sm:$0xff]
      %v4966 = vld [vmem:[#allocation3 + $0x91] sm:$0xff]
      %v4967 = vld [vmem:[#allocation3 + $0x99] sm:$0xff]
      %v4968 = vld [vmem:[#allocation3 + $0xa1] sm:$0xff]
      %v4969 = vld [vmem:[#allocation3 + $0xa9] sm:$0xff]
      %v4970 = vld [vmem:[#allocation3 + $0xb1] sm:$0xff]
      %v4971 = vld [vmem:[#allocation3 + $0xb9] sm:$0xff]
      %v4972 = vld [vmem:[#allocation3 + $0xc1] sm:$0xff]
      %v4973 = vld [vmem:[#allocation3 + $0xc9] sm:$0xff]
      %v4974 = vld [vmem:[#allocation3 + $0xd1] sm:$0xff]
      %v4975 = vld [vmem:[#allocation3 + $0xd9] sm:$0xff]
      %v4976 = vld [vmem:[#allocation3 + $0xe1] sm:$0xff]
      %v4977 = vld [vmem:[#allocation3 + $0xe9] sm:$0xff]
      %v4978 = vld [vmem:[#allocation3 + $0xf1] sm:$0xff]
      %v4979 = vld [vmem:[#allocation3 + $0xf9] sm:$0xff]
      %v4980 = vld [vmem:[#allocation3 + $0x101] sm:$0xff]
      %v4981 = vld [vmem:[#allocation3 + $0x109] sm:$0xff]
      %s4982 = scalar_lea.vmem %s3, 16
      %v4983 = vld [vmem:[%s4982] sm:$0xf]
      %v4985 = vsel %vm225, %v4950, 0
      %v4988 = vsel %vm225, %v4951, 0
      %v4991 = vsel %vm225, %v4952, 0
      %v4994 = vsel %vm225, %v4953, 0
      %v4997 = vsel %vm225, %v4954, 0
      %v5000 = vsel %vm225, %v4955, 0
      %v5003 = vsel %vm225, %v4956, 0
      %v5006 = vsel %vm225, %v4957, 0
      %v5009 = vsel %vm225, %v4958, 0
      %v5012 = vsel %vm225, %v4959, 0
      %v5015 = vsel %vm225, %v4960, 0
      %v5018 = vsel %vm225, %v4961, 0
      %v5021 = vsel %vm225, %v4962, 0
      %v5024 = vsel %vm225, %v4963, 0
      %v5027 = vsel %vm225, %v4964, 0
      %v5030 = vsel %vm225, %v4965, 0
      %v5033 = vsel %vm225, %v4966, 0
      %v5036 = vsel %vm225, %v4967, 0
      %v5039 = vsel %vm225, %v4968, 0
      %v5042 = vsel %vm225, %v4969, 0
      %v5045 = vsel %vm225, %v4970, 0
      %v5048 = vsel %vm225, %v4971, 0
      %v5051 = vsel %vm225, %v4972, 0
      %v5054 = vsel %vm225, %v4973, 0
      %v5057 = vsel %vm225, %v4974, 0
      %v5060 = vsel %vm225, %v4975, 0
      %v5063 = vsel %vm225, %v4976, 0
      %v5066 = vsel %vm225, %v4977, 0
      %v5069 = vsel %vm225, %v4978, 0
      %v5072 = vsel %vm225, %v4979, 0
      %v5075 = vsel %vm225, %v4980, 0
      %v5078 = vsel %vm225, %v4981, 0
      %v5081 = vsel %vm1014, %v4983, 0
      %5083 = vmatpush.msra.mxu0 0.0
      %5084 = vmatpush.msra.mxu0 0.0
      %5085 = vmatpush.msra.mxu0 0.0
      %5086 = vmatpush.msra.mxu0 0.0
      %5087 = vmatpush.msra.mxu0 0.0
      %5088 = vmatpush.msra.mxu0 0.0
      %5089 = vmatpush.msra.mxu0 0.0
      %5090 = vmatpush.msra.mxu0 0.0
      %5091 = vmatpush.msra.mxu0 0.0
      %5092 = vmatpush.msra.mxu0 0.0
      %5093 = vmatpush.msra.mxu0 0.0
      %5094 = vmatpush.msra.mxu0 0.0
      %5095 = vmatpush.msra.mxu0 0.0
      %5096 = vmatpush.msra.mxu0 0.0
      %5097 = vmatpush.msra.mxu0 0.0
      %5098 = vmatpush.msra.mxu0 %v5081
      %5099 = vmatmul.f32.gmra.mxu0 %v4985
      %v5100 = vpop.f32.mrf.mxu0
      %v5101 = vadd.f32 0.0, %v5100
      %5102 = vmatmul.f32.gmra.mxu0 %v4988
      %v5103 = vpop.f32.mrf.mxu0
      %v5104 = vadd.f32 0.0, %v5103
      %5105 = vmatmul.f32.gmra.mxu0 %v4991
      %v5106 = vpop.f32.mrf.mxu0
      %v5107 = vadd.f32 0.0, %v5106
      %5108 = vmatmul.f32.gmra.mxu0 %v4994
      %v5109 = vpop.f32.mrf.mxu0
      %v5110 = vadd.f32 0.0, %v5109
      %5111 = vmatmul.f32.gmra.mxu0 %v4997
      %v5112 = vpop.f32.mrf.mxu0
      %v5113 = vadd.f32 0.0, %v5112
      %5114 = vmatmul.f32.gmra.mxu0 %v5000
      %v5115 = vpop.f32.mrf.mxu0
      %v5116 = vadd.f32 0.0, %v5115
      %5117 = vmatmul.f32.gmra.mxu0 %v5003
      %v5118 = vpop.f32.mrf.mxu0
      %v5119 = vadd.f32 0.0, %v5118
      %5120 = vmatmul.f32.gmra.mxu0 %v5006
      %v5121 = vpop.f32.mrf.mxu0
      %v5122 = vadd.f32 0.0, %v5121
      %5123 = vmatmul.f32.gmra.mxu0 %v5009
      %v5124 = vpop.f32.mrf.mxu0
      %v5125 = vadd.f32 0.0, %v5124
      %5126 = vmatmul.f32.gmra.mxu0 %v5012
      %v5127 = vpop.f32.mrf.mxu0
      %v5128 = vadd.f32 0.0, %v5127
      %5129 = vmatmul.f32.gmra.mxu0 %v5015
      %v5130 = vpop.f32.mrf.mxu0
      %v5131 = vadd.f32 0.0, %v5130
      %5132 = vmatmul.f32.gmra.mxu0 %v5018
      %v5133 = vpop.f32.mrf.mxu0
      %v5134 = vadd.f32 0.0, %v5133
      %5135 = vmatmul.f32.gmra.mxu0 %v5021
      %v5136 = vpop.f32.mrf.mxu0
      %v5137 = vadd.f32 0.0, %v5136
      %5138 = vmatmul.f32.gmra.mxu0 %v5024
      %v5139 = vpop.f32.mrf.mxu0
      %v5140 = vadd.f32 0.0, %v5139
      %5141 = vmatmul.f32.gmra.mxu0 %v5027
      %v5142 = vpop.f32.mrf.mxu0
      %v5143 = vadd.f32 0.0, %v5142
      %5144 = vmatmul.f32.gmra.mxu0 %v5030
      %v5145 = vpop.f32.mrf.mxu0
      %v5146 = vadd.f32 0.0, %v5145
      %5147 = vmatmul.f32.gmra.mxu0 %v5033
      %v5148 = vpop.f32.mrf.mxu0
      %v5149 = vadd.f32 0.0, %v5148
      %5150 = vmatmul.f32.gmra.mxu0 %v5036
      %v5151 = vpop.f32.mrf.mxu0
      %v5152 = vadd.f32 0.0, %v5151
      %5153 = vmatmul.f32.gmra.mxu0 %v5039
      %v5154 = vpop.f32.mrf.mxu0
      %v5155 = vadd.f32 0.0, %v5154
      %5156 = vmatmul.f32.gmra.mxu0 %v5042
      %v5157 = vpop.f32.mrf.mxu0
      %v5158 = vadd.f32 0.0, %v5157
      %5159 = vmatmul.f32.gmra.mxu0 %v5045
      %v5160 = vpop.f32.mrf.mxu0
      %v5161 = vadd.f32 0.0, %v5160
      %5162 = vmatmul.f32.gmra.mxu0 %v5048
      %v5163 = vpop.f32.mrf.mxu0
      %v5164 = vadd.f32 0.0, %v5163
      %5165 = vmatmul.f32.gmra.mxu0 %v5051
      %v5166 = vpop.f32.mrf.mxu0
      %v5167 = vadd.f32 0.0, %v5166
      %5168 = vmatmul.f32.gmra.mxu0 %v5054
      %v5169 = vpop.f32.mrf.mxu0
      %v5170 = vadd.f32 0.0, %v5169
      %5171 = vmatmul.f32.gmra.mxu0 %v5057
      %v5172 = vpop.f32.mrf.mxu0
      %v5173 = vadd.f32 0.0, %v5172
      %5174 = vmatmul.f32.gmra.mxu0 %v5060
      %v5175 = vpop.f32.mrf.mxu0
      %v5176 = vadd.f32 0.0, %v5175
      %5177 = vmatmul.f32.gmra.mxu0 %v5063
      %v5178 = vpop.f32.mrf.mxu0
      %v5179 = vadd.f32 0.0, %v5178
      %5180 = vmatmul.f32.gmra.mxu0 %v5066
      %v5181 = vpop.f32.mrf.mxu0
      %v5182 = vadd.f32 0.0, %v5181
      %5183 = vmatmul.f32.gmra.mxu0 %v5069
      %v5184 = vpop.f32.mrf.mxu0
      %v5185 = vadd.f32 0.0, %v5184
      %5186 = vmatmul.f32.gmra.mxu0 %v5072
      %v5187 = vpop.f32.mrf.mxu0
      %v5188 = vadd.f32 0.0, %v5187
      %5189 = vmatmul.f32.gmra.mxu0 %v5075
      %v5190 = vpop.f32.mrf.mxu0
      %v5191 = vadd.f32 0.0, %v5190
      %5192 = vmatmul.f32.gmra.mxu0 %v5078
      %v5193 = vpop.f32.mrf.mxu0
      %v5194 = vadd.f32 0.0, %v5193
      %5195 = vdwg.mxu0
      %v5196 = vadd.f32 %v4918, %v5101
      %v5197 = vadd.f32 %v4919, %v5104
      %v5198 = vadd.f32 %v4920, %v5107
      %v5199 = vadd.f32 %v4921, %v5110
      %v5200 = vadd.f32 %v4922, %v5113
      %v5201 = vadd.f32 %v4923, %v5116
      %v5202 = vadd.f32 %v4924, %v5119
      %v5203 = vadd.f32 %v4925, %v5122
      %v5204 = vadd.f32 %v4926, %v5125
      %v5205 = vadd.f32 %v4927, %v5128
      %v5206 = vadd.f32 %v4928, %v5131
      %v5207 = vadd.f32 %v4929, %v5134
      %v5208 = vadd.f32 %v4930, %v5137
      %v5209 = vadd.f32 %v4931, %v5140
      %v5210 = vadd.f32 %v4932, %v5143
      %v5211 = vadd.f32 %v4933, %v5146
      %v5212 = vadd.f32 %v4934, %v5149
      %v5213 = vadd.f32 %v4935, %v5152
      %v5214 = vadd.f32 %v4936, %v5155
      %v5215 = vadd.f32 %v4937, %v5158
      %v5216 = vadd.f32 %v4938, %v5161
      %v5217 = vadd.f32 %v4939, %v5164
      %v5218 = vadd.f32 %v4940, %v5167
      %v5219 = vadd.f32 %v4941, %v5170
      %v5220 = vadd.f32 %v4942, %v5173
      %v5221 = vadd.f32 %v4943, %v5176
      %v5222 = vadd.f32 %v4944, %v5179
      %v5223 = vadd.f32 %v4945, %v5182
      %v5224 = vadd.f32 %v4946, %v5185
      %v5225 = vadd.f32 %v4947, %v5188
      %v5226 = vadd.f32 %v4948, %v5191
      %v5227 = vadd.f32 %v4949, %v5194
      %v5228 = vld [vmem:[#allocation3 + $0x12] sm:$0xff]
      %v5229 = vld [vmem:[#allocation3 + $0x1a] sm:$0xff]
      %v5230 = vld [vmem:[#allocation3 + $0x22] sm:$0xff]
      %v5231 = vld [vmem:[#allocation3 + $0x2a] sm:$0xff]
      %v5232 = vld [vmem:[#allocation3 + $0x32] sm:$0xff]
      %v5233 = vld [vmem:[#allocation3 + $0x3a] sm:$0xff]
      %v5234 = vld [vmem:[#allocation3 + $0x42] sm:$0xff]
      %v5235 = vld [vmem:[#allocation3 + $0x4a] sm:$0xff]
      %v5236 = vld [vmem:[#allocation3 + $0x52] sm:$0xff]
      %v5237 = vld [vmem:[#allocation3 + $0x5a] sm:$0xff]
      %v5238 = vld [vmem:[#allocation3 + $0x62] sm:$0xff]
      %v5239 = vld [vmem:[#allocation3 + $0x6a] sm:$0xff]
      %v5240 = vld [vmem:[#allocation3 + $0x72] sm:$0xff]
      %v5241 = vld [vmem:[#allocation3 + $0x7a] sm:$0xff]
      %v5242 = vld [vmem:[#allocation3 + $0x82] sm:$0xff]
      %v5243 = vld [vmem:[#allocation3 + $0x8a] sm:$0xff]
      %v5244 = vld [vmem:[#allocation3 + $0x92] sm:$0xff]
      %v5245 = vld [vmem:[#allocation3 + $0x9a] sm:$0xff]
      %v5246 = vld [vmem:[#allocation3 + $0xa2] sm:$0xff]
      %v5247 = vld [vmem:[#allocation3 + $0xaa] sm:$0xff]
      %v5248 = vld [vmem:[#allocation3 + $0xb2] sm:$0xff]
      %v5249 = vld [vmem:[#allocation3 + $0xba] sm:$0xff]
      %v5250 = vld [vmem:[#allocation3 + $0xc2] sm:$0xff]
      %v5251 = vld [vmem:[#allocation3 + $0xca] sm:$0xff]
      %v5252 = vld [vmem:[#allocation3 + $0xd2] sm:$0xff]
      %v5253 = vld [vmem:[#allocation3 + $0xda] sm:$0xff]
      %v5254 = vld [vmem:[#allocation3 + $0xe2] sm:$0xff]
      %v5255 = vld [vmem:[#allocation3 + $0xea] sm:$0xff]
      %v5256 = vld [vmem:[#allocation3 + $0xf2] sm:$0xff]
      %v5257 = vld [vmem:[#allocation3 + $0xfa] sm:$0xff]
      %v5258 = vld [vmem:[#allocation3 + $0x102] sm:$0xff]
      %v5259 = vld [vmem:[#allocation3 + $0x10a] sm:$0xff]
      %v5260 = vsel %vm1505, %v5228, 0.0
      %v5261 = vsel %vm1506, %v5229, 0.0
      %v5262 = vsel %vm1507, %v5230, 0.0
      %v5263 = vsel %vm1508, %v5231, 0.0
      %v5264 = vsel %vm1509, %v5232, 0.0
      %v5265 = vsel %vm1510, %v5233, 0.0
      %v5266 = vsel %vm1511, %v5234, 0.0
      %v5267 = vsel %vm1512, %v5235, 0.0
      %v5268 = vsel %vm1513, %v5236, 0.0
      %v5269 = vsel %vm1514, %v5237, 0.0
      %v5270 = vsel %vm1515, %v5238, 0.0
      %v5271 = vsel %vm1516, %v5239, 0.0
      %v5272 = vsel %vm1517, %v5240, 0.0
      %v5273 = vsel %vm1518, %v5241, 0.0
      %v5274 = vsel %vm1519, %v5242, 0.0
      %v5275 = vsel %vm1520, %v5243, 0.0
      %v5276 = vsel %vm1521, %v5244, 0.0
      %v5277 = vsel %vm1522, %v5245, 0.0
      %v5278 = vsel %vm1523, %v5246, 0.0
      %v5279 = vsel %vm1524, %v5247, 0.0
      %v5280 = vsel %vm1525, %v5248, 0.0
      %v5281 = vsel %vm1526, %v5249, 0.0
      %v5282 = vsel %vm1527, %v5250, 0.0
      %v5283 = vsel %vm1528, %v5251, 0.0
      %v5284 = vsel %vm1529, %v5252, 0.0
      %v5285 = vsel %vm1530, %v5253, 0.0
      %v5286 = vsel %vm1531, %v5254, 0.0
      %v5287 = vsel %vm1532, %v5255, 0.0
      %v5288 = vsel %vm1533, %v5256, 0.0
      %v5289 = vsel %vm1534, %v5257, 0.0
      %v5290 = vsel %vm1535, %v5258, 0.0
      %v5291 = vsel %vm1536, %v5259, 0.0
      %s5292 = scalar_lea.vmem %s3, 20
      %v5293 = vld [vmem:[%s5292] sm:$0xf]
      %v5295 = vsel %vm225, %v5260, 0
      %v5298 = vsel %vm225, %v5261, 0
      %v5301 = vsel %vm225, %v5262, 0
      %v5304 = vsel %vm225, %v5263, 0
      %v5307 = vsel %vm225, %v5264, 0
      %v5310 = vsel %vm225, %v5265, 0
      %v5313 = vsel %vm225, %v5266, 0
      %v5316 = vsel %vm225, %v5267, 0
      %v5319 = vsel %vm225, %v5268, 0
      %v5322 = vsel %vm225, %v5269, 0
      %v5325 = vsel %vm225, %v5270, 0
      %v5328 = vsel %vm225, %v5271, 0
      %v5331 = vsel %vm225, %v5272, 0
      %v5334 = vsel %vm225, %v5273, 0
      %v5337 = vsel %vm225, %v5274, 0
      %v5340 = vsel %vm225, %v5275, 0
      %v5343 = vsel %vm225, %v5276, 0
      %v5346 = vsel %vm225, %v5277, 0
      %v5349 = vsel %vm225, %v5278, 0
      %v5352 = vsel %vm225, %v5279, 0
      %v5355 = vsel %vm225, %v5280, 0
      %v5358 = vsel %vm225, %v5281, 0
      %v5361 = vsel %vm225, %v5282, 0
      %v5364 = vsel %vm225, %v5283, 0
      %v5367 = vsel %vm225, %v5284, 0
      %v5370 = vsel %vm225, %v5285, 0
      %v5373 = vsel %vm225, %v5286, 0
      %v5376 = vsel %vm225, %v5287, 0
      %v5379 = vsel %vm225, %v5288, 0
      %v5382 = vsel %vm225, %v5289, 0
      %v5385 = vsel %vm225, %v5290, 0
      %v5388 = vsel %vm225, %v5291, 0
      %v5391 = vsel %vm1014, %v5293, 0
      %5393 = vmatpush.msra.mxu0 0.0
      %5394 = vmatpush.msra.mxu0 0.0
      %5395 = vmatpush.msra.mxu0 0.0
      %5396 = vmatpush.msra.mxu0 0.0
      %5397 = vmatpush.msra.mxu0 0.0
      %5398 = vmatpush.msra.mxu0 0.0
      %5399 = vmatpush.msra.mxu0 0.0
      %5400 = vmatpush.msra.mxu0 0.0
      %5401 = vmatpush.msra.mxu0 0.0
      %5402 = vmatpush.msra.mxu0 0.0
      %5403 = vmatpush.msra.mxu0 0.0
      %5404 = vmatpush.msra.mxu0 0.0
      %5405 = vmatpush.msra.mxu0 0.0
      %5406 = vmatpush.msra.mxu0 0.0
      %5407 = vmatpush.msra.mxu0 0.0
      %5408 = vmatpush.msra.mxu0 %v5391
      %5409 = vmatmul.f32.gmra.mxu0 %v5295
      %v5410 = vpop.f32.mrf.mxu0
      %v5411 = vadd.f32 0.0, %v5410
      %5412 = vmatmul.f32.gmra.mxu0 %v5298
      %v5413 = vpop.f32.mrf.mxu0
      %v5414 = vadd.f32 0.0, %v5413
      %5415 = vmatmul.f32.gmra.mxu0 %v5301
      %v5416 = vpop.f32.mrf.mxu0
      %v5417 = vadd.f32 0.0, %v5416
      %5418 = vmatmul.f32.gmra.mxu0 %v5304
      %v5419 = vpop.f32.mrf.mxu0
      %v5420 = vadd.f32 0.0, %v5419
      %5421 = vmatmul.f32.gmra.mxu0 %v5307
      %v5422 = vpop.f32.mrf.mxu0
      %v5423 = vadd.f32 0.0, %v5422
      %5424 = vmatmul.f32.gmra.mxu0 %v5310
      %v5425 = vpop.f32.mrf.mxu0
      %v5426 = vadd.f32 0.0, %v5425
      %5427 = vmatmul.f32.gmra.mxu0 %v5313
      %v5428 = vpop.f32.mrf.mxu0
      %v5429 = vadd.f32 0.0, %v5428
      %5430 = vmatmul.f32.gmra.mxu0 %v5316
      %v5431 = vpop.f32.mrf.mxu0
      %v5432 = vadd.f32 0.0, %v5431
      %5433 = vmatmul.f32.gmra.mxu0 %v5319
      %v5434 = vpop.f32.mrf.mxu0
      %v5435 = vadd.f32 0.0, %v5434
      %5436 = vmatmul.f32.gmra.mxu0 %v5322
      %v5437 = vpop.f32.mrf.mxu0
      %v5438 = vadd.f32 0.0, %v5437
      %5439 = vmatmul.f32.gmra.mxu0 %v5325
      %v5440 = vpop.f32.mrf.mxu0
      %v5441 = vadd.f32 0.0, %v5440
      %5442 = vmatmul.f32.gmra.mxu0 %v5328
      %v5443 = vpop.f32.mrf.mxu0
      %v5444 = vadd.f32 0.0, %v5443
      %5445 = vmatmul.f32.gmra.mxu0 %v5331
      %v5446 = vpop.f32.mrf.mxu0
      %v5447 = vadd.f32 0.0, %v5446
      %5448 = vmatmul.f32.gmra.mxu0 %v5334
      %v5449 = vpop.f32.mrf.mxu0
      %v5450 = vadd.f32 0.0, %v5449
      %5451 = vmatmul.f32.gmra.mxu0 %v5337
      %v5452 = vpop.f32.mrf.mxu0
      %v5453 = vadd.f32 0.0, %v5452
      %5454 = vmatmul.f32.gmra.mxu0 %v5340
      %v5455 = vpop.f32.mrf.mxu0
      %v5456 = vadd.f32 0.0, %v5455
      %5457 = vmatmul.f32.gmra.mxu0 %v5343
      %v5458 = vpop.f32.mrf.mxu0
      %v5459 = vadd.f32 0.0, %v5458
      %5460 = vmatmul.f32.gmra.mxu0 %v5346
      %v5461 = vpop.f32.mrf.mxu0
      %v5462 = vadd.f32 0.0, %v5461
      %5463 = vmatmul.f32.gmra.mxu0 %v5349
      %v5464 = vpop.f32.mrf.mxu0
      %v5465 = vadd.f32 0.0, %v5464
      %5466 = vmatmul.f32.gmra.mxu0 %v5352
      %v5467 = vpop.f32.mrf.mxu0
      %v5468 = vadd.f32 0.0, %v5467
      %5469 = vmatmul.f32.gmra.mxu0 %v5355
      %v5470 = vpop.f32.mrf.mxu0
      %v5471 = vadd.f32 0.0, %v5470
      %5472 = vmatmul.f32.gmra.mxu0 %v5358
      %v5473 = vpop.f32.mrf.mxu0
      %v5474 = vadd.f32 0.0, %v5473
      %5475 = vmatmul.f32.gmra.mxu0 %v5361
      %v5476 = vpop.f32.mrf.mxu0
      %v5477 = vadd.f32 0.0, %v5476
      %5478 = vmatmul.f32.gmra.mxu0 %v5364
      %v5479 = vpop.f32.mrf.mxu0
      %v5480 = vadd.f32 0.0, %v5479
      %5481 = vmatmul.f32.gmra.mxu0 %v5367
      %v5482 = vpop.f32.mrf.mxu0
      %v5483 = vadd.f32 0.0, %v5482
      %5484 = vmatmul.f32.gmra.mxu0 %v5370
      %v5485 = vpop.f32.mrf.mxu0
      %v5486 = vadd.f32 0.0, %v5485
      %5487 = vmatmul.f32.gmra.mxu0 %v5373
      %v5488 = vpop.f32.mrf.mxu0
      %v5489 = vadd.f32 0.0, %v5488
      %5490 = vmatmul.f32.gmra.mxu0 %v5376
      %v5491 = vpop.f32.mrf.mxu0
      %v5492 = vadd.f32 0.0, %v5491
      %5493 = vmatmul.f32.gmra.mxu0 %v5379
      %v5494 = vpop.f32.mrf.mxu0
      %v5495 = vadd.f32 0.0, %v5494
      %5496 = vmatmul.f32.gmra.mxu0 %v5382
      %v5497 = vpop.f32.mrf.mxu0
      %v5498 = vadd.f32 0.0, %v5497
      %5499 = vmatmul.f32.gmra.mxu0 %v5385
      %v5500 = vpop.f32.mrf.mxu0
      %v5501 = vadd.f32 0.0, %v5500
      %5502 = vmatmul.f32.gmra.mxu0 %v5388
      %v5503 = vpop.f32.mrf.mxu0
      %v5504 = vadd.f32 0.0, %v5503
      %5505 = vdwg.mxu0
      %v5506 = vadd.f32 %v5196, %v5411
      %v5507 = vadd.f32 %v5197, %v5414
      %v5508 = vadd.f32 %v5198, %v5417
      %v5509 = vadd.f32 %v5199, %v5420
      %v5510 = vadd.f32 %v5200, %v5423
      %v5511 = vadd.f32 %v5201, %v5426
      %v5512 = vadd.f32 %v5202, %v5429
      %v5513 = vadd.f32 %v5203, %v5432
      %v5514 = vadd.f32 %v5204, %v5435
      %v5515 = vadd.f32 %v5205, %v5438
      %v5516 = vadd.f32 %v5206, %v5441
      %v5517 = vadd.f32 %v5207, %v5444
      %v5518 = vadd.f32 %v5208, %v5447
      %v5519 = vadd.f32 %v5209, %v5450
      %v5520 = vadd.f32 %v5210, %v5453
      %v5521 = vadd.f32 %v5211, %v5456
      %v5522 = vadd.f32 %v5212, %v5459
      %v5523 = vadd.f32 %v5213, %v5462
      %v5524 = vadd.f32 %v5214, %v5465
      %v5525 = vadd.f32 %v5215, %v5468
      %v5526 = vadd.f32 %v5216, %v5471
      %v5527 = vadd.f32 %v5217, %v5474
      %v5528 = vadd.f32 %v5218, %v5477
      %v5529 = vadd.f32 %v5219, %v5480
      %v5530 = vadd.f32 %v5220, %v5483
      %v5531 = vadd.f32 %v5221, %v5486
      %v5532 = vadd.f32 %v5222, %v5489
      %v5533 = vadd.f32 %v5223, %v5492
      %v5534 = vadd.f32 %v5224, %v5495
      %v5535 = vadd.f32 %v5225, %v5498
      %v5536 = vadd.f32 %v5226, %v5501
      %v5537 = vadd.f32 %v5227, %v5504
      %v5538 = vld [vmem:[#allocation3 + $0x20] sm:$0xff]
      %v5539 = vld [vmem:[#allocation3 + $0x28] sm:$0xff]
      %v5540 = vld [vmem:[#allocation3 + $0x30] sm:$0xff]
      %v5541 = vld [vmem:[#allocation3 + $0x38] sm:$0xff]
      %v5542 = vld [vmem:[#allocation3 + $0x40] sm:$0xff]
      %v5543 = vld [vmem:[#allocation3 + $0x48] sm:$0xff]
      %v5544 = vld [vmem:[#allocation3 + $0x50] sm:$0xff]
      %v5545 = vld [vmem:[#allocation3 + $0x58] sm:$0xff]
      %v5546 = vld [vmem:[#allocation3 + $0x60] sm:$0xff]
      %v5547 = vld [vmem:[#allocation3 + $0x68] sm:$0xff]
      %v5548 = vld [vmem:[#allocation3 + $0x70] sm:$0xff]
      %v5549 = vld [vmem:[#allocation3 + $0x78] sm:$0xff]
      %v5550 = vld [vmem:[#allocation3 + $0x80] sm:$0xff]
      %v5551 = vld [vmem:[#allocation3 + $0x88] sm:$0xff]
      %v5552 = vld [vmem:[#allocation3 + $0x90] sm:$0xff]
      %v5553 = vld [vmem:[#allocation3 + $0x98] sm:$0xff]
      %v5554 = vld [vmem:[#allocation3 + $0xa0] sm:$0xff]
      %v5555 = vld [vmem:[#allocation3 + $0xa8] sm:$0xff]
      %v5556 = vld [vmem:[#allocation3 + $0xb0] sm:$0xff]
      %v5557 = vld [vmem:[#allocation3 + $0xb8] sm:$0xff]
      %v5558 = vld [vmem:[#allocation3 + $0xc0] sm:$0xff]
      %v5559 = vld [vmem:[#allocation3 + $0xc8] sm:$0xff]
      %v5560 = vld [vmem:[#allocation3 + $0xd0] sm:$0xff]
      %v5561 = vld [vmem:[#allocation3 + $0xd8] sm:$0xff]
      %v5562 = vld [vmem:[#allocation3 + $0xe0] sm:$0xff]
      %v5563 = vld [vmem:[#allocation3 + $0xe8] sm:$0xff]
      %v5564 = vld [vmem:[#allocation3 + $0xf0] sm:$0xff]
      %v5565 = vld [vmem:[#allocation3 + $0xf8] sm:$0xff]
      %v5566 = vld [vmem:[#allocation3 + $0x100] sm:$0xff]
      %v5567 = vld [vmem:[#allocation3 + $0x108] sm:$0xff]
      %v5568 = vld [vmem:[#allocation3 + $0x110] sm:$0xff]
      %v5569 = vld [vmem:[#allocation3 + $0x118] sm:$0xff]
      %v5570 = vsel %vm853, %v5538, 0.0
      %v5571 = vsel %vm854, %v5539, 0.0
      %v5572 = vsel %vm855, %v5540, 0.0
      %v5573 = vsel %vm856, %v5541, 0.0
      %v5574 = vsel %vm857, %v5542, 0.0
      %v5575 = vsel %vm858, %v5543, 0.0
      %v5576 = vsel %vm859, %v5544, 0.0
      %v5577 = vsel %vm860, %v5545, 0.0
      %v5578 = vsel %vm861, %v5546, 0.0
      %v5579 = vsel %vm862, %v5547, 0.0
      %v5580 = vsel %vm863, %v5548, 0.0
      %v5581 = vsel %vm864, %v5549, 0.0
      %v5582 = vsel %vm865, %v5550, 0.0
      %v5583 = vsel %vm866, %v5551, 0.0
      %v5584 = vsel %vm867, %v5552, 0.0
      %v5585 = vsel %vm868, %v5553, 0.0
      %v5586 = vsel %vm869, %v5554, 0.0
      %v5587 = vsel %vm870, %v5555, 0.0
      %v5588 = vsel %vm871, %v5556, 0.0
      %v5589 = vsel %vm872, %v5557, 0.0
      %v5590 = vsel %vm873, %v5558, 0.0
      %v5591 = vsel %vm874, %v5559, 0.0
      %v5592 = vsel %vm875, %v5560, 0.0
      %v5593 = vsel %vm876, %v5561, 0.0
      %v5594 = vsel %vm877, %v5562, 0.0
      %v5595 = vsel %vm878, %v5563, 0.0
      %v5596 = vsel %vm879, %v5564, 0.0
      %v5597 = vsel %vm880, %v5565, 0.0
      %v5598 = vsel %vm881, %v5566, 0.0
      %v5599 = vsel %vm882, %v5567, 0.0
      %v5600 = vsel %vm883, %v5568, 0.0
      %v5601 = vsel %vm884, %v5569, 0.0
      %s5602 = scalar_lea.vmem %s3, 24
      %v5603 = vld [vmem:[%s5602] sm:$0xf]
      %v5605 = vsel %vm225, %v5570, 0
      %v5608 = vsel %vm225, %v5571, 0
      %v5611 = vsel %vm225, %v5572, 0
      %v5614 = vsel %vm225, %v5573, 0
      %v5617 = vsel %vm225, %v5574, 0
      %v5620 = vsel %vm225, %v5575, 0
      %v5623 = vsel %vm225, %v5576, 0
      %v5626 = vsel %vm225, %v5577, 0
      %v5629 = vsel %vm225, %v5578, 0
      %v5632 = vsel %vm225, %v5579, 0
      %v5635 = vsel %vm225, %v5580, 0
      %v5638 = vsel %vm225, %v5581, 0
      %v5641 = vsel %vm225, %v5582, 0
      %v5644 = vsel %vm225, %v5583, 0
      %v5647 = vsel %vm225, %v5584, 0
      %v5650 = vsel %vm225, %v5585, 0
      %v5653 = vsel %vm225, %v5586, 0
      %v5656 = vsel %vm225, %v5587, 0
      %v5659 = vsel %vm225, %v5588, 0
      %v5662 = vsel %vm225, %v5589, 0
      %v5665 = vsel %vm225, %v5590, 0
      %v5668 = vsel %vm225, %v5591, 0
      %v5671 = vsel %vm225, %v5592, 0
      %v5674 = vsel %vm225, %v5593, 0
      %v5677 = vsel %vm225, %v5594, 0
      %v5680 = vsel %vm225, %v5595, 0
      %v5683 = vsel %vm225, %v5596, 0
      %v5686 = vsel %vm225, %v5597, 0
      %v5689 = vsel %vm225, %v5598, 0
      %v5692 = vsel %vm225, %v5599, 0
      %v5695 = vsel %vm225, %v5600, 0
      %v5698 = vsel %vm225, %v5601, 0
      %v5701 = vsel %vm1014, %v5603, 0
      %5703 = vmatpush.msra.mxu0 0.0
      %5704 = vmatpush.msra.mxu0 0.0
      %5705 = vmatpush.msra.mxu0 0.0
      %5706 = vmatpush.msra.mxu0 0.0
      %5707 = vmatpush.msra.mxu0 0.0
      %5708 = vmatpush.msra.mxu0 0.0
      %5709 = vmatpush.msra.mxu0 0.0
      %5710 = vmatpush.msra.mxu0 0.0
      %5711 = vmatpush.msra.mxu0 0.0
      %5712 = vmatpush.msra.mxu0 0.0
      %5713 = vmatpush.msra.mxu0 0.0
      %5714 = vmatpush.msra.mxu0 0.0
      %5715 = vmatpush.msra.mxu0 0.0
      %5716 = vmatpush.msra.mxu0 0.0
      %5717 = vmatpush.msra.mxu0 0.0
      %5718 = vmatpush.msra.mxu0 %v5701
      %5719 = vmatmul.f32.gmra.mxu0 %v5605
      %v5720 = vpop.f32.mrf.mxu0
      %v5721 = vadd.f32 0.0, %v5720
      %5722 = vmatmul.f32.gmra.mxu0 %v5608
      %v5723 = vpop.f32.mrf.mxu0
      %v5724 = vadd.f32 0.0, %v5723
      %5725 = vmatmul.f32.gmra.mxu0 %v5611
      %v5726 = vpop.f32.mrf.mxu0
      %v5727 = vadd.f32 0.0, %v5726
      %5728 = vmatmul.f32.gmra.mxu0 %v5614
      %v5729 = vpop.f32.mrf.mxu0
      %v5730 = vadd.f32 0.0, %v5729
      %5731 = vmatmul.f32.gmra.mxu0 %v5617
      %v5732 = vpop.f32.mrf.mxu0
      %v5733 = vadd.f32 0.0, %v5732
      %5734 = vmatmul.f32.gmra.mxu0 %v5620
      %v5735 = vpop.f32.mrf.mxu0
      %v5736 = vadd.f32 0.0, %v5735
      %5737 = vmatmul.f32.gmra.mxu0 %v5623
      %v5738 = vpop.f32.mrf.mxu0
      %v5739 = vadd.f32 0.0, %v5738
      %5740 = vmatmul.f32.gmra.mxu0 %v5626
      %v5741 = vpop.f32.mrf.mxu0
      %v5742 = vadd.f32 0.0, %v5741
      %5743 = vmatmul.f32.gmra.mxu0 %v5629
      %v5744 = vpop.f32.mrf.mxu0
      %v5745 = vadd.f32 0.0, %v5744
      %5746 = vmatmul.f32.gmra.mxu0 %v5632
      %v5747 = vpop.f32.mrf.mxu0
      %v5748 = vadd.f32 0.0, %v5747
      %5749 = vmatmul.f32.gmra.mxu0 %v5635
      %v5750 = vpop.f32.mrf.mxu0
      %v5751 = vadd.f32 0.0, %v5750
      %5752 = vmatmul.f32.gmra.mxu0 %v5638
      %v5753 = vpop.f32.mrf.mxu0
      %v5754 = vadd.f32 0.0, %v5753
      %5755 = vmatmul.f32.gmra.mxu0 %v5641
      %v5756 = vpop.f32.mrf.mxu0
      %v5757 = vadd.f32 0.0, %v5756
      %5758 = vmatmul.f32.gmra.mxu0 %v5644
      %v5759 = vpop.f32.mrf.mxu0
      %v5760 = vadd.f32 0.0, %v5759
      %5761 = vmatmul.f32.gmra.mxu0 %v5647
      %v5762 = vpop.f32.mrf.mxu0
      %v5763 = vadd.f32 0.0, %v5762
      %5764 = vmatmul.f32.gmra.mxu0 %v5650
      %v5765 = vpop.f32.mrf.mxu0
      %v5766 = vadd.f32 0.0, %v5765
      %5767 = vmatmul.f32.gmra.mxu0 %v5653
      %v5768 = vpop.f32.mrf.mxu0
      %v5769 = vadd.f32 0.0, %v5768
      %5770 = vmatmul.f32.gmra.mxu0 %v5656
      %v5771 = vpop.f32.mrf.mxu0
      %v5772 = vadd.f32 0.0, %v5771
      %5773 = vmatmul.f32.gmra.mxu0 %v5659
      %v5774 = vpop.f32.mrf.mxu0
      %v5775 = vadd.f32 0.0, %v5774
      %5776 = vmatmul.f32.gmra.mxu0 %v5662
      %v5777 = vpop.f32.mrf.mxu0
      %v5778 = vadd.f32 0.0, %v5777
      %5779 = vmatmul.f32.gmra.mxu0 %v5665
      %v5780 = vpop.f32.mrf.mxu0
      %v5781 = vadd.f32 0.0, %v5780
      %5782 = vmatmul.f32.gmra.mxu0 %v5668
      %v5783 = vpop.f32.mrf.mxu0
      %v5784 = vadd.f32 0.0, %v5783
      %5785 = vmatmul.f32.gmra.mxu0 %v5671
      %v5786 = vpop.f32.mrf.mxu0
      %v5787 = vadd.f32 0.0, %v5786
      %5788 = vmatmul.f32.gmra.mxu0 %v5674
      %v5789 = vpop.f32.mrf.mxu0
      %v5790 = vadd.f32 0.0, %v5789
      %5791 = vmatmul.f32.gmra.mxu0 %v5677
      %v5792 = vpop.f32.mrf.mxu0
      %v5793 = vadd.f32 0.0, %v5792
      %5794 = vmatmul.f32.gmra.mxu0 %v5680
      %v5795 = vpop.f32.mrf.mxu0
      %v5796 = vadd.f32 0.0, %v5795
      %5797 = vmatmul.f32.gmra.mxu0 %v5683
      %v5798 = vpop.f32.mrf.mxu0
      %v5799 = vadd.f32 0.0, %v5798
      %5800 = vmatmul.f32.gmra.mxu0 %v5686
      %v5801 = vpop.f32.mrf.mxu0
      %v5802 = vadd.f32 0.0, %v5801
      %5803 = vmatmul.f32.gmra.mxu0 %v5689
      %v5804 = vpop.f32.mrf.mxu0
      %v5805 = vadd.f32 0.0, %v5804
      %5806 = vmatmul.f32.gmra.mxu0 %v5692
      %v5807 = vpop.f32.mrf.mxu0
      %v5808 = vadd.f32 0.0, %v5807
      %5809 = vmatmul.f32.gmra.mxu0 %v5695
      %v5810 = vpop.f32.mrf.mxu0
      %v5811 = vadd.f32 0.0, %v5810
      %5812 = vmatmul.f32.gmra.mxu0 %v5698
      %v5813 = vpop.f32.mrf.mxu0
      %v5814 = vadd.f32 0.0, %v5813
      %5815 = vdwg.mxu0
      %v5816 = vadd.f32 %v5506, %v5721
      %v5817 = vadd.f32 %v5507, %v5724
      %v5818 = vadd.f32 %v5508, %v5727
      %v5819 = vadd.f32 %v5509, %v5730
      %v5820 = vadd.f32 %v5510, %v5733
      %v5821 = vadd.f32 %v5511, %v5736
      %v5822 = vadd.f32 %v5512, %v5739
      %v5823 = vadd.f32 %v5513, %v5742
      %v5824 = vadd.f32 %v5514, %v5745
      %v5825 = vadd.f32 %v5515, %v5748
      %v5826 = vadd.f32 %v5516, %v5751
      %v5827 = vadd.f32 %v5517, %v5754
      %v5828 = vadd.f32 %v5518, %v5757
      %v5829 = vadd.f32 %v5519, %v5760
      %v5830 = vadd.f32 %v5520, %v5763
      %v5831 = vadd.f32 %v5521, %v5766
      %v5832 = vadd.f32 %v5522, %v5769
      %v5833 = vadd.f32 %v5523, %v5772
      %v5834 = vadd.f32 %v5524, %v5775
      %v5835 = vadd.f32 %v5525, %v5778
      %v5836 = vadd.f32 %v5526, %v5781
      %v5837 = vadd.f32 %v5527, %v5784
      %v5838 = vadd.f32 %v5528, %v5787
      %v5839 = vadd.f32 %v5529, %v5790
      %v5840 = vadd.f32 %v5530, %v5793
      %v5841 = vadd.f32 %v5531, %v5796
      %v5842 = vadd.f32 %v5532, %v5799
      %v5843 = vadd.f32 %v5533, %v5802
      %v5844 = vadd.f32 %v5534, %v5805
      %v5845 = vadd.f32 %v5535, %v5808
      %v5846 = vadd.f32 %v5536, %v5811
      %v5847 = vadd.f32 %v5537, %v5814
      %v5848 = vld [vmem:[#allocation3 + $0x21] sm:$0xff]
      %v5849 = vld [vmem:[#allocation3 + $0x29] sm:$0xff]
      %v5850 = vld [vmem:[#allocation3 + $0x31] sm:$0xff]
      %v5851 = vld [vmem:[#allocation3 + $0x39] sm:$0xff]
      %v5852 = vld [vmem:[#allocation3 + $0x41] sm:$0xff]
      %v5853 = vld [vmem:[#allocation3 + $0x49] sm:$0xff]
      %v5854 = vld [vmem:[#allocation3 + $0x51] sm:$0xff]
      %v5855 = vld [vmem:[#allocation3 + $0x59] sm:$0xff]
      %v5856 = vld [vmem:[#allocation3 + $0x61] sm:$0xff]
      %v5857 = vld [vmem:[#allocation3 + $0x69] sm:$0xff]
      %v5858 = vld [vmem:[#allocation3 + $0x71] sm:$0xff]
      %v5859 = vld [vmem:[#allocation3 + $0x79] sm:$0xff]
      %v5860 = vld [vmem:[#allocation3 + $0x81] sm:$0xff]
      %v5861 = vld [vmem:[#allocation3 + $0x89] sm:$0xff]
      %v5862 = vld [vmem:[#allocation3 + $0x91] sm:$0xff]
      %v5863 = vld [vmem:[#allocation3 + $0x99] sm:$0xff]
      %v5864 = vld [vmem:[#allocation3 + $0xa1] sm:$0xff]
      %v5865 = vld [vmem:[#allocation3 + $0xa9] sm:$0xff]
      %v5866 = vld [vmem:[#allocation3 + $0xb1] sm:$0xff]
      %v5867 = vld [vmem:[#allocation3 + $0xb9] sm:$0xff]
      %v5868 = vld [vmem:[#allocation3 + $0xc1] sm:$0xff]
      %v5869 = vld [vmem:[#allocation3 + $0xc9] sm:$0xff]
      %v5870 = vld [vmem:[#allocation3 + $0xd1] sm:$0xff]
      %v5871 = vld [vmem:[#allocation3 + $0xd9] sm:$0xff]
      %v5872 = vld [vmem:[#allocation3 + $0xe1] sm:$0xff]
      %v5873 = vld [vmem:[#allocation3 + $0xe9] sm:$0xff]
      %v5874 = vld [vmem:[#allocation3 + $0xf1] sm:$0xff]
      %v5875 = vld [vmem:[#allocation3 + $0xf9] sm:$0xff]
      %v5876 = vld [vmem:[#allocation3 + $0x101] sm:$0xff]
      %v5877 = vld [vmem:[#allocation3 + $0x109] sm:$0xff]
      %v5878 = vld [vmem:[#allocation3 + $0x111] sm:$0xff]
      %v5879 = vld [vmem:[#allocation3 + $0x119] sm:$0xff]
      %s5880 = scalar_lea.vmem %s3, 28
      %v5881 = vld [vmem:[%s5880] sm:$0xf]
      %v5883 = vsel %vm225, %v5848, 0
      %v5886 = vsel %vm225, %v5849, 0
      %v5889 = vsel %vm225, %v5850, 0
      %v5892 = vsel %vm225, %v5851, 0
      %v5895 = vsel %vm225, %v5852, 0
      %v5898 = vsel %vm225, %v5853, 0
      %v5901 = vsel %vm225, %v5854, 0
      %v5904 = vsel %vm225, %v5855, 0
      %v5907 = vsel %vm225, %v5856, 0
      %v5910 = vsel %vm225, %v5857, 0
      %v5913 = vsel %vm225, %v5858, 0
      %v5916 = vsel %vm225, %v5859, 0
      %v5919 = vsel %vm225, %v5860, 0
      %v5922 = vsel %vm225, %v5861, 0
      %v5925 = vsel %vm225, %v5862, 0
      %v5928 = vsel %vm225, %v5863, 0
      %v5931 = vsel %vm225, %v5864, 0
      %v5934 = vsel %vm225, %v5865, 0
      %v5937 = vsel %vm225, %v5866, 0
      %v5940 = vsel %vm225, %v5867, 0
      %v5943 = vsel %vm225, %v5868, 0
      %v5946 = vsel %vm225, %v5869, 0
      %v5949 = vsel %vm225, %v5870, 0
      %v5952 = vsel %vm225, %v5871, 0
      %v5955 = vsel %vm225, %v5872, 0
      %v5958 = vsel %vm225, %v5873, 0
      %v5961 = vsel %vm225, %v5874, 0
      %v5964 = vsel %vm225, %v5875, 0
      %v5967 = vsel %vm225, %v5876, 0
      %v5970 = vsel %vm225, %v5877, 0
      %v5973 = vsel %vm225, %v5878, 0
      %v5976 = vsel %vm225, %v5879, 0
      %v5979 = vsel %vm1014, %v5881, 0
      %5981 = vmatpush.msra.mxu0 0.0
      %5982 = vmatpush.msra.mxu0 0.0
      %5983 = vmatpush.msra.mxu0 0.0
      %5984 = vmatpush.msra.mxu0 0.0
      %5985 = vmatpush.msra.mxu0 0.0
      %5986 = vmatpush.msra.mxu0 0.0
      %5987 = vmatpush.msra.mxu0 0.0
      %5988 = vmatpush.msra.mxu0 0.0
      %5989 = vmatpush.msra.mxu0 0.0
      %5990 = vmatpush.msra.mxu0 0.0
      %5991 = vmatpush.msra.mxu0 0.0
      %5992 = vmatpush.msra.mxu0 0.0
      %5993 = vmatpush.msra.mxu0 0.0
      %5994 = vmatpush.msra.mxu0 0.0
      %5995 = vmatpush.msra.mxu0 0.0
      %5996 = vmatpush.msra.mxu0 %v5979
      %5997 = vmatmul.f32.gmra.mxu0 %v5883
      %v5998 = vpop.f32.mrf.mxu0
      %v5999 = vadd.f32 0.0, %v5998
      %6000 = vmatmul.f32.gmra.mxu0 %v5886
      %v6001 = vpop.f32.mrf.mxu0
      %v6002 = vadd.f32 0.0, %v6001
      %6003 = vmatmul.f32.gmra.mxu0 %v5889
      %v6004 = vpop.f32.mrf.mxu0
      %v6005 = vadd.f32 0.0, %v6004
      %6006 = vmatmul.f32.gmra.mxu0 %v5892
      %v6007 = vpop.f32.mrf.mxu0
      %v6008 = vadd.f32 0.0, %v6007
      %6009 = vmatmul.f32.gmra.mxu0 %v5895
      %v6010 = vpop.f32.mrf.mxu0
      %v6011 = vadd.f32 0.0, %v6010
      %6012 = vmatmul.f32.gmra.mxu0 %v5898
      %v6013 = vpop.f32.mrf.mxu0
      %v6014 = vadd.f32 0.0, %v6013
      %6015 = vmatmul.f32.gmra.mxu0 %v5901
      %v6016 = vpop.f32.mrf.mxu0
      %v6017 = vadd.f32 0.0, %v6016
      %6018 = vmatmul.f32.gmra.mxu0 %v5904
      %v6019 = vpop.f32.mrf.mxu0
      %v6020 = vadd.f32 0.0, %v6019
      %6021 = vmatmul.f32.gmra.mxu0 %v5907
      %v6022 = vpop.f32.mrf.mxu0
      %v6023 = vadd.f32 0.0, %v6022
      %6024 = vmatmul.f32.gmra.mxu0 %v5910
      %v6025 = vpop.f32.mrf.mxu0
      %v6026 = vadd.f32 0.0, %v6025
      %6027 = vmatmul.f32.gmra.mxu0 %v5913
      %v6028 = vpop.f32.mrf.mxu0
      %v6029 = vadd.f32 0.0, %v6028
      %6030 = vmatmul.f32.gmra.mxu0 %v5916
      %v6031 = vpop.f32.mrf.mxu0
      %v6032 = vadd.f32 0.0, %v6031
      %6033 = vmatmul.f32.gmra.mxu0 %v5919
      %v6034 = vpop.f32.mrf.mxu0
      %v6035 = vadd.f32 0.0, %v6034
      %6036 = vmatmul.f32.gmra.mxu0 %v5922
      %v6037 = vpop.f32.mrf.mxu0
      %v6038 = vadd.f32 0.0, %v6037
      %6039 = vmatmul.f32.gmra.mxu0 %v5925
      %v6040 = vpop.f32.mrf.mxu0
      %v6041 = vadd.f32 0.0, %v6040
      %6042 = vmatmul.f32.gmra.mxu0 %v5928
      %v6043 = vpop.f32.mrf.mxu0
      %v6044 = vadd.f32 0.0, %v6043
      %6045 = vmatmul.f32.gmra.mxu0 %v5931
      %v6046 = vpop.f32.mrf.mxu0
      %v6047 = vadd.f32 0.0, %v6046
      %6048 = vmatmul.f32.gmra.mxu0 %v5934
      %v6049 = vpop.f32.mrf.mxu0
      %v6050 = vadd.f32 0.0, %v6049
      %6051 = vmatmul.f32.gmra.mxu0 %v5937
      %v6052 = vpop.f32.mrf.mxu0
      %v6053 = vadd.f32 0.0, %v6052
      %6054 = vmatmul.f32.gmra.mxu0 %v5940
      %v6055 = vpop.f32.mrf.mxu0
      %v6056 = vadd.f32 0.0, %v6055
      %6057 = vmatmul.f32.gmra.mxu0 %v5943
      %v6058 = vpop.f32.mrf.mxu0
      %v6059 = vadd.f32 0.0, %v6058
      %6060 = vmatmul.f32.gmra.mxu0 %v5946
      %v6061 = vpop.f32.mrf.mxu0
      %v6062 = vadd.f32 0.0, %v6061
      %6063 = vmatmul.f32.gmra.mxu0 %v5949
      %v6064 = vpop.f32.mrf.mxu0
      %v6065 = vadd.f32 0.0, %v6064
      %6066 = vmatmul.f32.gmra.mxu0 %v5952
      %v6067 = vpop.f32.mrf.mxu0
      %v6068 = vadd.f32 0.0, %v6067
      %6069 = vmatmul.f32.gmra.mxu0 %v5955
      %v6070 = vpop.f32.mrf.mxu0
      %v6071 = vadd.f32 0.0, %v6070
      %6072 = vmatmul.f32.gmra.mxu0 %v5958
      %v6073 = vpop.f32.mrf.mxu0
      %v6074 = vadd.f32 0.0, %v6073
      %6075 = vmatmul.f32.gmra.mxu0 %v5961
      %v6076 = vpop.f32.mrf.mxu0
      %v6077 = vadd.f32 0.0, %v6076
      %6078 = vmatmul.f32.gmra.mxu0 %v5964
      %v6079 = vpop.f32.mrf.mxu0
      %v6080 = vadd.f32 0.0, %v6079
      %6081 = vmatmul.f32.gmra.mxu0 %v5967
      %v6082 = vpop.f32.mrf.mxu0
      %v6083 = vadd.f32 0.0, %v6082
      %6084 = vmatmul.f32.gmra.mxu0 %v5970
      %v6085 = vpop.f32.mrf.mxu0
      %v6086 = vadd.f32 0.0, %v6085
      %6087 = vmatmul.f32.gmra.mxu0 %v5973
      %v6088 = vpop.f32.mrf.mxu0
      %v6089 = vadd.f32 0.0, %v6088
      %6090 = vmatmul.f32.gmra.mxu0 %v5976
      %v6091 = vpop.f32.mrf.mxu0
      %v6092 = vadd.f32 0.0, %v6091
      %6093 = vdwg.mxu0
      %v6094 = vadd.f32 %v5816, %v5999
      %v6095 = vadd.f32 %v5817, %v6002
      %v6096 = vadd.f32 %v5818, %v6005
      %v6097 = vadd.f32 %v5819, %v6008
      %v6098 = vadd.f32 %v5820, %v6011
      %v6099 = vadd.f32 %v5821, %v6014
      %v6100 = vadd.f32 %v5822, %v6017
      %v6101 = vadd.f32 %v5823, %v6020
      %v6102 = vadd.f32 %v5824, %v6023
      %v6103 = vadd.f32 %v5825, %v6026
      %v6104 = vadd.f32 %v5826, %v6029
      %v6105 = vadd.f32 %v5827, %v6032
      %v6106 = vadd.f32 %v5828, %v6035
      %v6107 = vadd.f32 %v5829, %v6038
      %v6108 = vadd.f32 %v5830, %v6041
      %v6109 = vadd.f32 %v5831, %v6044
      %v6110 = vadd.f32 %v5832, %v6047
      %v6111 = vadd.f32 %v5833, %v6050
      %v6112 = vadd.f32 %v5834, %v6053
      %v6113 = vadd.f32 %v5835, %v6056
      %v6114 = vadd.f32 %v5836, %v6059
      %v6115 = vadd.f32 %v5837, %v6062
      %v6116 = vadd.f32 %v5838, %v6065
      %v6117 = vadd.f32 %v5839, %v6068
      %v6118 = vadd.f32 %v5840, %v6071
      %v6119 = vadd.f32 %v5841, %v6074
      %v6120 = vadd.f32 %v5842, %v6077
      %v6121 = vadd.f32 %v5843, %v6080
      %v6122 = vadd.f32 %v5844, %v6083
      %v6123 = vadd.f32 %v5845, %v6086
      %v6124 = vadd.f32 %v5846, %v6089
      %v6125 = vadd.f32 %v5847, %v6092
      %v6126 = vld [vmem:[#allocation3 + $0x22] sm:$0xff]
      %v6127 = vld [vmem:[#allocation3 + $0x2a] sm:$0xff]
      %v6128 = vld [vmem:[#allocation3 + $0x32] sm:$0xff]
      %v6129 = vld [vmem:[#allocation3 + $0x3a] sm:$0xff]
      %v6130 = vld [vmem:[#allocation3 + $0x42] sm:$0xff]
      %v6131 = vld [vmem:[#allocation3 + $0x4a] sm:$0xff]
      %v6132 = vld [vmem:[#allocation3 + $0x52] sm:$0xff]
      %v6133 = vld [vmem:[#allocation3 + $0x5a] sm:$0xff]
      %v6134 = vld [vmem:[#allocation3 + $0x62] sm:$0xff]
      %v6135 = vld [vmem:[#allocation3 + $0x6a] sm:$0xff]
      %v6136 = vld [vmem:[#allocation3 + $0x72] sm:$0xff]
      %v6137 = vld [vmem:[#allocation3 + $0x7a] sm:$0xff]
      %v6138 = vld [vmem:[#allocation3 + $0x82] sm:$0xff]
      %v6139 = vld [vmem:[#allocation3 + $0x8a] sm:$0xff]
      %v6140 = vld [vmem:[#allocation3 + $0x92] sm:$0xff]
      %v6141 = vld [vmem:[#allocation3 + $0x9a] sm:$0xff]
      %v6142 = vld [vmem:[#allocation3 + $0xa2] sm:$0xff]
      %v6143 = vld [vmem:[#allocation3 + $0xaa] sm:$0xff]
      %v6144 = vld [vmem:[#allocation3 + $0xb2] sm:$0xff]
      %v6145 = vld [vmem:[#allocation3 + $0xba] sm:$0xff]
      %v6146 = vld [vmem:[#allocation3 + $0xc2] sm:$0xff]
      %v6147 = vld [vmem:[#allocation3 + $0xca] sm:$0xff]
      %v6148 = vld [vmem:[#allocation3 + $0xd2] sm:$0xff]
      %v6149 = vld [vmem:[#allocation3 + $0xda] sm:$0xff]
      %v6150 = vld [vmem:[#allocation3 + $0xe2] sm:$0xff]
      %v6151 = vld [vmem:[#allocation3 + $0xea] sm:$0xff]
      %v6152 = vld [vmem:[#allocation3 + $0xf2] sm:$0xff]
      %v6153 = vld [vmem:[#allocation3 + $0xfa] sm:$0xff]
      %v6154 = vld [vmem:[#allocation3 + $0x102] sm:$0xff]
      %v6155 = vld [vmem:[#allocation3 + $0x10a] sm:$0xff]
      %v6156 = vld [vmem:[#allocation3 + $0x112] sm:$0xff]
      %v6157 = vld [vmem:[#allocation3 + $0x11a] sm:$0xff]
      %v6158 = vsel %vm1505, %v6126, 0.0
      %v6159 = vsel %vm1506, %v6127, 0.0
      %v6160 = vsel %vm1507, %v6128, 0.0
      %v6161 = vsel %vm1508, %v6129, 0.0
      %v6162 = vsel %vm1509, %v6130, 0.0
      %v6163 = vsel %vm1510, %v6131, 0.0
      %v6164 = vsel %vm1511, %v6132, 0.0
      %v6165 = vsel %vm1512, %v6133, 0.0
      %v6166 = vsel %vm1513, %v6134, 0.0
      %v6167 = vsel %vm1514, %v6135, 0.0
      %v6168 = vsel %vm1515, %v6136, 0.0
      %v6169 = vsel %vm1516, %v6137, 0.0
      %v6170 = vsel %vm1517, %v6138, 0.0
      %v6171 = vsel %vm1518, %v6139, 0.0
      %v6172 = vsel %vm1519, %v6140, 0.0
      %v6173 = vsel %vm1520, %v6141, 0.0
      %v6174 = vsel %vm1521, %v6142, 0.0
      %v6175 = vsel %vm1522, %v6143, 0.0
      %v6176 = vsel %vm1523, %v6144, 0.0
      %v6177 = vsel %vm1524, %v6145, 0.0
      %v6178 = vsel %vm1525, %v6146, 0.0
      %v6179 = vsel %vm1526, %v6147, 0.0
      %v6180 = vsel %vm1527, %v6148, 0.0
      %v6181 = vsel %vm1528, %v6149, 0.0
      %v6182 = vsel %vm1529, %v6150, 0.0
      %v6183 = vsel %vm1530, %v6151, 0.0
      %v6184 = vsel %vm1531, %v6152, 0.0
      %v6185 = vsel %vm1532, %v6153, 0.0
      %v6186 = vsel %vm1533, %v6154, 0.0
      %v6187 = vsel %vm1534, %v6155, 0.0
      %v6188 = vsel %vm1535, %v6156, 0.0
      %v6189 = vsel %vm1536, %v6157, 0.0
      %s6190 = scalar_lea.vmem %s3, 32
      %v6191 = vld [vmem:[%s6190] sm:$0xf]
      %v6193 = vsel %vm225, %v6158, 0
      %v6196 = vsel %vm225, %v6159, 0
      %v6199 = vsel %vm225, %v6160, 0
      %v6202 = vsel %vm225, %v6161, 0
      %v6205 = vsel %vm225, %v6162, 0
      %v6208 = vsel %vm225, %v6163, 0
      %v6211 = vsel %vm225, %v6164, 0
      %v6214 = vsel %vm225, %v6165, 0
      %v6217 = vsel %vm225, %v6166, 0
      %v6220 = vsel %vm225, %v6167, 0
      %v6223 = vsel %vm225, %v6168, 0
      %v6226 = vsel %vm225, %v6169, 0
      %v6229 = vsel %vm225, %v6170, 0
      %v6232 = vsel %vm225, %v6171, 0
      %v6235 = vsel %vm225, %v6172, 0
      %v6238 = vsel %vm225, %v6173, 0
      %v6241 = vsel %vm225, %v6174, 0
      %v6244 = vsel %vm225, %v6175, 0
      %v6247 = vsel %vm225, %v6176, 0
      %v6250 = vsel %vm225, %v6177, 0
      %v6253 = vsel %vm225, %v6178, 0
      %v6256 = vsel %vm225, %v6179, 0
      %v6259 = vsel %vm225, %v6180, 0
      %v6262 = vsel %vm225, %v6181, 0
      %v6265 = vsel %vm225, %v6182, 0
      %v6268 = vsel %vm225, %v6183, 0
      %v6271 = vsel %vm225, %v6184, 0
      %v6274 = vsel %vm225, %v6185, 0
      %v6277 = vsel %vm225, %v6186, 0
      %v6280 = vsel %vm225, %v6187, 0
      %v6283 = vsel %vm225, %v6188, 0
      %v6286 = vsel %vm225, %v6189, 0
      %v6289 = vsel %vm1014, %v6191, 0
      %6291 = vmatpush.msra.mxu0 0.0
      %6292 = vmatpush.msra.mxu0 0.0
      %6293 = vmatpush.msra.mxu0 0.0
      %6294 = vmatpush.msra.mxu0 0.0
      %6295 = vmatpush.msra.mxu0 0.0
      %6296 = vmatpush.msra.mxu0 0.0
      %6297 = vmatpush.msra.mxu0 0.0
      %6298 = vmatpush.msra.mxu0 0.0
      %6299 = vmatpush.msra.mxu0 0.0
      %6300 = vmatpush.msra.mxu0 0.0
      %6301 = vmatpush.msra.mxu0 0.0
      %6302 = vmatpush.msra.mxu0 0.0
      %6303 = vmatpush.msra.mxu0 0.0
      %6304 = vmatpush.msra.mxu0 0.0
      %6305 = vmatpush.msra.mxu0 0.0
      %6306 = vmatpush.msra.mxu0 %v6289
      %6307 = vmatmul.f32.gmra.mxu0 %v6193
      %v6308 = vpop.f32.mrf.mxu0
      %v6309 = vadd.f32 0.0, %v6308
      %6310 = vmatmul.f32.gmra.mxu0 %v6196
      %v6311 = vpop.f32.mrf.mxu0
      %v6312 = vadd.f32 0.0, %v6311
      %6313 = vmatmul.f32.gmra.mxu0 %v6199
      %v6314 = vpop.f32.mrf.mxu0
      %v6315 = vadd.f32 0.0, %v6314
      %6316 = vmatmul.f32.gmra.mxu0 %v6202
      %v6317 = vpop.f32.mrf.mxu0
      %v6318 = vadd.f32 0.0, %v6317
      %6319 = vmatmul.f32.gmra.mxu0 %v6205
      %v6320 = vpop.f32.mrf.mxu0
      %v6321 = vadd.f32 0.0, %v6320
      %6322 = vmatmul.f32.gmra.mxu0 %v6208
      %v6323 = vpop.f32.mrf.mxu0
      %v6324 = vadd.f32 0.0, %v6323
      %6325 = vmatmul.f32.gmra.mxu0 %v6211
      %v6326 = vpop.f32.mrf.mxu0
      %v6327 = vadd.f32 0.0, %v6326
      %6328 = vmatmul.f32.gmra.mxu0 %v6214
      %v6329 = vpop.f32.mrf.mxu0
      %v6330 = vadd.f32 0.0, %v6329
      %6331 = vmatmul.f32.gmra.mxu0 %v6217
      %v6332 = vpop.f32.mrf.mxu0
      %v6333 = vadd.f32 0.0, %v6332
      %6334 = vmatmul.f32.gmra.mxu0 %v6220
      %v6335 = vpop.f32.mrf.mxu0
      %v6336 = vadd.f32 0.0, %v6335
      %6337 = vmatmul.f32.gmra.mxu0 %v6223
      %v6338 = vpop.f32.mrf.mxu0
      %v6339 = vadd.f32 0.0, %v6338
      %6340 = vmatmul.f32.gmra.mxu0 %v6226
      %v6341 = vpop.f32.mrf.mxu0
      %v6342 = vadd.f32 0.0, %v6341
      %6343 = vmatmul.f32.gmra.mxu0 %v6229
      %v6344 = vpop.f32.mrf.mxu0
      %v6345 = vadd.f32 0.0, %v6344
      %6346 = vmatmul.f32.gmra.mxu0 %v6232
      %v6347 = vpop.f32.mrf.mxu0
      %v6348 = vadd.f32 0.0, %v6347
      %6349 = vmatmul.f32.gmra.mxu0 %v6235
      %v6350 = vpop.f32.mrf.mxu0
      %v6351 = vadd.f32 0.0, %v6350
      %6352 = vmatmul.f32.gmra.mxu0 %v6238
      %v6353 = vpop.f32.mrf.mxu0
      %v6354 = vadd.f32 0.0, %v6353
      %6355 = vmatmul.f32.gmra.mxu0 %v6241
      %v6356 = vpop.f32.mrf.mxu0
      %v6357 = vadd.f32 0.0, %v6356
      %6358 = vmatmul.f32.gmra.mxu0 %v6244
      %v6359 = vpop.f32.mrf.mxu0
      %v6360 = vadd.f32 0.0, %v6359
      %6361 = vmatmul.f32.gmra.mxu0 %v6247
      %v6362 = vpop.f32.mrf.mxu0
      %v6363 = vadd.f32 0.0, %v6362
      %6364 = vmatmul.f32.gmra.mxu0 %v6250
      %v6365 = vpop.f32.mrf.mxu0
      %v6366 = vadd.f32 0.0, %v6365
      %6367 = vmatmul.f32.gmra.mxu0 %v6253
      %v6368 = vpop.f32.mrf.mxu0
      %v6369 = vadd.f32 0.0, %v6368
      %6370 = vmatmul.f32.gmra.mxu0 %v6256
      %v6371 = vpop.f32.mrf.mxu0
      %v6372 = vadd.f32 0.0, %v6371
      %6373 = vmatmul.f32.gmra.mxu0 %v6259
      %v6374 = vpop.f32.mrf.mxu0
      %v6375 = vadd.f32 0.0, %v6374
      %6376 = vmatmul.f32.gmra.mxu0 %v6262
      %v6377 = vpop.f32.mrf.mxu0
      %v6378 = vadd.f32 0.0, %v6377
      %6379 = vmatmul.f32.gmra.mxu0 %v6265
      %v6380 = vpop.f32.mrf.mxu0
      %v6381 = vadd.f32 0.0, %v6380
      %6382 = vmatmul.f32.gmra.mxu0 %v6268
      %v6383 = vpop.f32.mrf.mxu0
      %v6384 = vadd.f32 0.0, %v6383
      %6385 = vmatmul.f32.gmra.mxu0 %v6271
      %v6386 = vpop.f32.mrf.mxu0
      %v6387 = vadd.f32 0.0, %v6386
      %6388 = vmatmul.f32.gmra.mxu0 %v6274
      %v6389 = vpop.f32.mrf.mxu0
      %v6390 = vadd.f32 0.0, %v6389
      %6391 = vmatmul.f32.gmra.mxu0 %v6277
      %v6392 = vpop.f32.mrf.mxu0
      %v6393 = vadd.f32 0.0, %v6392
      %6394 = vmatmul.f32.gmra.mxu0 %v6280
      %v6395 = vpop.f32.mrf.mxu0
      %v6396 = vadd.f32 0.0, %v6395
      %6397 = vmatmul.f32.gmra.mxu0 %v6283
      %v6398 = vpop.f32.mrf.mxu0
      %v6399 = vadd.f32 0.0, %v6398
      %6400 = vmatmul.f32.gmra.mxu0 %v6286
      %v6401 = vpop.f32.mrf.mxu0
      %v6402 = vadd.f32 0.0, %v6401
      %6403 = vdwg.mxu0
      %v6404 = vadd.f32 %v6094, %v6309
      %v6405 = vadd.f32 %v6095, %v6312
      %v6406 = vadd.f32 %v6096, %v6315
      %v6407 = vadd.f32 %v6097, %v6318
      %v6408 = vadd.f32 %v6098, %v6321
      %v6409 = vadd.f32 %v6099, %v6324
      %v6410 = vadd.f32 %v6100, %v6327
      %v6411 = vadd.f32 %v6101, %v6330
      %v6412 = vadd.f32 %v6102, %v6333
      %v6413 = vadd.f32 %v6103, %v6336
      %v6414 = vadd.f32 %v6104, %v6339
      %v6415 = vadd.f32 %v6105, %v6342
      %v6416 = vadd.f32 %v6106, %v6345
      %v6417 = vadd.f32 %v6107, %v6348
      %v6418 = vadd.f32 %v6108, %v6351
      %v6419 = vadd.f32 %v6109, %v6354
      %v6420 = vadd.f32 %v6110, %v6357
      %v6421 = vadd.f32 %v6111, %v6360
      %v6422 = vadd.f32 %v6112, %v6363
      %v6423 = vadd.f32 %v6113, %v6366
      %v6424 = vadd.f32 %v6114, %v6369
      %v6425 = vadd.f32 %v6115, %v6372
      %v6426 = vadd.f32 %v6116, %v6375
      %v6427 = vadd.f32 %v6117, %v6378
      %v6428 = vadd.f32 %v6118, %v6381
      %v6429 = vadd.f32 %v6119, %v6384
      %v6430 = vadd.f32 %v6120, %v6387
      %v6431 = vadd.f32 %v6121, %v6390
      %v6432 = vadd.f32 %v6122, %v6393
      %v6433 = vadd.f32 %v6123, %v6396
      %v6434 = vadd.f32 %v6124, %v6399
      %v6435 = vadd.f32 %v6125, %v6402
      %v6436 = vmax.f32 %v6404, 0.0
      %v6437 = vmax.f32 %v6405, 0.0
      %v6438 = vmax.f32 %v6406, 0.0
      %v6439 = vmax.f32 %v6407, 0.0
      %v6440 = vmax.f32 %v6408, 0.0
      %v6441 = vmax.f32 %v6409, 0.0
      %v6442 = vmax.f32 %v6410, 0.0
      %v6443 = vmax.f32 %v6411, 0.0
      %v6444 = vmax.f32 %v6412, 0.0
      %v6445 = vmax.f32 %v6413, 0.0
      %v6446 = vmax.f32 %v6414, 0.0
      %v6447 = vmax.f32 %v6415, 0.0
      %v6448 = vmax.f32 %v6416, 0.0
      %v6449 = vmax.f32 %v6417, 0.0
      %v6450 = vmax.f32 %v6418, 0.0
      %v6451 = vmax.f32 %v6419, 0.0
      %v6452 = vmax.f32 %v6420, 0.0
      %v6453 = vmax.f32 %v6421, 0.0
      %v6454 = vmax.f32 %v6422, 0.0
      %v6455 = vmax.f32 %v6423, 0.0
      %v6456 = vmax.f32 %v6424, 0.0
      %v6457 = vmax.f32 %v6425, 0.0
      %v6458 = vmax.f32 %v6426, 0.0
      %v6459 = vmax.f32 %v6427, 0.0
      %v6460 = vmax.f32 %v6428, 0.0
      %v6461 = vmax.f32 %v6429, 0.0
      %v6462 = vmax.f32 %v6430, 0.0
      %v6463 = vmax.f32 %v6431, 0.0
      %v6464 = vmax.f32 %v6432, 0.0
      %v6465 = vmax.f32 %v6433, 0.0
      %v6466 = vmax.f32 %v6434, 0.0
      %v6467 = vmax.f32 %v6435, 0.0
      %6468 = vst.msk [vmem:[%s224] sm:$0xff] %vm225, %v6436
      %6469 = vst.msk [vmem:[%s224 + $0x8] sm:$0xff] %vm225, %v6437
      %6470 = vst.msk [vmem:[%s224 + $0x10] sm:$0xff] %vm225, %v6438
      %6471 = vst.msk [vmem:[%s224 + $0x18] sm:$0xff] %vm225, %v6439
      %6472 = vst.msk [vmem:[%s224 + $0x20] sm:$0xff] %vm225, %v6440
      %6473 = vst.msk [vmem:[%s224 + $0x28] sm:$0xff] %vm225, %v6441
      %6474 = vst.msk [vmem:[%s224 + $0x30] sm:$0xff] %vm225, %v6442
      %6475 = vst.msk [vmem:[%s224 + $0x38] sm:$0xff] %vm225, %v6443
      %6476 = vst.msk [vmem:[%s224 + $0x40] sm:$0xff] %vm225, %v6444
      %6477 = vst.msk [vmem:[%s224 + $0x48] sm:$0xff] %vm225, %v6445
      %6478 = vst.msk [vmem:[%s224 + $0x50] sm:$0xff] %vm225, %v6446
      %6479 = vst.msk [vmem:[%s224 + $0x58] sm:$0xff] %vm225, %v6447
      %6480 = vst.msk [vmem:[%s224 + $0x60] sm:$0xff] %vm225, %v6448
      %6481 = vst.msk [vmem:[%s224 + $0x68] sm:$0xff] %vm225, %v6449
      %6482 = vst.msk [vmem:[%s224 + $0x70] sm:$0xff] %vm225, %v6450
      %6483 = vst.msk [vmem:[%s224 + $0x78] sm:$0xff] %vm225, %v6451
      %6484 = vst.msk [vmem:[%s224 + $0x80] sm:$0xff] %vm225, %v6452
      %6485 = vst.msk [vmem:[%s224 + $0x88] sm:$0xff] %vm225, %v6453
      %6486 = vst.msk [vmem:[%s224 + $0x90] sm:$0xff] %vm225, %v6454
      %6487 = vst.msk [vmem:[%s224 + $0x98] sm:$0xff] %vm225, %v6455
      %6488 = vst.msk [vmem:[%s224 + $0xa0] sm:$0xff] %vm225, %v6456
      %6489 = vst.msk [vmem:[%s224 + $0xa8] sm:$0xff] %vm225, %v6457
      %6490 = vst.msk [vmem:[%s224 + $0xb0] sm:$0xff] %vm225, %v6458
      %6491 = vst.msk [vmem:[%s224 + $0xb8] sm:$0xff] %vm225, %v6459
      %6492 = vst.msk [vmem:[%s224 + $0xc0] sm:$0xff] %vm225, %v6460
      %6493 = vst.msk [vmem:[%s224 + $0xc8] sm:$0xff] %vm225, %v6461
      %6494 = vst.msk [vmem:[%s224 + $0xd0] sm:$0xff] %vm225, %v6462
      %6495 = vst.msk [vmem:[%s224 + $0xd8] sm:$0xff] %vm225, %v6463
      %6496 = vst.msk [vmem:[%s224 + $0xe0] sm:$0xff] %vm225, %v6464
      %6497 = vst.msk [vmem:[%s224 + $0xe8] sm:$0xff] %vm225, %v6465
      %6498 = vst.msk [vmem:[%s224 + $0xf0] sm:$0xff] %vm225, %v6466
      %6499 = vst.msk [vmem:[%s224 + $0xf8] sm:$0xff] %vm225, %v6467
      %p6500 = scmp.lt.s32.totalorder %s16, 1
      %s6501 = scalar_select %p6500, %s16, 1
      %s6502 = smul.addr %s6501, 32
      %s6503 = smul.addr %s6502, 8
      %s6504 = scalar_lea.vmem %s5, %s6503
      // Predicated region
      $region41: #{tpu_custom_call.1} parent=39 // pred_check
        %p6505 = pneg %p144
      $region42: #{tpu_custom_call.1} parent=39 // pred_check_branch
        %6507 = sbr.rel (%p6505) target = $region44
      $region43: #{tpu_custom_call.1} parent=39 // pred_region
        _
      $region44: #{tpu_custom_call.1} parent=39 // pred_fallthru
        _
    $region40: #{tpu_custom_call.1} parent=5 // pred_fallthru
      _
    %p6508 = scmp.le.s32.totalorder 2, %s11
    // Predicated region
    $region45: #{tpu_custom_call.1} parent=5 // pred_check
      %p6509 = pneg %p6508
    $region46: #{tpu_custom_call.1} parent=5 // pred_check_branch
      %6511 = sbr.rel (%p6509) target = $region48
    $region47: #{tpu_custom_call.1} parent=5 // pred_region
      %s6512 = ssub.s32 %s11, 2
      // Predicated region
      $region49: #{tpu_custom_call.1} parent=47 // pred_check
        %p6513 = pneg %p150
      $region50: #{tpu_custom_call.1} parent=47 // pred_check_branch
        %6515 = sbr.rel (%p6513) target = $region52
      $region51: #{tpu_custom_call.1} parent=47 // pred_region
        %p6516 = scmp.lt.s32.totalorder %s17, 1
        %s6517 = scalar_select %p6516, %s17, 1
        %s6518 = smul.addr %s6517, 32
        %s6519 = smul.addr %s6518, 8
        %s6520 = scalar_lea.vmem %s5, %s6519
      $region52: #{tpu_custom_call.1} parent=47 // pred_fallthru
        _
    $region48: #{tpu_custom_call.1} parent=5 // pred_fallthru
      _
  $region6: #{tpu_custom_call.1} parent=0 // loop_footer
    %s15 = sadd.s32 1, %s11
  $region7: #{tpu_custom_call.1} parent=0 // loop_footer_branch
    %10 = sbr.rel target = $region3
  $region8: #{tpu_custom_call.1} parent=0 // loop_exit
    _

</llo_original>
